<compile_context>
chip_gen: v5e
topology: v5e:2x2
jax: 0.10.0
libtpu: 0.0.40
codegen_flags: <defaults>
</compile_context>

<pallas_src>
import functools
import math

import jax
import jax.numpy as jnp
from jax.experimental import pallas as pl
from jax.experimental.pallas import tpu as pltpu

MATMUL_DTYPE = jnp.bfloat16     # MXU-native operand dtype; accumulation is f32.
ACT_DTYPE = jnp.bfloat16        # storage dtype for inter-kernel activations.
VMEM_LIMIT = 32 * 1024 * 1024   # fits v5e/v6e/v7x scoped budgets with headroom.


# ----------------------------------------------------------------------------
# Helpers
# ----------------------------------------------------------------------------
def _round_up(x, m):
    return -(-x // m) * m


def _tile(dim, cap):
    """Tile size + padded dim. Full-dim blocks are always layout-legal."""
    if dim <= cap:
        return dim, dim
    return cap, _round_up(dim, cap)


def _pad_axis(a, axis, target):
    pad = target - a.shape[axis]
    if pad == 0:
        return a
    widths = [(0, 0)] * a.ndim
    widths[axis] = (0, pad)
    return jnp.pad(a, widths)


def _modulated_static_norm_jnp(x, gamma, beta):
    """Plain-JAX fallback: gamma * StaticLayerNorm(x) + beta (unbiased std)."""
    d = x.shape[-1]
    mean = jnp.mean(x, axis=-1, keepdims=True)
    c = x - mean
    var = jnp.sum(c * c, axis=-1, keepdims=True) / (d - 1)
    std = jnp.sqrt(var)
    std = jnp.where(std == 0.0, 1.0, std)
    return gamma * (c / std) + beta


# ----------------------------------------------------------------------------
# Fused (norm) -> matmul -> (bias/act/residual) kernel
# ----------------------------------------------------------------------------
def _fused_linear_kernel(*refs, act, has_bias, fuse_norm, fuse_residual,
                         k_feat, nk):
    it = iter(refs)
    x_ref = next(it)
    g_ref = next(it) if fuse_norm else None
    be_ref = next(it) if fuse_norm else None
    w_ref = next(it)
    b_ref = next(it) if has_bias else None
    r_ref = next(it) if fuse_residual else None
    a_ref = next(it) if fuse_residual else None
    o_ref = next(it)
    acc_ref = next(it) if nk > 1 else None

    x = x_ref[0]                                            # (ts, tk)
    if fuse_norm:
        # StaticLayerNorm (torch.std: unbiased; std==0 -> 1) + adaLN modulation.
        # Stats in f32; requires the full feature dim in one K tile (nk == 1).
        xf = x.astype(jnp.float32)
        mean = jnp.mean(xf, axis=-1, keepdims=True)
        c = xf - mean
        var = jnp.sum(c * c, axis=-1, keepdims=True) * (1.0 / (k_feat - 1))
        inv_std = jnp.where(var == 0.0, 1.0, jax.lax.rsqrt(var))   # EUP
        xm = (g_ref[0].astype(jnp.float32) * (c * inv_std)
              + be_ref[0].astype(jnp.float32)).astype(MATMUL_DTYPE)
    else:
        xm = x.astype(MATMUL_DTYPE)

    partial = jnp.dot(xm, w_ref[...].astype(MATMUL_DTYPE),
                      preferred_element_type=jnp.float32)

    def epilogue(y):
        if has_bias:
            y = y + b_ref[...].astype(jnp.float32)
        if act == "gelu":
            y = jax.nn.gelu(y)
        elif act == "silu":
            y = y * jax.nn.sigmoid(y)
        if fuse_residual:
            y = r_ref[0].astype(jnp.float32) + y * a_ref[0].astype(jnp.float32)
        o_ref[0] = y.astype(o_ref.dtype)

    if nk == 1:
        epilogue(partial)                     # no scratch, direct store
    else:
        k_step = pl.program_id(3)

        @pl.when(k_step == 0)
        def _():
            acc_ref[...] = partial            # direct assign (no zero-init+add)

        @pl.when(k_step != 0)
        def _():
            acc_ref[...] = acc_ref[...] + partial

        @pl.when(k_step == nk - 1)
        def _():
            epilogue(acc_ref[...])


def fused_linear(x, w, b=None, *, act="none", gamma=None, beta=None,
                 residual=None, alpha=None, out_dtype=jnp.float32,
                 ts_cap=512, tn_cap=2048, tk_cap=2048):
    """y[b] = epilogue(prologue(x[b]) @ w + b)   with x: (B, S, K), w: (K, N).

    prologue (optional): gamma[b] * StaticLayerNorm(x[b]) + beta[b]
    epilogue (optional): activation, then residual[b] + y * alpha[b]
    With tn_cap/tk_cap >= the model's K,N the weight is a single resident block
    (constant block index -> fetched from HBM once per pallas_call).
    """
    B, S, K = x.shape
    Kw, N = w.shape
    assert K == Kw, (K, Kw)

    fuse_norm = gamma is not None
    has_bias = b is not None
    fuse_res = residual is not None

    if fuse_norm and K > tk_cap:
        # TODO(synk): two-pass in-kernel stats for K larger than one K tile.
        x = _modulated_static_norm_jnp(x.astype(jnp.float32),
                                       gamma.astype(jnp.float32),
                                       beta.astype(jnp.float32))
        fuse_norm = False

    ts, Sp = _tile(S, ts_cap)
    tn, Np = _tile(N, tn_cap)
    tk, Kp = _tile(K, tk_cap)
    nk = Kp // tk

    xp = _pad_axis(_pad_axis(x, 1, Sp), 2, Kp)
    wp = _pad_axis(_pad_axis(w, 0, Kp), 1, Np)

    inputs = [xp]
    in_specs = [pl.BlockSpec((1, ts, tk), lambda bb, i, j, k: (bb, i, k))]

    if fuse_norm:
        # TODO(synk): cache the normalized block across j tiles if nj > 1
        # (with tn_cap=2048 every layer of this model has nj == 1).
        inputs += [gamma.astype(jnp.float32), beta.astype(jnp.float32)]
        in_specs += [pl.BlockSpec((1, 1, tk), lambda bb, i, j, k: (bb, 0, k)),
                     pl.BlockSpec((1, 1, tk), lambda bb, i, j, k: (bb, 0, k))]

    inputs.append(wp)
    in_specs.append(pl.BlockSpec((tk, tn), lambda bb, i, j, k: (k, j)))

    if has_bias:
        inputs.append(_pad_axis(b.reshape(1, N).astype(jnp.float32), 1, Np))
        in_specs.append(pl.BlockSpec((1, tn), lambda bb, i, j, k: (0, j)))

    if fuse_res:
        rp = _pad_axis(_pad_axis(residual.astype(jnp.float32), 1, Sp), 2, Np)
        ap = _pad_axis(alpha.astype(jnp.float32), 2, Np)
        inputs += [rp, ap]
        in_specs += [pl.BlockSpec((1, ts, tn), lambda bb, i, j, k: (bb, i, j)),
                     pl.BlockSpec((1, 1, tn), lambda bb, i, j, k: (bb, 0, j))]

    scratch = [pltpu.VMEM((ts, tn), jnp.float32)] if nk > 1 else []

    out = pl.pallas_call(
        functools.partial(_fused_linear_kernel, act=act, has_bias=has_bias,
                          fuse_norm=fuse_norm, fuse_residual=fuse_res,
                          k_feat=K, nk=nk),
        out_shape=jax.ShapeDtypeStruct((B, Sp, Np), out_dtype),
        grid=(B, Sp // ts, Np // tn, nk),
        in_specs=in_specs,
        out_specs=pl.BlockSpec((1, ts, tn), lambda bb, i, j, k: (bb, i, j)),
        scratch_shapes=scratch,
        compiler_params=pltpu.CompilerParams(
            dimension_semantics=("parallel", "parallel", "parallel", "arbitrary"),
            vmem_limit_bytes=VMEM_LIMIT),
    )(*inputs)

    if Sp != S or Np != N:
        out = out[:, :S, :N]
    return out


# ----------------------------------------------------------------------------
# Flash-style MHA + fused out-projection + residual*alpha epilogue
# qkv: (B, S, 3D) bf16 (from the fused QKV matmul) -> no head transposes.
# ----------------------------------------------------------------------------
def _attn_kernel(q_ref, k_ref, v_ref, wo_ref, wob_ref, r_ref, a_ref, o_ref,
                 m_ref, l_ref, acc_ref, *, heads, dh, scale, s_len, t_kv,
                 mask_kv):
    kvi = pl.program_id(2)

    @pl.when(kvi == 0)
    def _():
        m_ref[...] = jnp.full_like(m_ref, -jnp.inf)
        l_ref[...] = jnp.zeros_like(l_ref)
        acc_ref[...] = jnp.zeros_like(acc_ref)

    # Pre-scale q on the (tq, D) block (f32, once) instead of per-head scores.
    q = (q_ref[0].astype(jnp.float32) * scale).astype(MATMUL_DTYPE)
    k = k_ref[0].astype(MATMUL_DTYPE)
    v = v_ref[0].astype(MATMUL_DTYPE)

    if mask_kv:
        kv_pos = kvi * t_kv + jax.lax.broadcasted_iota(jnp.int32, (1, t_kv), 1)
        kv_valid = kv_pos < s_len

    # TODO(synk): pack 2 heads per MXU call (dh=64 fills 1/4 of a 256-wide MXU).
    for h in range(heads):                                  # static unroll
        lo, hi = h * dh, (h + 1) * dh
        s = jax.lax.dot_general(q[:, lo:hi], k[:, lo:hi],
                                (((1,), (1,)), ((), ())),
                                preferred_element_type=jnp.float32)  # (tq,tkv)
        if mask_kv:
            s = jnp.where(kv_valid, s, -1e30)
        m_prev = m_ref[h]                                   # (tq, 1)
        m_new = jnp.maximum(m_prev, jnp.max(s, axis=-1, keepdims=True))
        corr = jnp.exp(m_prev - m_new)
        p = jnp.exp(s - m_new)
        l_ref[h] = corr * l_ref[h] + jnp.sum(p, axis=-1, keepdims=True)
        acc_ref[:, lo:hi] = (corr * acc_ref[:, lo:hi]
                             + jnp.dot(p.astype(MATMUL_DTYPE), v[:, lo:hi],
                                       preferred_element_type=jnp.float32))
        m_ref[h] = m_new

    @pl.when(kvi == pl.num_programs(2) - 1)
    def _():
        # Normalize each head in place, then fused out-proj + residual + alpha.
        for h in range(heads):
            lo, hi = h * dh, (h + 1) * dh
            acc_ref[:, lo:hi] = acc_ref[:, lo:hi] * pl.reciprocal(
                l_ref[h], approx=True)
        y = jnp.dot(acc_ref[...].astype(MATMUL_DTYPE),
                    wo_ref[...].astype(MATMUL_DTYPE),
                    preferred_element_type=jnp.float32)
        y = y + wob_ref[...].astype(jnp.float32)
        o_ref[0] = (r_ref[0].astype(jnp.float32)
                    + y * a_ref[0].astype(jnp.float32)).astype(o_ref.dtype)


def attention_block(qkv, wo_w, wo_b, residual, alpha, *, heads, d_model,
                    t_cap=256):
    """out = residual + (MHA(qkv) @ wo + b_wo) * alpha, flash-tiled over kv."""
    B, S, threeD = qkv.shape
    D = d_model
    assert threeD == 3 * D, (threeD, D)
    assert D % 128 == 0, "fused-QKV lane slices must be 128-aligned"
    # TODO(synk): key_padding_mask support (example passes None).
    dh = D // heads
    t_s, Sp = _tile(S, t_cap)
    mask_kv = Sp != S

    qkvp = _pad_axis(qkv, 1, Sp)
    resp = _pad_axis(residual.astype(jnp.float32), 1, Sp)
    wo_bias = wo_b.reshape(1, D).astype(jnp.float32)
    alpha_f = alpha.astype(jnp.float32)

    n_t = Sp // t_s
    out = pl.pallas_call(
        functools.partial(_attn_kernel, heads=heads, dh=dh,
                          scale=1.0 / math.sqrt(dh), s_len=S, t_kv=t_s,
                          mask_kv=mask_kv),
        out_shape=jax.ShapeDtypeStruct((B, Sp, D), jnp.float32),
        grid=(B, n_t, n_t),
        in_specs=[
            pl.BlockSpec((1, t_s, D), lambda b, qi, ki: (b, qi, 0)),   # q
            pl.BlockSpec((1, t_s, D), lambda b, qi, ki: (b, ki, 1)),   # k
            pl.BlockSpec((1, t_s, D), lambda b, qi, ki: (b, ki, 2)),   # v
            pl.BlockSpec((D, D), lambda b, qi, ki: (0, 0)),            # wo
            pl.BlockSpec((1, D), lambda b, qi, ki: (0, 0)),            # wo bias
            pl.BlockSpec((1, t_s, D), lambda b, qi, ki: (b, qi, 0)),   # residual
            pl.BlockSpec((1, 1, D), lambda b, qi, ki: (b, 0, 0)),      # alpha
        ],
        out_specs=pl.BlockSpec((1, t_s, D), lambda b, qi, ki: (b, qi, 0)),
        scratch_shapes=[pltpu.VMEM((heads, t_s, 1), jnp.float32),   # m
                        pltpu.VMEM((heads, t_s, 1), jnp.float32),   # l
                        pltpu.VMEM((t_s, D), jnp.float32)],         # acc
        compiler_params=pltpu.CompilerParams(
            dimension_semantics=("parallel", "parallel", "arbitrary"),
            vmem_limit_bytes=VMEM_LIMIT),
    )(qkvp, qkvp, qkvp, wo_w, wo_bias, resp, alpha_f)

    if Sp != S:
        out = out[:, :S, :]
    return out


# ----------------------------------------------------------------------------
# Model glue (plain JAX orchestrating the Pallas kernels)
# ----------------------------------------------------------------------------
def _mlp_xla(layers, x, act):
    """Tiny timestep MLPs on (B,1,d) operands: plain XLA (launch-bound otherwise)."""
    n = len(layers)
    for i, layer in enumerate(layers):
        x = jnp.dot(x, layer["w"].astype(jnp.float32)) + layer["b"]
        if i < n - 1:
            if act == "silu":
                x = x * jax.nn.sigmoid(x)
            elif act == "gelu":
                x = jax.nn.gelu(x)
    return x


def adaln_forward(p, e_t, d_model):
    gb = _mlp_xla(p["gamma_beta"], e_t, "silu")
    alpha = _mlp_xla(p["alpha"], e_t, "silu")
    return gb[..., :d_model], gb[..., d_model:], alpha


def encoder_forward(p, cfg, x, t_feat):
    d = cfg["d_proj"]
    g1, b1, a1 = adaln_forward(p["attn_adaln"], t_feat, d)
    g2, b2, a2 = adaln_forward(p["ffn_adaln"], t_feat, d)

    # Attention branch: [norm+modulate+QKV] -> [flash MHA + wo + residual*alpha]
    qkv = fused_linear(x, p["attn"]["wqkv"]["w"], p["attn"]["wqkv"]["b"],
                       gamma=g1, beta=b1, out_dtype=ACT_DTYPE)
    x = attention_block(qkv, p["attn"]["wo"]["w"], p["attn"]["wo"]["b"],
                        residual=x, alpha=a1, heads=cfg["heads"], d_model=d)

    # FFN branch: [norm+modulate+L0+gelu] -> hidden (bf16) -> [Llast + residual*alpha]
    layers = p["ffn"]
    h = fused_linear(x, layers[0]["w"], layers[0]["b"], act="gelu",
                     gamma=g2, beta=b2, out_dtype=ACT_DTYPE)
    for layer in layers[1:-1]:
        h = fused_linear(h, layer["w"], layer["b"], act="gelu",
                         out_dtype=ACT_DTYPE)
    x = fused_linear(h, layers[-1]["w"], layers[-1]["b"],
                     residual=x, alpha=a2)                  # trunk stays f32
    return x


def featurize_t(wavenumbers, t):
    t = t.astype(jnp.float32)
    phase = wavenumbers[None, None, :] * t[:, None, None]          # (B,1,n_wave)
    tf = jnp.stack([jnp.sin(phase), jnp.cos(phase)], axis=3)       # (B,1,n_wave,2)
    return tf.reshape(t.shape[0], 1, wavenumbers.shape[0] * 2)     # interleaved


def wavefunction_diffusion_forward(params, cfg, wf, t, coords_alpha=None,
                                   key_padding_mask=None):
    # coords_alpha only feeds GeoAttention (use_bias=True path) -> ignored here.
    # TODO(synk): key_padding_mask support (no masking path; example passes None).
    t_feat = featurize_t(params["wavenumbers"], t)
    x = fused_linear(wf.astype(jnp.float32),
                     params["d_proj"]["w"], params["d_proj"]["b"])
    for enc in params["encoders"]:
        x = encoder_forward(enc, cfg, x, t_feat)
    return fused_linear(x, params["noise_proj"]["w"])              # bias=False


# ----------------------------------------------------------------------------
# Pure-JAX reference (same params / same structure) for a numeric sanity check
# ----------------------------------------------------------------------------
def _ref_mha(qkv, heads, d_model):
    B, S, _ = qkv.shape
    dh = d_model // heads
    q, k, v = (qkv[..., :d_model], qkv[..., d_model:2 * d_model],
               qkv[..., 2 * d_model:])
    split = lambda z: z.reshape(B, S, heads, dh).transpose(0, 2, 1, 3)
    qh, kh, vh = split(q), split(k), split(v)
    s = jnp.einsum("bhqd,bhkd->bhqk", qh, kh) / math.sqrt(dh)
    p = jax.nn.softmax(s, axis=-1)
    o = jnp.einsum("bhqk,bhkd->bhqd", p, vh)
    return o.transpose(0, 2, 1, 3).reshape(B, S, d_model)


def reference_forward(params, cfg, wf, t):
    f32 = jnp.float32
    t_feat = featurize_t(params["wavenumbers"], t)
    x = jnp.dot(wf, params["d_proj"]["w"].astype(f32)) + params["d_proj"]["b"]
    d = cfg["d_proj"]
    for p in params["encoders"]:
        g1, b1, a1 = adaln_forward(p["attn_adaln"], t_feat, d)
        g2, b2, a2 = adaln_forward(p["ffn_adaln"], t_feat, d)
        x2 = _modulated_static_norm_jnp(x, g1, b1)
        qkv = (jnp.dot(x2, p["attn"]["wqkv"]["w"].astype(f32))
               + p["attn"]["wqkv"]["b"])
        a_out = _ref_mha(qkv, cfg["heads"], d)
        a_out = jnp.dot(a_out, p["attn"]["wo"]["w"].astype(f32)) + p["attn"]["wo"]["b"]
        x = x + a_out * a1
        h = _modulated_static_norm_jnp(x, g2, b2)
        n = len(p["ffn"])
        for i, layer in enumerate(p["ffn"]):
            h = jnp.dot(h, layer["w"].astype(f32)) + layer["b"]
            if i < n - 1:
                h = jax.nn.gelu(h)
        x = x + h * a2
    return jnp.dot(x, params["noise_proj"]["w"].astype(f32))


# ----------------------------------------------------------------------------
# Deterministic parameter init (synthetic; shapes follow the module's __init__)
# ----------------------------------------------------------------------------
def _init_linear(key, d_in, d_out, bias=True, scale=0.05, w_dtype=jnp.float32):
    kw, kb = jax.random.split(key)
    w = (scale * jax.random.normal(kw, (d_in, d_out), jnp.float32)).astype(w_dtype)
    b = scale * jax.random.normal(kb, (d_out,), jnp.float32) if bias else None
    return {"w": w, "b": b}


def _init_mlp(key, d_in, d_out, d_hidden, hidden_layers, w_dtype=jnp.float32):
    dims = [d_in, d_hidden] + [d_hidden] * hidden_layers + [d_out]
    keys = jax.random.split(key, len(dims) - 1)
    return [_init_linear(k, dims[i], dims[i + 1], w_dtype=w_dtype)
            for i, k in enumerate(keys)]


def _init_encoder(key, cfg):
    ks = jax.random.split(key, 9)
    d = cfg["d_proj"]
    wq = _init_linear(ks[0], d, d, w_dtype=MATMUL_DTYPE)
    wk = _init_linear(ks[1], d, d, w_dtype=MATMUL_DTYPE)
    wv = _init_linear(ks[2], d, d, w_dtype=MATMUL_DTYPE)
    return {
        "attn": {
            "wqkv": {"w": jnp.concatenate([wq["w"], wk["w"], wv["w"]], axis=1),
                     "b": jnp.concatenate([wq["b"], wk["b"], wv["b"]], axis=0)},
            "wo": _init_linear(ks[3], d, d, w_dtype=MATMUL_DTYPE),
        },
        "attn_adaln": {
            "gamma_beta": _init_mlp(ks[4], cfg["d_in_timestep"], 2 * d,
                                    cfg["d_hidden_timestep"],
                                    cfg["hidden_layers_timestep"]),
            "alpha": _init_mlp(ks[5], cfg["d_in_timestep"], d,
                               cfg["d_hidden_timestep"],
                               cfg["hidden_layers_timestep"]),
        },
        "ffn_adaln": {
            "gamma_beta": _init_mlp(ks[6], cfg["d_in_timestep"], 2 * d,
                                    cfg["d_hidden_timestep"],
                                    cfg["hidden_layers_timestep"]),
            "alpha": _init_mlp(ks[7], cfg["d_in_timestep"], d,
                               cfg["d_hidden_timestep"],
                               cfg["hidden_layers_timestep"]),
        },
        "ffn": _init_mlp(ks[8], d, d, cfg["d_hidden_attn"],
                         cfg["hidden_layers_attn"], w_dtype=MATMUL_DTYPE),
    }


def init_wavefunction_diffusion(key, cfg):
    k_proj, k_noise, *k_enc = jax.random.split(key, 2 + cfg["encoder_layers"])
    wavenumbers = 10000.0 ** (
        -jnp.arange(0, cfg["d_in_timestep"], 2, dtype=jnp.float32) / cfg["d_latent"])
    return {
        "wavenumbers": wavenumbers,
        "d_proj": _init_linear(k_proj, cfg["d_latent"], cfg["d_proj"],
                               w_dtype=MATMUL_DTYPE),
        "encoders": [_init_encoder(k, cfg) for k in k_enc],
        "noise_proj": _init_linear(k_noise, cfg["d_proj"], cfg["d_latent"],
                                   bias=False, w_dtype=MATMUL_DTYPE),
    }


# ----------------------------------------------------------------------------
if __name__ == "__main__":
    # Small-shape config consistent with the module's structure
    # (module hard-codes d_proj=512; scaled down for the test; d_proj kept a
    #  multiple of 128 so fused-QKV lane slices stay tile aligned).
    cfg = dict(
        d_latent=32, d_proj=128, d_in_timestep=32,
        d_hidden_timestep=64, hidden_layers_timestep=1,
        d_hidden_attn=256, hidden_layers_attn=0,
        heads=4, encoder_layers=2, t_max=100,
    )
    B, S = 2, 16

    key = jax.random.PRNGKey(0)
    k_params, k_wf, k_t, k_coords = jax.random.split(key, 4)
    params = init_wavefunction_diffusion(k_params, cfg)

    wf = jax.random.normal(k_wf, (B, S, cfg["d_latent"]), jnp.float32)
    t = jax.random.randint(k_t, (B,), 1, cfg["t_max"] + 1)
    coords_alpha = jax.random.normal(k_coords, (B, S, 3), jnp.float32)

    fwd = jax.jit(lambda wf_, t_, c_: wavefunction_diffusion_forward(
        params, cfg, wf_, t_, c_))
    noise = jax.block_until_ready(fwd(wf, t, coords_alpha))

    assert noise.shape == (B, S, cfg["d_latent"]), noise.shape
    assert bool(jnp.all(jnp.isfinite(noise)))

    # Loose numeric check vs a pure-JAX f32 reference (bf16 MXU operands, bf16
    # intermediate activations and approx reciprocal give small bounded diffs).
    ref = jax.block_until_ready(
        jax.jit(lambda wf_, t_: reference_forward(params, cfg, wf_, t_))(wf, t))
    err = float(jnp.max(jnp.abs(noise - ref)))
    scale = float(jnp.max(jnp.abs(ref))) + 1e-6
    assert err <= 0.12 * scale + 1e-2, (err, scale)

    print("KERNEL_OK")
</pallas_src>

<mosaic_0001>
module attributes {stable_mosaic.version = 11 : i64} {
  func.func @_fused_linear_kernel(%arg0: i32, %arg1: i32, %arg2: i32, %arg3: i32, %arg4: memref<1x16x128xf32, #tpu.memory_space<vmem>>, %arg5: memref<1x1x128xf32, #tpu.memory_space<vmem>>, %arg6: memref<1x1x128xf32, #tpu.memory_space<vmem>>, %arg7: memref<128x384xbf16, #tpu.memory_space<vmem>>, %arg8: memref<1x384xf32, #tpu.memory_space<vmem>>, %arg9: memref<1x16x384xbf16, #tpu.memory_space<vmem>>) attributes {dimension_semantics = [#tpu.dimension_semantics<parallel>, #tpu.dimension_semantics<parallel>, #tpu.dimension_semantics<parallel>, #tpu.dimension_semantics<arbitrary>], iteration_bounds = array<i64: 2, 1, 1, 1>, scalar_prefetch = 0 : i64, scratch_operands = 0 : i64, tpu.core_type = #tpu.core_type<tc>, window_params = [{transform_indices = @transform_0, window_bounds = array<i64: 1, 16, 128>}, {transform_indices = @transform_1, window_bounds = array<i64: 1, 1, 128>}, {transform_indices = @transform_2, window_bounds = array<i64: 1, 1, 128>}, {transform_indices = @transform_3, window_bounds = array<i64: 128, 384>}, {transform_indices = @transform_4, window_bounds = array<i64: 1, 384>}, {transform_indices = @transform_5, window_bounds = array<i64: 1, 16, 384>}]} {
    %c0 = arith.constant 0 : index
    %c0_0 = arith.constant 0 : index
    %c0_1 = arith.constant 0 : index
    %0 = vector.load %arg4[%c0, %c0_0, %c0_1] : memref<1x16x128xf32, #tpu.memory_space<vmem>>, vector<1x16x128xf32>
    %1 = vector.shape_cast %0 : vector<1x16x128xf32> to vector<16x128xf32>
    %cst = arith.constant dense<0.000000e+00> : vector<16xf32>
    %2 = vector.multi_reduction <add>, %1, %cst [1] : vector<16x128xf32> to vector<16xf32>
    %3 = vector.shape_cast %2 : vector<16xf32> to vector<16x1xf32>
    %cst_2 = arith.constant 1.280000e+02 : f32
    %4 = vector.broadcast %cst_2 : f32 to vector<16x1xf32>
    %5 = arith.divf %3, %4 : vector<16x1xf32>
    %6 = vector.broadcast %5 : vector<16x1xf32> to vector<16x128xf32>
    %7 = arith.subf %1, %6 : vector<16x128xf32>
    %8 = arith.mulf %7, %7 : vector<16x128xf32>
    %cst_3 = arith.constant dense<0.000000e+00> : vector<16xf32>
    %9 = vector.multi_reduction <add>, %8, %cst_3 [1] : vector<16x128xf32> to vector<16xf32>
    %10 = vector.shape_cast %9 : vector<16xf32> to vector<16x1xf32>
    %cst_4 = arith.constant 0.00787401571 : f32
    %11 = vector.broadcast %cst_4 : f32 to vector<16x1xf32>
    %12 = arith.mulf %10, %11 : vector<16x1xf32>
    %cst_5 = arith.constant 0.000000e+00 : f32
    %13 = vector.broadcast %cst_5 : f32 to vector<16x1xf32>
    %14 = arith.cmpf oeq, %12, %13 : vector<16x1xf32>
    %15 = math.rsqrt %12 : vector<16x1xf32>
    %cst_6 = arith.constant 1.000000e+00 : f32
    %16 = vector.broadcast %cst_6 : f32 to vector<16x1xf32>
    %17 = arith.select %14, %16, %15 : vector<16x1xi1>, vector<16x1xf32>
    %c0_7 = arith.constant 0 : index
    %c0_8 = arith.constant 0 : index
    %c0_9 = arith.constant 0 : index
    %18 = vector.load %arg5[%c0_7, %c0_8, %c0_9] : memref<1x1x128xf32, #tpu.memory_space<vmem>>, vector<1x1x128xf32>
    %19 = vector.shape_cast %18 : vector<1x1x128xf32> to vector<1x128xf32>
    %20 = vector.broadcast %17 : vector<16x1xf32> to vector<16x128xf32>
    %21 = arith.mulf %7, %20 : vector<16x128xf32>
    %22 = vector.broadcast %19 : vector<1x128xf32> to vector<16x128xf32>
    %23 = arith.mulf %22, %21 : vector<16x128xf32>
    %c0_10 = arith.constant 0 : index
    %c0_11 = arith.constant 0 : index
    %c0_12 = arith.constant 0 : index
    %24 = vector.load %arg6[%c0_10, %c0_11, %c0_12] : memref<1x1x128xf32, #tpu.memory_space<vmem>>, vector<1x1x128xf32>
    %25 = vector.shape_cast %24 : vector<1x1x128xf32> to vector<1x128xf32>
    %26 = vector.broadcast %25 : vector<1x128xf32> to vector<16x128xf32>
    %27 = arith.addf %23, %26 : vector<16x128xf32>
    %28 = arith.truncf %27 : vector<16x128xf32> to vector<16x128xbf16>
    %c0_13 = arith.constant 0 : index
    %c0_14 = arith.constant 0 : index
    %29 = vector.load %arg7[%c0_13, %c0_14] : memref<128x384xbf16, #tpu.memory_space<vmem>>, vector<128x384xbf16>
    %cst_15 = arith.constant dense<0.000000e+00> : vector<16x384xf32>
    %30 = tpu.matmul %28, %29, %cst_15 {dimension_numbers = #tpu.dot_dimension_numbers<[1], [0], [0], [1], [0, 0, 1, 1], [], []>} : vector<16x128xbf16>, vector<128x384xbf16>, vector<16x384xf32> -> vector<16x384xf32>
    %c0_16 = arith.constant 0 : index
    %c0_17 = arith.constant 0 : index
    %31 = vector.load %arg8[%c0_16, %c0_17] : memref<1x384xf32, #tpu.memory_space<vmem>>, vector<1x384xf32>
    %32 = vector.broadcast %31 : vector<1x384xf32> to vector<16x384xf32>
    %33 = arith.addf %30, %32 : vector<16x384xf32>
    %34 = arith.truncf %33 : vector<16x384xf32> to vector<16x384xbf16>
    %c0_18 = arith.constant 0 : index
    %c0_19 = arith.constant 0 : index
    %c0_20 = arith.constant 0 : index
    %35 = vector.load %arg9[%c0_18, %c0_19, %c0_20] : memref<1x16x384xbf16, #tpu.memory_space<vmem>>, vector<1x16x384xbf16>
    %36 = vector.shape_cast %35 : vector<1x16x384xbf16> to vector<16x384xbf16>
    %37 = vector.shape_cast %34 : vector<16x384xbf16> to vector<1x16x384xbf16>
    tpu.vector_store %arg9[%c0_18, %c0_19, %c0_20], %37 {strides = array<i32>} : memref<1x16x384xbf16, #tpu.memory_space<vmem>>, vector<1x16x384xbf16>,
    return
  }
  func.func @transform_0(%arg0: i32, %arg1: i32, %arg2: i32, %arg3: i32) -> (i32, i32, i32) {
    %c0_i32 = arith.constant 0 : i32
    return %arg0, %arg1, %arg3 : i32, i32, i32
  }
  func.func @transform_1(%arg0: i32, %arg1: i32, %arg2: i32, %arg3: i32) -> (i32, i32, i32) {
    %c0_i32 = arith.constant 0 : i32
    %c0_i32_0 = arith.constant 0 : i32
    return %arg0, %c0_i32, %arg3 : i32, i32, i32
  }
  func.func @transform_2(%arg0: i32, %arg1: i32, %arg2: i32, %arg3: i32) -> (i32, i32, i32) {
    %c0_i32 = arith.constant 0 : i32
    %c0_i32_0 = arith.constant 0 : i32
    return %arg0, %c0_i32, %arg3 : i32, i32, i32
  }
  func.func @transform_3(%arg0: i32, %arg1: i32, %arg2: i32, %arg3: i32) -> (i32, i32) {
    %c0_i32 = arith.constant 0 : i32
    return %arg3, %arg2 : i32, i32
  }
  func.func @transform_4(%arg0: i32, %arg1: i32, %arg2: i32, %arg3: i32) -> (i32, i32) {
    %c0_i32 = arith.constant 0 : i32
    %c0_i32_0 = arith.constant 0 : i32
    return %c0_i32, %arg2 : i32, i32
  }
  func.func @transform_5(%arg0: i32, %arg1: i32, %arg2: i32, %arg3: i32) -> (i32, i32, i32) {
    %c0_i32 = arith.constant 0 : i32
    return %arg0, %arg1, %arg2 : i32, i32, i32
  }
}

module attributes {stable_mosaic.version = 11 : i64} {
  func.func @_fused_linear_kernel(%arg0: i32, %arg1: i32, %arg2: i32, %arg3: i32, %arg4: memref<1x16x32xf32, #tpu.memory_space<vmem>>, %arg5: memref<32x128xbf16, #tpu.memory_space<vmem>>, %arg6: memref<1x128xf32, #tpu.memory_space<vmem>>, %arg7: memref<1x16x128xf32, #tpu.memory_space<vmem>>) attributes {dimension_semantics = [#tpu.dimension_semantics<parallel>, #tpu.dimension_semantics<parallel>, #tpu.dimension_semantics<parallel>, #tpu.dimension_semantics<arbitrary>], iteration_bounds = array<i64: 2, 1, 1, 1>, scalar_prefetch = 0 : i64, scratch_operands = 0 : i64, tpu.core_type = #tpu.core_type<tc>, window_params = [{transform_indices = @transform_0, window_bounds = array<i64: 1, 16, 32>}, {transform_indices = @transform_1, window_bounds = array<i64: 32, 128>}, {transform_indices = @transform_2, window_bounds = array<i64: 1, 128>}, {transform_indices = @transform_3, window_bounds = array<i64: 1, 16, 128>}]} {
    %c0 = arith.constant 0 : index
    %c0_0 = arith.constant 0 : index
    %c0_1 = arith.constant 0 : index
    %0 = vector.load %arg4[%c0, %c0_0, %c0_1] : memref<1x16x32xf32, #tpu.memory_space<vmem>>, vector<1x16x32xf32>
    %1 = vector.shape_cast %0 : vector<1x16x32xf32> to vector<16x32xf32>
    %2 = arith.truncf %1 : vector<16x32xf32> to vector<16x32xbf16>
    %c0_2 = arith.constant 0 : index
    %c0_3 = arith.constant 0 : index
    %3 = vector.load %arg5[%c0_2, %c0_3] : memref<32x128xbf16, #tpu.memory_space<vmem>>, vector<32x128xbf16>
    %cst = arith.constant dense<0.000000e+00> : vector<16x128xf32>
    %4 = tpu.matmul %2, %3, %cst {dimension_numbers = #tpu.dot_dimension_numbers<[1], [0], [0], [1], [0, 0, 1, 1], [], []>} : vector<16x32xbf16>, vector<32x128xbf16>, vector<16x128xf32> -> vector<16x128xf32>
    %c0_4 = arith.constant 0 : index
    %c0_5 = arith.constant 0 : index
    %5 = vector.load %arg6[%c0_4, %c0_5] : memref<1x128xf32, #tpu.memory_space<vmem>>, vector<1x128xf32>
    %6 = vector.broadcast %5 : vector<1x128xf32> to vector<16x128xf32>
    %7 = arith.addf %4, %6 : vector<16x128xf32>
    %c0_6 = arith.constant 0 : index
    %c0_7 = arith.constant 0 : index
    %c0_8 = arith.constant 0 : index
    %8 = vector.load %arg7[%c0_6, %c0_7, %c0_8] : memref<1x16x128xf32, #tpu.memory_space<vmem>>, vector<1x16x128xf32>
    %9 = vector.shape_cast %8 : vector<1x16x128xf32> to vector<16x128xf32>
    %10 = vector.shape_cast %7 : vector<16x128xf32> to vector<1x16x128xf32>
    tpu.vector_store %arg7[%c0_6, %c0_7, %c0_8], %10 {strides = array<i32>} : memref<1x16x128xf32, #tpu.memory_space<vmem>>, vector<1x16x128xf32>,
    return
  }
  func.func @transform_0(%arg0: i32, %arg1: i32, %arg2: i32, %arg3: i32) -> (i32, i32, i32) {
    %c0_i32 = arith.constant 0 : i32
    return %arg0, %arg1, %arg3 : i32, i32, i32
  }
  func.func @transform_1(%arg0: i32, %arg1: i32, %arg2: i32, %arg3: i32) -> (i32, i32) {
    %c0_i32 = arith.constant 0 : i32
    return %arg3, %arg2 : i32, i32
  }
  func.func @transform_2(%arg0: i32, %arg1: i32, %arg2: i32, %arg3: i32) -> (i32, i32) {
    %c0_i32 = arith.constant 0 : i32
    %c0_i32_0 = arith.constant 0 : i32
    return %c0_i32, %arg2 : i32, i32
  }
  func.func @transform_3(%arg0: i32, %arg1: i32, %arg2: i32, %arg3: i32) -> (i32, i32, i32) {
    %c0_i32 = arith.constant 0 : i32
    return %arg0, %arg1, %arg2 : i32, i32, i32
  }
}

module attributes {stable_mosaic.version = 11 : i64} {
  func.func @_fused_linear_kernel(%arg0: i32, %arg1: i32, %arg2: i32, %arg3: i32, %arg4: memref<1x16x128xf32, #tpu.memory_space<vmem>>, %arg5: memref<1x1x128xf32, #tpu.memory_space<vmem>>, %arg6: memref<1x1x128xf32, #tpu.memory_space<vmem>>, %arg7: memref<128x256xbf16, #tpu.memory_space<vmem>>, %arg8: memref<1x256xf32, #tpu.memory_space<vmem>>, %arg9: memref<1x16x256xbf16, #tpu.memory_space<vmem>>) attributes {dimension_semantics = [#tpu.dimension_semantics<parallel>, #tpu.dimension_semantics<parallel>, #tpu.dimension_semantics<parallel>, #tpu.dimension_semantics<arbitrary>], iteration_bounds = array<i64: 2, 1, 1, 1>, scalar_prefetch = 0 : i64, scratch_operands = 0 : i64, tpu.core_type = #tpu.core_type<tc>, window_params = [{transform_indices = @transform_0, window_bounds = array<i64: 1, 16, 128>}, {transform_indices = @transform_1, window_bounds = array<i64: 1, 1, 128>}, {transform_indices = @transform_2, window_bounds = array<i64: 1, 1, 128>}, {transform_indices = @transform_3, window_bounds = array<i64: 128, 256>}, {transform_indices = @transform_4, window_bounds = array<i64: 1, 256>}, {transform_indices = @transform_5, window_bounds = array<i64: 1, 16, 256>}]} {
    %c0 = arith.constant 0 : index
    %c0_0 = arith.constant 0 : index
    %c0_1 = arith.constant 0 : index
    %0 = vector.load %arg4[%c0, %c0_0, %c0_1] : memref<1x16x128xf32, #tpu.memory_space<vmem>>, vector<1x16x128xf32>
    %1 = vector.shape_cast %0 : vector<1x16x128xf32> to vector<16x128xf32>
    %cst = arith.constant dense<0.000000e+00> : vector<16xf32>
    %2 = vector.multi_reduction <add>, %1, %cst [1] : vector<16x128xf32> to vector<16xf32>
    %3 = vector.shape_cast %2 : vector<16xf32> to vector<16x1xf32>
    %cst_2 = arith.constant 1.280000e+02 : f32
    %4 = vector.broadcast %cst_2 : f32 to vector<16x1xf32>
    %5 = arith.divf %3, %4 : vector<16x1xf32>
    %6 = vector.broadcast %5 : vector<16x1xf32> to vector<16x128xf32>
    %7 = arith.subf %1, %6 : vector<16x128xf32>
    %8 = arith.mulf %7, %7 : vector<16x128xf32>
    %cst_3 = arith.constant dense<0.000000e+00> : vector<16xf32>
    %9 = vector.multi_reduction <add>, %8, %cst_3 [1] : vector<16x128xf32> to vector<16xf32>
    %10 = vector.shape_cast %9 : vector<16xf32> to vector<16x1xf32>
    %cst_4 = arith.constant 0.00787401571 : f32
    %11 = vector.broadcast %cst_4 : f32 to vector<16x1xf32>
    %12 = arith.mulf %10, %11 : vector<16x1xf32>
    %cst_5 = arith.constant 0.000000e+00 : f32
    %13 = vector.broadcast %cst_5 : f32 to vector<16x1xf32>
    %14 = arith.cmpf oeq, %12, %13 : vector<16x1xf32>
    %15 = math.rsqrt %12 : vector<16x1xf32>
    %cst_6 = arith.constant 1.000000e+00 : f32
    %16 = vector.broadcast %cst_6 : f32 to vector<16x1xf32>
    %17 = arith.select %14, %16, %15 : vector<16x1xi1>, vector<16x1xf32>
    %c0_7 = arith.constant 0 : index
    %c0_8 = arith.constant 0 : index
    %c0_9 = arith.constant 0 : index
    %18 = vector.load %arg5[%c0_7, %c0_8, %c0_9] : memref<1x1x128xf32, #tpu.memory_space<vmem>>, vector<1x1x128xf32>
    %19 = vector.shape_cast %18 : vector<1x1x128xf32> to vector<1x128xf32>
    %20 = vector.broadcast %17 : vector<16x1xf32> to vector<16x128xf32>
    %21 = arith.mulf %7, %20 : vector<16x128xf32>
    %22 = vector.broadcast %19 : vector<1x128xf32> to vector<16x128xf32>
    %23 = arith.mulf %22, %21 : vector<16x128xf32>
    %c0_10 = arith.constant 0 : index
    %c0_11 = arith.constant 0 : index
    %c0_12 = arith.constant 0 : index
    %24 = vector.load %arg6[%c0_10, %c0_11, %c0_12] : memref<1x1x128xf32, #tpu.memory_space<vmem>>, vector<1x1x128xf32>
    %25 = vector.shape_cast %24 : vector<1x1x128xf32> to vector<1x128xf32>
    %26 = vector.broadcast %25 : vector<1x128xf32> to vector<16x128xf32>
    %27 = arith.addf %23, %26 : vector<16x128xf32>
    %28 = arith.truncf %27 : vector<16x128xf32> to vector<16x128xbf16>
    %c0_13 = arith.constant 0 : index
    %c0_14 = arith.constant 0 : index
    %29 = vector.load %arg7[%c0_13, %c0_14] : memref<128x256xbf16, #tpu.memory_space<vmem>>, vector<128x256xbf16>
    %cst_15 = arith.constant dense<0.000000e+00> : vector<16x256xf32>
    %30 = tpu.matmul %28, %29, %cst_15 {dimension_numbers = #tpu.dot_dimension_numbers<[1], [0], [0], [1], [0, 0, 1, 1], [], []>} : vector<16x128xbf16>, vector<128x256xbf16>, vector<16x256xf32> -> vector<16x256xf32>
    %c0_16 = arith.constant 0 : index
    %c0_17 = arith.constant 0 : index
    %31 = vector.load %arg8[%c0_16, %c0_17] : memref<1x256xf32, #tpu.memory_space<vmem>>, vector<1x256xf32>
    %32 = vector.broadcast %31 : vector<1x256xf32> to vector<16x256xf32>
    %33 = arith.addf %30, %32 : vector<16x256xf32>
    %34 = arith.mulf %33, %33 : vector<16x256xf32>
    %35 = arith.mulf %33, %34 : vector<16x256xf32>
    %cst_18 = arith.constant 4.471500e-02 : f32
    %36 = vector.broadcast %cst_18 : f32 to vector<16x256xf32>
    %37 = arith.mulf %36, %35 : vector<16x256xf32>
    %38 = arith.addf %33, %37 : vector<16x256xf32>
    %cst_19 = arith.constant 0.797884583 : f32
    %39 = vector.broadcast %cst_19 : f32 to vector<16x256xf32>
    %40 = arith.mulf %39, %38 : vector<16x256xf32>
    %41 = math.tanh %40 : vector<16x256xf32>
    %cst_20 = arith.constant 1.000000e+00 : f32
    %42 = vector.broadcast %cst_20 : f32 to vector<16x256xf32>
    %43 = arith.addf %42, %41 : vector<16x256xf32>
    %cst_21 = arith.constant 5.000000e-01 : f32
    %44 = vector.broadcast %cst_21 : f32 to vector<16x256xf32>
    %45 = arith.mulf %44, %43 : vector<16x256xf32>
    %46 = arith.mulf %33, %45 : vector<16x256xf32>
    %47 = arith.truncf %46 : vector<16x256xf32> to vector<16x256xbf16>
    %c0_22 = arith.constant 0 : index
    %c0_23 = arith.constant 0 : index
    %c0_24 = arith.constant 0 : index
    %48 = vector.load %arg9[%c0_22, %c0_23, %c0_24] : memref<1x16x256xbf16, #tpu.memory_space<vmem>>, vector<1x16x256xbf16>
    %49 = vector.shape_cast %48 : vector<1x16x256xbf16> to vector<16x256xbf16>
    %50 = vector.shape_cast %47 : vector<16x256xbf16> to vector<1x16x256xbf16>
    tpu.vector_store %arg9[%c0_22, %c0_23, %c0_24], %50 {strides = array<i32>} : memref<1x16x256xbf16, #tpu.memory_space<vmem>>, vector<1x16x256xbf16>,
    return
  }
  func.func @transform_0(%arg0: i32, %arg1: i32, %arg2: i32, %arg3: i32) -> (i32, i32, i32) {
    %c0_i32 = arith.constant 0 : i32
    return %arg0, %arg1, %arg3 : i32, i32, i32
  }
  func.func @transform_1(%arg0: i32, %arg1: i32, %arg2: i32, %arg3: i32) -> (i32, i32, i32) {
    %c0_i32 = arith.constant 0 : i32
    %c0_i32_0 = arith.constant 0 : i32
    return %arg0, %c0_i32, %arg3 : i32, i32, i32
  }
  func.func @transform_2(%arg0: i32, %arg1: i32, %arg2: i32, %arg3: i32) -> (i32, i32, i32) {
    %c0_i32 = arith.constant 0 : i32
    %c0_i32_0 = arith.constant 0 : i32
    return %arg0, %c0_i32, %arg3 : i32, i32, i32
  }
  func.func @transform_3(%arg0: i32, %arg1: i32, %arg2: i32, %arg3: i32) -> (i32, i32) {
    %c0_i32 = arith.constant 0 : i32
    return %arg3, %arg2 : i32, i32
  }
  func.func @transform_4(%arg0: i32, %arg1: i32, %arg2: i32, %arg3: i32) -> (i32, i32) {
    %c0_i32 = arith.constant 0 : i32
    %c0_i32_0 = arith.constant 0 : i32
    return %c0_i32, %arg2 : i32, i32
  }
  func.func @transform_5(%arg0: i32, %arg1: i32, %arg2: i32, %arg3: i32) -> (i32, i32, i32) {
    %c0_i32 = arith.constant 0 : i32
    return %arg0, %arg1, %arg2 : i32, i32, i32
  }
}

module attributes {stable_mosaic.version = 11 : i64} {
  func.func @_attn_kernel(%arg0: i32, %arg1: i32, %arg2: i32, %arg3: memref<1x16x128xbf16, #tpu.memory_space<vmem>>, %arg4: memref<1x16x128xbf16, #tpu.memory_space<vmem>>, %arg5: memref<1x16x128xbf16, #tpu.memory_space<vmem>>, %arg6: memref<128x128xbf16, #tpu.memory_space<vmem>>, %arg7: memref<1x128xf32, #tpu.memory_space<vmem>>, %arg8: memref<1x16x128xf32, #tpu.memory_space<vmem>>, %arg9: memref<1x1x128xf32, #tpu.memory_space<vmem>>, %arg10: memref<1x16x128xf32, #tpu.memory_space<vmem>>, %arg11: memref<4x16x1xf32, #tpu.memory_space<vmem>>, %arg12: memref<4x16x1xf32, #tpu.memory_space<vmem>>, %arg13: memref<16x128xf32, #tpu.memory_space<vmem>>) attributes {dimension_semantics = [#tpu.dimension_semantics<parallel>, #tpu.dimension_semantics<parallel>, #tpu.dimension_semantics<arbitrary>], iteration_bounds = array<i64: 2, 1, 1>, scalar_prefetch = 0 : i64, scratch_operands = 3 : i64, tpu.core_type = #tpu.core_type<tc>, window_params = [{transform_indices = @transform_0, window_bounds = array<i64: 1, 16, 128>}, {transform_indices = @transform_1, window_bounds = array<i64: 1, 16, 128>}, {transform_indices = @transform_2, window_bounds = array<i64: 1, 16, 128>}, {pipeline_mode = #tpu.pipeline_mode<synchronous>, transform_indices = @transform_3, window_bounds = array<i64: 128, 128>}, {pipeline_mode = #tpu.pipeline_mode<synchronous>, transform_indices = @transform_4, window_bounds = array<i64: 1, 128>}, {transform_indices = @transform_5, window_bounds = array<i64: 1, 16, 128>}, {transform_indices = @transform_6, window_bounds = array<i64: 1, 1, 128>}, {transform_indices = @transform_7, window_bounds = array<i64: 1, 16, 128>}]} {
    %c0_i32 = arith.constant 0 : i32
    %0 = arith.cmpi eq, %arg2, %c0_i32 : i32
    %1 = arith.extui %0 : i1 to i32
    %c0_i32_0 = arith.constant 0 : i32
    %2 = arith.cmpi ne, %1, %c0_i32_0 : i32
    scf.if %2 {
      %cst_85 = arith.constant 0xFF800000 : f32
      %148 = vector.broadcast %cst_85 : f32 to vector<4x16x1xf32>
      %c0_86 = arith.constant 0 : index
      %c0_87 = arith.constant 0 : index
      %c0_88 = arith.constant 0 : index
      %149 = vector.load %arg11[%c0_86, %c0_87, %c0_88] : memref<4x16x1xf32, #tpu.memory_space<vmem>>, vector<4x16x1xf32>
      tpu.vector_store %arg11[%c0_86, %c0_87, %c0_88], %148 {strides = array<i32>} : memref<4x16x1xf32, #tpu.memory_space<vmem>>, vector<4x16x1xf32>,
      %cst_89 = arith.constant 0.000000e+00 : f32
      %150 = vector.broadcast %cst_89 : f32 to vector<4x16x1xf32>
      %c0_90 = arith.constant 0 : index
      %c0_91 = arith.constant 0 : index
      %c0_92 = arith.constant 0 : index
      %151 = vector.load %arg12[%c0_90, %c0_91, %c0_92] : memref<4x16x1xf32, #tpu.memory_space<vmem>>, vector<4x16x1xf32>
      tpu.vector_store %arg12[%c0_90, %c0_91, %c0_92], %150 {strides = array<i32>} : memref<4x16x1xf32, #tpu.memory_space<vmem>>, vector<4x16x1xf32>,
      %cst_93 = arith.constant 0.000000e+00 : f32
      %152 = vector.broadcast %cst_93 : f32 to vector<16x128xf32>
      %c0_94 = arith.constant 0 : index
      %c0_95 = arith.constant 0 : index
      %153 = vector.load %arg13[%c0_94, %c0_95] : memref<16x128xf32, #tpu.memory_space<vmem>>, vector<16x128xf32>
      tpu.vector_store %arg13[%c0_94, %c0_95], %152 {strides = array<i32>} : memref<16x128xf32, #tpu.memory_space<vmem>>, vector<16x128xf32>,
    } else {
    }
    %c0 = arith.constant 0 : index
    %c0_1 = arith.constant 0 : index
    %c0_2 = arith.constant 0 : index
    %3 = vector.load %arg3[%c0, %c0_1, %c0_2] : memref<1x16x128xbf16, #tpu.memory_space<vmem>>, vector<1x16x128xbf16>
    %4 = vector.shape_cast %3 : vector<1x16x128xbf16> to vector<16x128xbf16>
    %5 = arith.extf %4 : vector<16x128xbf16> to vector<16x128xf32>
    %cst = arith.constant 0.176776692 : f32
    %6 = vector.broadcast %cst : f32 to vector<16x128xf32>
    %7 = arith.mulf %5, %6 : vector<16x128xf32>
    %8 = arith.truncf %7 : vector<16x128xf32> to vector<16x128xbf16>
    %c0_3 = arith.constant 0 : index
    %c0_4 = arith.constant 0 : index
    %c0_5 = arith.constant 0 : index
    %9 = vector.load %arg4[%c0_3, %c0_4, %c0_5] : memref<1x16x128xbf16, #tpu.memory_space<vmem>>, vector<1x16x128xbf16>
    %10 = vector.shape_cast %9 : vector<1x16x128xbf16> to vector<16x128xbf16>
    %c0_6 = arith.constant 0 : index
    %c0_7 = arith.constant 0 : index
    %c0_8 = arith.constant 0 : index
    %11 = vector.load %arg5[%c0_6, %c0_7, %c0_8] : memref<1x16x128xbf16, #tpu.memory_space<vmem>>, vector<1x16x128xbf16>
    %12 = vector.shape_cast %11 : vector<1x16x128xbf16> to vector<16x128xbf16>
    %13 = vector.extract_strided_slice %8 {offsets = [0, 0], sizes = [16, 32], strides = [1, 1]} : vector<16x128xbf16> to vector<16x32xbf16>
    %14 = vector.extract_strided_slice %10 {offsets = [0, 0], sizes = [16, 32], strides = [1, 1]} : vector<16x128xbf16> to vector<16x32xbf16>
    %cst_9 = arith.constant dense<0.000000e+00> : vector<16x16xf32>
    %15 = tpu.matmul %13, %14, %cst_9 {dimension_numbers = #tpu.dot_dimension_numbers<[1], [1], [0], [0], [0, 0, 1, 0], [], []>} : vector<16x32xbf16>, vector<16x32xbf16>, vector<16x16xf32> -> vector<16x16xf32>
    %c0_10 = arith.constant 0 : index
    %c0_11 = arith.constant 0 : index
    %c0_12 = arith.constant 0 : index
    %16 = vector.load %arg11[%c0_10, %c0_11, %c0_12] : memref<4x16x1xf32, #tpu.memory_space<vmem>>, vector<1x16x1xf32>
    %17 = vector.shape_cast %16 : vector<1x16x1xf32> to vector<16x1xf32>
    %cst_13 = arith.constant dense<0xFF800000> : vector<16xf32>
    %18 = vector.multi_reduction <maximumf>, %15, %cst_13 [1] : vector<16x16xf32> to vector<16xf32>
    %19 = vector.shape_cast %18 : vector<16xf32> to vector<16x1xf32>
    %20 = arith.maximumf %17, %19 : vector<16x1xf32>
    %21 = arith.subf %17, %20 : vector<16x1xf32>
    %22 = math.exp %21 : vector<16x1xf32>
    %23 = vector.broadcast %20 : vector<16x1xf32> to vector<16x16xf32>
    %24 = arith.subf %15, %23 : vector<16x16xf32>
    %25 = math.exp %24 : vector<16x16xf32>
    %c0_14 = arith.constant 0 : index
    %c0_15 = arith.constant 0 : index
    %c0_16 = arith.constant 0 : index
    %26 = vector.load %arg12[%c0_14, %c0_15, %c0_16] : memref<4x16x1xf32, #tpu.memory_space<vmem>>, vector<1x16x1xf32>
    %27 = vector.shape_cast %26 : vector<1x16x1xf32> to vector<16x1xf32>
    %28 = arith.mulf %22, %27 : vector<16x1xf32>
    %cst_17 = arith.constant dense<0.000000e+00> : vector<16xf32>
    %29 = vector.multi_reduction <add>, %25, %cst_17 [1] : vector<16x16xf32> to vector<16xf32>
    %30 = vector.shape_cast %29 : vector<16xf32> to vector<16x1xf32>
    %31 = arith.addf %28, %30 : vector<16x1xf32>
    %c0_18 = arith.constant 0 : index
    %c0_19 = arith.constant 0 : index
    %c0_20 = arith.constant 0 : index
    %32 = vector.load %arg12[%c0_18, %c0_19, %c0_20] : memref<4x16x1xf32, #tpu.memory_space<vmem>>, vector<1x16x1xf32>
    %33 = vector.shape_cast %32 : vector<1x16x1xf32> to vector<16x1xf32>
    %34 = vector.shape_cast %31 : vector<16x1xf32> to vector<1x16x1xf32>
    tpu.vector_store %arg12[%c0_18, %c0_19, %c0_20], %34 {strides = array<i32>} : memref<4x16x1xf32, #tpu.memory_space<vmem>>, vector<1x16x1xf32>,
    %c0_21 = arith.constant 0 : index
    %c0_22 = arith.constant 0 : index
    %35 = vector.load %arg13[%c0_21, %c0_22] : memref<16x128xf32, #tpu.memory_space<vmem>>, vector<16x32xf32>
    %36 = vector.broadcast %22 : vector<16x1xf32> to vector<16x32xf32>
    %37 = arith.mulf %36, %35 : vector<16x32xf32>
    %38 = arith.truncf %25 : vector<16x16xf32> to vector<16x16xbf16>
    %39 = vector.extract_strided_slice %12 {offsets = [0, 0], sizes = [16, 32], strides = [1, 1]} : vector<16x128xbf16> to vector<16x32xbf16>
    %cst_23 = arith.constant dense<0.000000e+00> : vector<16x32xf32>
    %40 = tpu.matmul %38, %39, %cst_23 {dimension_numbers = #tpu.dot_dimension_numbers<[1], [0], [0], [1], [0, 0, 1, 1], [], []>} : vector<16x16xbf16>, vector<16x32xbf16>, vector<16x32xf32> -> vector<16x32xf32>
    %41 = arith.addf %37, %40 : vector<16x32xf32>
    %c0_24 = arith.constant 0 : index
    %c0_25 = arith.constant 0 : index
    %42 = vector.load %arg13[%c0_24, %c0_25] : memref<16x128xf32, #tpu.memory_space<vmem>>, vector<16x32xf32>
    tpu.vector_store %arg13[%c0_24, %c0_25], %41 {strides = array<i32>} : memref<16x128xf32, #tpu.memory_space<vmem>>, vector<16x32xf32>,
    %c0_26 = arith.constant 0 : index
    %c0_27 = arith.constant 0 : index
    %c0_28 = arith.constant 0 : index
    %43 = vector.load %arg11[%c0_26, %c0_27, %c0_28] : memref<4x16x1xf32, #tpu.memory_space<vmem>>, vector<1x16x1xf32>
    %44 = vector.shape_cast %43 : vector<1x16x1xf32> to vector<16x1xf32>
    %45 = vector.shape_cast %20 : vector<16x1xf32> to vector<1x16x1xf32>
    tpu.vector_store %arg11[%c0_26, %c0_27, %c0_28], %45 {strides = array<i32>} : memref<4x16x1xf32, #tpu.memory_space<vmem>>, vector<1x16x1xf32>,
    %46 = vector.extract_strided_slice %8 {offsets = [0, 32], sizes = [16, 32], strides = [1, 1]} : vector<16x128xbf16> to vector<16x32xbf16>
    %47 = vector.extract_strided_slice %10 {offsets = [0, 32], sizes = [16, 32], strides = [1, 1]} : vector<16x128xbf16> to vector<16x32xbf16>
    %cst_29 = arith.constant dense<0.000000e+00> : vector<16x16xf32>
    %48 = tpu.matmul %46, %47, %cst_29 {dimension_numbers = #tpu.dot_dimension_numbers<[1], [1], [0], [0], [0, 0, 1, 0], [], []>} : vector<16x32xbf16>, vector<16x32xbf16>, vector<16x16xf32> -> vector<16x16xf32>
    %c1 = arith.constant 1 : index
    %c0_30 = arith.constant 0 : index
    %c0_31 = arith.constant 0 : index
    %49 = vector.load %arg11[%c1, %c0_30, %c0_31] : memref<4x16x1xf32, #tpu.memory_space<vmem>>, vector<1x16x1xf32>
    %50 = vector.shape_cast %49 : vector<1x16x1xf32> to vector<16x1xf32>
    %cst_32 = arith.constant dense<0xFF800000> : vector<16xf32>
    %51 = vector.multi_reduction <maximumf>, %48, %cst_32 [1] : vector<16x16xf32> to vector<16xf32>
    %52 = vector.shape_cast %51 : vector<16xf32> to vector<16x1xf32>
    %53 = arith.maximumf %50, %52 : vector<16x1xf32>
    %54 = arith.subf %50, %53 : vector<16x1xf32>
    %55 = math.exp %54 : vector<16x1xf32>
    %56 = vector.broadcast %53 : vector<16x1xf32> to vector<16x16xf32>
    %57 = arith.subf %48, %56 : vector<16x16xf32>
    %58 = math.exp %57 : vector<16x16xf32>
    %c1_33 = arith.constant 1 : index
    %c0_34 = arith.constant 0 : index
    %c0_35 = arith.constant 0 : index
    %59 = vector.load %arg12[%c1_33, %c0_34, %c0_35] : memref<4x16x1xf32, #tpu.memory_space<vmem>>, vector<1x16x1xf32>
    %60 = vector.shape_cast %59 : vector<1x16x1xf32> to vector<16x1xf32>
    %61 = arith.mulf %55, %60 : vector<16x1xf32>
    %cst_36 = arith.constant dense<0.000000e+00> : vector<16xf32>
    %62 = vector.multi_reduction <add>, %58, %cst_36 [1] : vector<16x16xf32> to vector<16xf32>
    %63 = vector.shape_cast %62 : vector<16xf32> to vector<16x1xf32>
    %64 = arith.addf %61, %63 : vector<16x1xf32>
    %c1_37 = arith.constant 1 : index
    %c0_38 = arith.constant 0 : index
    %c0_39 = arith.constant 0 : index
    %65 = vector.load %arg12[%c1_37, %c0_38, %c0_39] : memref<4x16x1xf32, #tpu.memory_space<vmem>>, vector<1x16x1xf32>
    %66 = vector.shape_cast %65 : vector<1x16x1xf32> to vector<16x1xf32>
    %67 = vector.shape_cast %64 : vector<16x1xf32> to vector<1x16x1xf32>
    tpu.vector_store %arg12[%c1_37, %c0_38, %c0_39], %67 {strides = array<i32>} : memref<4x16x1xf32, #tpu.memory_space<vmem>>, vector<1x16x1xf32>,
    %c0_40 = arith.constant 0 : index
    %c32 = arith.constant 32 : index
    %68 = vector.load %arg13[%c0_40, %c32] : memref<16x128xf32, #tpu.memory_space<vmem>>, vector<16x32xf32>
    %69 = vector.broadcast %55 : vector<16x1xf32> to vector<16x32xf32>
    %70 = arith.mulf %69, %68 : vector<16x32xf32>
    %71 = arith.truncf %58 : vector<16x16xf32> to vector<16x16xbf16>
    %72 = vector.extract_strided_slice %12 {offsets = [0, 32], sizes = [16, 32], strides = [1, 1]} : vector<16x128xbf16> to vector<16x32xbf16>
    %cst_41 = arith.constant dense<0.000000e+00> : vector<16x32xf32>
    %73 = tpu.matmul %71, %72, %cst_41 {dimension_numbers = #tpu.dot_dimension_numbers<[1], [0], [0], [1], [0, 0, 1, 1], [], []>} : vector<16x16xbf16>, vector<16x32xbf16>, vector<16x32xf32> -> vector<16x32xf32>
    %74 = arith.addf %70, %73 : vector<16x32xf32>
    %c0_42 = arith.constant 0 : index
    %c32_43 = arith.constant 32 : index
    %75 = vector.load %arg13[%c0_42, %c32_43] : memref<16x128xf32, #tpu.memory_space<vmem>>, vector<16x32xf32>
    tpu.vector_store %arg13[%c0_42, %c32_43], %74 {strides = array<i32>} : memref<16x128xf32, #tpu.memory_space<vmem>>, vector<16x32xf32>,
    %c1_44 = arith.constant 1 : index
    %c0_45 = arith.constant 0 : index
    %c0_46 = arith.constant 0 : index
    %76 = vector.load %arg11[%c1_44, %c0_45, %c0_46] : memref<4x16x1xf32, #tpu.memory_space<vmem>>, vector<1x16x1xf32>
    %77 = vector.shape_cast %76 : vector<1x16x1xf32> to vector<16x1xf32>
    %78 = vector.shape_cast %53 : vector<16x1xf32> to vector<1x16x1xf32>
    tpu.vector_store %arg11[%c1_44, %c0_45, %c0_46], %78 {strides = array<i32>} : memref<4x16x1xf32, #tpu.memory_space<vmem>>, vector<1x16x1xf32>,
    %79 = vector.extract_strided_slice %8 {offsets = [0, 64], sizes = [16, 32], strides = [1, 1]} : vector<16x128xbf16> to vector<16x32xbf16>
    %80 = vector.extract_strided_slice %10 {offsets = [0, 64], sizes = [16, 32], strides = [1, 1]} : vector<16x128xbf16> to vector<16x32xbf16>
    %cst_47 = arith.constant dense<0.000000e+00> : vector<16x16xf32>
    %81 = tpu.matmul %79, %80, %cst_47 {dimension_numbers = #tpu.dot_dimension_numbers<[1], [1], [0], [0], [0, 0, 1, 0], [], []>} : vector<16x32xbf16>, vector<16x32xbf16>, vector<16x16xf32> -> vector<16x16xf32>
    %c2 = arith.constant 2 : index
    %c0_48 = arith.constant 0 : index
    %c0_49 = arith.constant 0 : index
    %82 = vector.load %arg11[%c2, %c0_48, %c0_49] : memref<4x16x1xf32, #tpu.memory_space<vmem>>, vector<1x16x1xf32>
    %83 = vector.shape_cast %82 : vector<1x16x1xf32> to vector<16x1xf32>
    %cst_50 = arith.constant dense<0xFF800000> : vector<16xf32>
    %84 = vector.multi_reduction <maximumf>, %81, %cst_50 [1] : vector<16x16xf32> to vector<16xf32>
    %85 = vector.shape_cast %84 : vector<16xf32> to vector<16x1xf32>
    %86 = arith.maximumf %83, %85 : vector<16x1xf32>
    %87 = arith.subf %83, %86 : vector<16x1xf32>
    %88 = math.exp %87 : vector<16x1xf32>
    %89 = vector.broadcast %86 : vector<16x1xf32> to vector<16x16xf32>
    %90 = arith.subf %81, %89 : vector<16x16xf32>
    %91 = math.exp %90 : vector<16x16xf32>
    %c2_51 = arith.constant 2 : index
    %c0_52 = arith.constant 0 : index
    %c0_53 = arith.constant 0 : index
    %92 = vector.load %arg12[%c2_51, %c0_52, %c0_53] : memref<4x16x1xf32, #tpu.memory_space<vmem>>, vector<1x16x1xf32>
    %93 = vector.shape_cast %92 : vector<1x16x1xf32> to vector<16x1xf32>
    %94 = arith.mulf %88, %93 : vector<16x1xf32>
    %cst_54 = arith.constant dense<0.000000e+00> : vector<16xf32>
    %95 = vector.multi_reduction <add>, %91, %cst_54 [1] : vector<16x16xf32> to vector<16xf32>
    %96 = vector.shape_cast %95 : vector<16xf32> to vector<16x1xf32>
    %97 = arith.addf %94, %96 : vector<16x1xf32>
    %c2_55 = arith.constant 2 : index
    %c0_56 = arith.constant 0 : index
    %c0_57 = arith.constant 0 : index
    %98 = vector.load %arg12[%c2_55, %c0_56, %c0_57] : memref<4x16x1xf32, #tpu.memory_space<vmem>>, vector<1x16x1xf32>
    %99 = vector.shape_cast %98 : vector<1x16x1xf32> to vector<16x1xf32>
    %100 = vector.shape_cast %97 : vector<16x1xf32> to vector<1x16x1xf32>
    tpu.vector_store %arg12[%c2_55, %c0_56, %c0_57], %100 {strides = array<i32>} : memref<4x16x1xf32, #tpu.memory_space<vmem>>, vector<1x16x1xf32>,
    %c0_58 = arith.constant 0 : index
    %c64 = arith.constant 64 : index
    %101 = vector.load %arg13[%c0_58, %c64] : memref<16x128xf32, #tpu.memory_space<vmem>>, vector<16x32xf32>
    %102 = vector.broadcast %88 : vector<16x1xf32> to vector<16x32xf32>
    %103 = arith.mulf %102, %101 : vector<16x32xf32>
    %104 = arith.truncf %91 : vector<16x16xf32> to vector<16x16xbf16>
    %105 = vector.extract_strided_slice %12 {offsets = [0, 64], sizes = [16, 32], strides = [1, 1]} : vector<16x128xbf16> to vector<16x32xbf16>
    %cst_59 = arith.constant dense<0.000000e+00> : vector<16x32xf32>
    %106 = tpu.matmul %104, %105, %cst_59 {dimension_numbers = #tpu.dot_dimension_numbers<[1], [0], [0], [1], [0, 0, 1, 1], [], []>} : vector<16x16xbf16>, vector<16x32xbf16>, vector<16x32xf32> -> vector<16x32xf32>
    %107 = arith.addf %103, %106 : vector<16x32xf32>
    %c0_60 = arith.constant 0 : index
    %c64_61 = arith.constant 64 : index
    %108 = vector.load %arg13[%c0_60, %c64_61] : memref<16x128xf32, #tpu.memory_space<vmem>>, vector<16x32xf32>
    tpu.vector_store %arg13[%c0_60, %c64_61], %107 {strides = array<i32>} : memref<16x128xf32, #tpu.memory_space<vmem>>, vector<16x32xf32>,
    %c2_62 = arith.constant 2 : index
    %c0_63 = arith.constant 0 : index
    %c0_64 = arith.constant 0 : index
    %109 = vector.load %arg11[%c2_62, %c0_63, %c0_64] : memref<4x16x1xf32, #tpu.memory_space<vmem>>, vector<1x16x1xf32>
    %110 = vector.shape_cast %109 : vector<1x16x1xf32> to vector<16x1xf32>
    %111 = vector.shape_cast %86 : vector<16x1xf32> to vector<1x16x1xf32>
    tpu.vector_store %arg11[%c2_62, %c0_63, %c0_64], %111 {strides = array<i32>} : memref<4x16x1xf32, #tpu.memory_space<vmem>>, vector<1x16x1xf32>,
    %112 = vector.extract_strided_slice %8 {offsets = [0, 96], sizes = [16, 32], strides = [1, 1]} : vector<16x128xbf16> to vector<16x32xbf16>
    %113 = vector.extract_strided_slice %10 {offsets = [0, 96], sizes = [16, 32], strides = [1, 1]} : vector<16x128xbf16> to vector<16x32xbf16>
    %cst_65 = arith.constant dense<0.000000e+00> : vector<16x16xf32>
    %114 = tpu.matmul %112, %113, %cst_65 {dimension_numbers = #tpu.dot_dimension_numbers<[1], [1], [0], [0], [0, 0, 1, 0], [], []>} : vector<16x32xbf16>, vector<16x32xbf16>, vector<16x16xf32> -> vector<16x16xf32>
    %c3 = arith.constant 3 : index
    %c0_66 = arith.constant 0 : index
    %c0_67 = arith.constant 0 : index
    %115 = vector.load %arg11[%c3, %c0_66, %c0_67] : memref<4x16x1xf32, #tpu.memory_space<vmem>>, vector<1x16x1xf32>
    %116 = vector.shape_cast %115 : vector<1x16x1xf32> to vector<16x1xf32>
    %cst_68 = arith.constant dense<0xFF800000> : vector<16xf32>
    %117 = vector.multi_reduction <maximumf>, %114, %cst_68 [1] : vector<16x16xf32> to vector<16xf32>
    %118 = vector.shape_cast %117 : vector<16xf32> to vector<16x1xf32>
    %119 = arith.maximumf %116, %118 : vector<16x1xf32>
    %120 = arith.subf %116, %119 : vector<16x1xf32>
    %121 = math.exp %120 : vector<16x1xf32>
    %122 = vector.broadcast %119 : vector<16x1xf32> to vector<16x16xf32>
    %123 = arith.subf %114, %122 : vector<16x16xf32>
    %124 = math.exp %123 : vector<16x16xf32>
    %c3_69 = arith.constant 3 : index
    %c0_70 = arith.constant 0 : index
    %c0_71 = arith.constant 0 : index
    %125 = vector.load %arg12[%c3_69, %c0_70, %c0_71] : memref<4x16x1xf32, #tpu.memory_space<vmem>>, vector<1x16x1xf32>
    %126 = vector.shape_cast %125 : vector<1x16x1xf32> to vector<16x1xf32>
    %127 = arith.mulf %121, %126 : vector<16x1xf32>
    %cst_72 = arith.constant dense<0.000000e+00> : vector<16xf32>
    %128 = vector.multi_reduction <add>, %124, %cst_72 [1] : vector<16x16xf32> to vector<16xf32>
    %129 = vector.shape_cast %128 : vector<16xf32> to vector<16x1xf32>
    %130 = arith.addf %127, %129 : vector<16x1xf32>
    %c3_73 = arith.constant 3 : index
    %c0_74 = arith.constant 0 : index
    %c0_75 = arith.constant 0 : index
    %131 = vector.load %arg12[%c3_73, %c0_74, %c0_75] : memref<4x16x1xf32, #tpu.memory_space<vmem>>, vector<1x16x1xf32>
    %132 = vector.shape_cast %131 : vector<1x16x1xf32> to vector<16x1xf32>
    %133 = vector.shape_cast %130 : vector<16x1xf32> to vector<1x16x1xf32>
    tpu.vector_store %arg12[%c3_73, %c0_74, %c0_75], %133 {strides = array<i32>} : memref<4x16x1xf32, #tpu.memory_space<vmem>>, vector<1x16x1xf32>,
    %c0_76 = arith.constant 0 : index
    %c96 = arith.constant 96 : index
    %134 = vector.load %arg13[%c0_76, %c96] : memref<16x128xf32, #tpu.memory_space<vmem>>, vector<16x32xf32>
    %135 = vector.broadcast %121 : vector<16x1xf32> to vector<16x32xf32>
    %136 = arith.mulf %135, %134 : vector<16x32xf32>
    %137 = arith.truncf %124 : vector<16x16xf32> to vector<16x16xbf16>
    %138 = vector.extract_strided_slice %12 {offsets = [0, 96], sizes = [16, 32], strides = [1, 1]} : vector<16x128xbf16> to vector<16x32xbf16>
    %cst_77 = arith.constant dense<0.000000e+00> : vector<16x32xf32>
    %139 = tpu.matmul %137, %138, %cst_77 {dimension_numbers = #tpu.dot_dimension_numbers<[1], [0], [0], [1], [0, 0, 1, 1], [], []>} : vector<16x16xbf16>, vector<16x32xbf16>, vector<16x32xf32> -> vector<16x32xf32>
    %140 = arith.addf %136, %139 : vector<16x32xf32>
    %c0_78 = arith.constant 0 : index
    %c96_79 = arith.constant 96 : index
    %141 = vector.load %arg13[%c0_78, %c96_79] : memref<16x128xf32, #tpu.memory_space<vmem>>, vector<16x32xf32>
    tpu.vector_store %arg13[%c0_78, %c96_79], %140 {strides = array<i32>} : memref<16x128xf32, #tpu.memory_space<vmem>>, vector<16x32xf32>,
    %c3_80 = arith.constant 3 : index
    %c0_81 = arith.constant 0 : index
    %c0_82 = arith.constant 0 : index
    %142 = vector.load %arg11[%c3_80, %c0_81, %c0_82] : memref<4x16x1xf32, #tpu.memory_space<vmem>>, vector<1x16x1xf32>
    %143 = vector.shape_cast %142 : vector<1x16x1xf32> to vector<16x1xf32>
    %144 = vector.shape_cast %119 : vector<16x1xf32> to vector<1x16x1xf32>
    tpu.vector_store %arg11[%c3_80, %c0_81, %c0_82], %144 {strides = array<i32>} : memref<4x16x1xf32, #tpu.memory_space<vmem>>, vector<1x16x1xf32>,
    %c0_i32_83 = arith.constant 0 : i32
    %145 = arith.cmpi eq, %arg2, %c0_i32_83 : i32
    %146 = arith.extui %145 : i1 to i32
    %c0_i32_84 = arith.constant 0 : i32
    %147 = arith.cmpi ne, %146, %c0_i32_84 : i32
    scf.if %147 {
      %c0_85 = arith.constant 0 : index
      %c0_86 = arith.constant 0 : index
      %148 = vector.load %arg13[%c0_85, %c0_86] : memref<16x128xf32, #tpu.memory_space<vmem>>, vector<16x32xf32>
      %c0_87 = arith.constant 0 : index
      %c0_88 = arith.constant 0 : index
      %c0_89 = arith.constant 0 : index
      %149 = vector.load %arg12[%c0_87, %c0_88, %c0_89] : memref<4x16x1xf32, #tpu.memory_space<vmem>>, vector<1x16x1xf32>
      %150 = vector.shape_cast %149 : vector<1x16x1xf32> to vector<16x1xf32>
      %151 = tpu.reciprocal %150 {approx = true} : vector<16x1xf32> -> vector<16x1xf32>
      %152 = vector.broadcast %151 : vector<16x1xf32> to vector<16x32xf32>
      %153 = arith.mulf %148, %152 : vector<16x32xf32>
      %c0_90 = arith.constant 0 : index
      %c0_91 = arith.constant 0 : index
      %154 = vector.load %arg13[%c0_90, %c0_91] : memref<16x128xf32, #tpu.memory_space<vmem>>, vector<16x32xf32>
      tpu.vector_store %arg13[%c0_90, %c0_91], %153 {strides = array<i32>} : memref<16x128xf32, #tpu.memory_space<vmem>>, vector<16x32xf32>,
      %c0_92 = arith.constant 0 : index
      %c32_93 = arith.constant 32 : index
      %155 = vector.load %arg13[%c0_92, %c32_93] : memref<16x128xf32, #tpu.memory_space<vmem>>, vector<16x32xf32>
      %c1_94 = arith.constant 1 : index
      %c0_95 = arith.constant 0 : index
      %c0_96 = arith.constant 0 : index
      %156 = vector.load %arg12[%c1_94, %c0_95, %c0_96] : memref<4x16x1xf32, #tpu.memory_space<vmem>>, vector<1x16x1xf32>
      %157 = vector.shape_cast %156 : vector<1x16x1xf32> to vector<16x1xf32>
      %158 = tpu.reciprocal %157 {approx = true} : vector<16x1xf32> -> vector<16x1xf32>
      %159 = vector.broadcast %158 : vector<16x1xf32> to vector<16x32xf32>
      %160 = arith.mulf %155, %159 : vector<16x32xf32>
      %c0_97 = arith.constant 0 : index
      %c32_98 = arith.constant 32 : index
      %161 = vector.load %arg13[%c0_97, %c32_98] : memref<16x128xf32, #tpu.memory_space<vmem>>, vector<16x32xf32>
      tpu.vector_store %arg13[%c0_97, %c32_98], %160 {strides = array<i32>} : memref<16x128xf32, #tpu.memory_space<vmem>>, vector<16x32xf32>,
      %c0_99 = arith.constant 0 : index
      %c64_100 = arith.constant 64 : index
      %162 = vector.load %arg13[%c0_99, %c64_100] : memref<16x128xf32, #tpu.memory_space<vmem>>, vector<16x32xf32>
      %c2_101 = arith.constant 2 : index
      %c0_102 = arith.constant 0 : index
      %c0_103 = arith.constant 0 : index
      %163 = vector.load %arg12[%c2_101, %c0_102, %c0_103] : memref<4x16x1xf32, #tpu.memory_space<vmem>>, vector<1x16x1xf32>
      %164 = vector.shape_cast %163 : vector<1x16x1xf32> to vector<16x1xf32>
      %165 = tpu.reciprocal %164 {approx = true} : vector<16x1xf32> -> vector<16x1xf32>
      %166 = vector.broadcast %165 : vector<16x1xf32> to vector<16x32xf32>
      %167 = arith.mulf %162, %166 : vector<16x32xf32>
      %c0_104 = arith.constant 0 : index
      %c64_105 = arith.constant 64 : index
      %168 = vector.load %arg13[%c0_104, %c64_105] : memref<16x128xf32, #tpu.memory_space<vmem>>, vector<16x32xf32>
      tpu.vector_store %arg13[%c0_104, %c64_105], %167 {strides = array<i32>} : memref<16x128xf32, #tpu.memory_space<vmem>>, vector<16x32xf32>,
      %c0_106 = arith.constant 0 : index
      %c96_107 = arith.constant 96 : index
      %169 = vector.load %arg13[%c0_106, %c96_107] : memref<16x128xf32, #tpu.memory_space<vmem>>, vector<16x32xf32>
      %c3_108 = arith.constant 3 : index
      %c0_109 = arith.constant 0 : index
      %c0_110 = arith.constant 0 : index
      %170 = vector.load %arg12[%c3_108, %c0_109, %c0_110] : memref<4x16x1xf32, #tpu.memory_space<vmem>>, vector<1x16x1xf32>
      %171 = vector.shape_cast %170 : vector<1x16x1xf32> to vector<16x1xf32>
      %172 = tpu.reciprocal %171 {approx = true} : vector<16x1xf32> -> vector<16x1xf32>
      %173 = vector.broadcast %172 : vector<16x1xf32> to vector<16x32xf32>
      %174 = arith.mulf %169, %173 : vector<16x32xf32>
      %c0_111 = arith.constant 0 : index
      %c96_112 = arith.constant 96 : index
      %175 = vector.load %arg13[%c0_111, %c96_112] : memref<16x128xf32, #tpu.memory_space<vmem>>, vector<16x32xf32>
      tpu.vector_store %arg13[%c0_111, %c96_112], %174 {strides = array<i32>} : memref<16x128xf32, #tpu.memory_space<vmem>>, vector<16x32xf32>,
      %c0_113 = arith.constant 0 : index
      %c0_114 = arith.constant 0 : index
      %176 = vector.load %arg13[%c0_113, %c0_114] : memref<16x128xf32, #tpu.memory_space<vmem>>, vector<16x128xf32>
      %177 = arith.truncf %176 : vector<16x128xf32> to vector<16x128xbf16>
      %c0_115 = arith.constant 0 : index
      %c0_116 = arith.constant 0 : index
      %178 = vector.load %arg6[%c0_115, %c0_116] : memref<128x128xbf16, #tpu.memory_space<vmem>>, vector<128x128xbf16>
      %cst_117 = arith.constant dense<0.000000e+00> : vector<16x128xf32>
      %179 = tpu.matmul %177, %178, %cst_117 {dimension_numbers = #tpu.dot_dimension_numbers<[1], [0], [0], [1], [0, 0, 1, 1], [], []>} : vector<16x128xbf16>, vector<128x128xbf16>, vector<16x128xf32> -> vector<16x128xf32>
      %c0_118 = arith.constant 0 : index
      %c0_119 = arith.constant 0 : index
      %180 = vector.load %arg7[%c0_118, %c0_119] : memref<1x128xf32, #tpu.memory_space<vmem>>, vector<1x128xf32>
      %181 = vector.broadcast %180 : vector<1x128xf32> to vector<16x128xf32>
      %182 = arith.addf %179, %181 : vector<16x128xf32>
      %c0_120 = arith.constant 0 : index
      %c0_121 = arith.constant 0 : index
      %c0_122 = arith.constant 0 : index
      %183 = vector.load %arg8[%c0_120, %c0_121, %c0_122] : memref<1x16x128xf32, #tpu.memory_space<vmem>>, vector<1x16x128xf32>
      %184 = vector.shape_cast %183 : vector<1x16x128xf32> to vector<16x128xf32>
      %c0_123 = arith.constant 0 : index
      %c0_124 = arith.constant 0 : index
      %c0_125 = arith.constant 0 : index
      %185 = vector.load %arg9[%c0_123, %c0_124, %c0_125] : memref<1x1x128xf32, #tpu.memory_space<vmem>>, vector<1x1x128xf32>
      %186 = vector.shape_cast %185 : vector<1x1x128xf32> to vector<1x128xf32>
      %187 = vector.broadcast %186 : vector<1x128xf32> to vector<16x128xf32>
      %188 = arith.mulf %182, %187 : vector<16x128xf32>
      %189 = arith.addf %184, %188 : vector<16x128xf32>
      %c0_126 = arith.constant 0 : index
      %c0_127 = arith.constant 0 : index
      %c0_128 = arith.constant 0 : index
      %190 = vector.load %arg10[%c0_126, %c0_127, %c0_128] : memref<1x16x128xf32, #tpu.memory_space<vmem>>, vector<1x16x128xf32>
      %191 = vector.shape_cast %190 : vector<1x16x128xf32> to vector<16x128xf32>
      %192 = vector.shape_cast %189 : vector<16x128xf32> to vector<1x16x128xf32>
      tpu.vector_store %arg10[%c0_126, %c0_127, %c0_128], %192 {strides = array<i32>} : memref<1x16x128xf32, #tpu.memory_space<vmem>>, vector<1x16x128xf32>,
    } else {
    }
    return
  }
  func.func @transform_0(%arg0: i32, %arg1: i32, %arg2: i32) -> (i32, i32, i32) {
    %c0_i32 = arith.constant 0 : i32
    %c0_i32_0 = arith.constant 0 : i32
    return %arg0, %arg1, %c0_i32 : i32, i32, i32
  }
  func.func @transform_1(%arg0: i32, %arg1: i32, %arg2: i32) -> (i32, i32, i32) {
    %c1_i32 = arith.constant 1 : i32
    %c0_i32 = arith.constant 0 : i32
    return %arg0, %arg2, %c1_i32 : i32, i32, i32
  }
  func.func @transform_2(%arg0: i32, %arg1: i32, %arg2: i32) -> (i32, i32, i32) {
    %c2_i32 = arith.constant 2 : i32
    %c0_i32 = arith.constant 0 : i32
    return %arg0, %arg2, %c2_i32 : i32, i32, i32
  }
  func.func @transform_3(%arg0: i32, %arg1: i32, %arg2: i32) -> (i32, i32) {
    %c0_i32 = arith.constant 0 : i32
    %c0_i32_0 = arith.constant 0 : i32
    %c0_i32_1 = arith.constant 0 : i32
    return %c0_i32, %c0_i32_0 : i32, i32
  }
  func.func @transform_4(%arg0: i32, %arg1: i32, %arg2: i32) -> (i32, i32) {
    %c0_i32 = arith.constant 0 : i32
    %c0_i32_0 = arith.constant 0 : i32
    %c0_i32_1 = arith.constant 0 : i32
    return %c0_i32, %c0_i32_0 : i32, i32
  }
  func.func @transform_5(%arg0: i32, %arg1: i32, %arg2: i32) -> (i32, i32, i32) {
    %c0_i32 = arith.constant 0 : i32
    %c0_i32_0 = arith.constant 0 : i32
    return %arg0, %arg1, %c0_i32 : i32, i32, i32
  }
  func.func @transform_6(%arg0: i32, %arg1: i32, %arg2: i32) -> (i32, i32, i32) {
    %c0_i32 = arith.constant 0 : i32
    %c0_i32_0 = arith.constant 0 : i32
    %c0_i32_1 = arith.constant 0 : i32
    return %arg0, %c0_i32, %c0_i32_0 : i32, i32, i32
  }
  func.func @transform_7(%arg0: i32, %arg1: i32, %arg2: i32) -> (i32, i32, i32) {
    %c0_i32 = arith.constant 0 : i32
    %c0_i32_0 = arith.constant 0 : i32
    return %arg0, %arg1, %c0_i32 : i32, i32, i32
  }
}

module attributes {stable_mosaic.version = 11 : i64} {
  func.func @_fused_linear_kernel(%arg0: i32, %arg1: i32, %arg2: i32, %arg3: i32, %arg4: memref<1x16x256xbf16, #tpu.memory_space<vmem>>, %arg5: memref<256x128xbf16, #tpu.memory_space<vmem>>, %arg6: memref<1x128xf32, #tpu.memory_space<vmem>>, %arg7: memref<1x16x128xf32, #tpu.memory_space<vmem>>, %arg8: memref<1x1x128xf32, #tpu.memory_space<vmem>>, %arg9: memref<1x16x128xf32, #tpu.memory_space<vmem>>) attributes {dimension_semantics = [#tpu.dimension_semantics<parallel>, #tpu.dimension_semantics<parallel>, #tpu.dimension_semantics<parallel>, #tpu.dimension_semantics<arbitrary>], iteration_bounds = array<i64: 2, 1, 1, 1>, scalar_prefetch = 0 : i64, scratch_operands = 0 : i64, tpu.core_type = #tpu.core_type<tc>, window_params = [{transform_indices = @transform_0, window_bounds = array<i64: 1, 16, 256>}, {transform_indices = @transform_1, window_bounds = array<i64: 256, 128>}, {transform_indices = @transform_2, window_bounds = array<i64: 1, 128>}, {transform_indices = @transform_3, window_bounds = array<i64: 1, 16, 128>}, {transform_indices = @transform_4, window_bounds = array<i64: 1, 1, 128>}, {transform_indices = @transform_5, window_bounds = array<i64: 1, 16, 128>}]} {
    %c0 = arith.constant 0 : index
    %c0_0 = arith.constant 0 : index
    %c0_1 = arith.constant 0 : index
    %0 = vector.load %arg4[%c0, %c0_0, %c0_1] : memref<1x16x256xbf16, #tpu.memory_space<vmem>>, vector<1x16x256xbf16>
    %1 = vector.shape_cast %0 : vector<1x16x256xbf16> to vector<16x256xbf16>
    %c0_2 = arith.constant 0 : index
    %c0_3 = arith.constant 0 : index
    %2 = vector.load %arg5[%c0_2, %c0_3] : memref<256x128xbf16, #tpu.memory_space<vmem>>, vector<256x128xbf16>
    %cst = arith.constant dense<0.000000e+00> : vector<16x128xf32>
    %3 = tpu.matmul %1, %2, %cst {dimension_numbers = #tpu.dot_dimension_numbers<[1], [0], [0], [1], [0, 0, 1, 1], [], []>} : vector<16x256xbf16>, vector<256x128xbf16>, vector<16x128xf32> -> vector<16x128xf32>
    %c0_4 = arith.constant 0 : index
    %c0_5 = arith.constant 0 : index
    %4 = vector.load %arg6[%c0_4, %c0_5] : memref<1x128xf32, #tpu.memory_space<vmem>>, vector<1x128xf32>
    %5 = vector.broadcast %4 : vector<1x128xf32> to vector<16x128xf32>
    %6 = arith.addf %3, %5 : vector<16x128xf32>
    %c0_6 = arith.constant 0 : index
    %c0_7 = arith.constant 0 : index
    %c0_8 = arith.constant 0 : index
    %7 = vector.load %arg7[%c0_6, %c0_7, %c0_8] : memref<1x16x128xf32, #tpu.memory_space<vmem>>, vector<1x16x128xf32>
    %8 = vector.shape_cast %7 : vector<1x16x128xf32> to vector<16x128xf32>
    %c0_9 = arith.constant 0 : index
    %c0_10 = arith.constant 0 : index
    %c0_11 = arith.constant 0 : index
    %9 = vector.load %arg8[%c0_9, %c0_10, %c0_11] : memref<1x1x128xf32, #tpu.memory_space<vmem>>, vector<1x1x128xf32>
    %10 = vector.shape_cast %9 : vector<1x1x128xf32> to vector<1x128xf32>
    %11 = vector.broadcast %10 : vector<1x128xf32> to vector<16x128xf32>
    %12 = arith.mulf %6, %11 : vector<16x128xf32>
    %13 = arith.addf %8, %12 : vector<16x128xf32>
    %c0_12 = arith.constant 0 : index
    %c0_13 = arith.constant 0 : index
    %c0_14 = arith.constant 0 : index
    %14 = vector.load %arg9[%c0_12, %c0_13, %c0_14] : memref<1x16x128xf32, #tpu.memory_space<vmem>>, vector<1x16x128xf32>
    %15 = vector.shape_cast %14 : vector<1x16x128xf32> to vector<16x128xf32>
    %16 = vector.shape_cast %13 : vector<16x128xf32> to vector<1x16x128xf32>
    tpu.vector_store %arg9[%c0_12, %c0_13, %c0_14], %16 {strides = array<i32>} : memref<1x16x128xf32, #tpu.memory_space<vmem>>, vector<1x16x128xf32>,
    return
  }
  func.func @transform_0(%arg0: i32, %arg1: i32, %arg2: i32, %arg3: i32) -> (i32, i32, i32) {
    %c0_i32 = arith.constant 0 : i32
    return %arg0, %arg1, %arg3 : i32, i32, i32
  }
  func.func @transform_1(%arg0: i32, %arg1: i32, %arg2: i32, %arg3: i32) -> (i32, i32) {
    %c0_i32 = arith.constant 0 : i32
    return %arg3, %arg2 : i32, i32
  }
  func.func @transform_2(%arg0: i32, %arg1: i32, %arg2: i32, %arg3: i32) -> (i32, i32) {
    %c0_i32 = arith.constant 0 : i32
    %c0_i32_0 = arith.constant 0 : i32
    return %c0_i32, %arg2 : i32, i32
  }
  func.func @transform_3(%arg0: i32, %arg1: i32, %arg2: i32, %arg3: i32) -> (i32, i32, i32) {
    %c0_i32 = arith.constant 0 : i32
    return %arg0, %arg1, %arg2 : i32, i32, i32
  }
  func.func @transform_4(%arg0: i32, %arg1: i32, %arg2: i32, %arg3: i32) -> (i32, i32, i32) {
    %c0_i32 = arith.constant 0 : i32
    %c0_i32_0 = arith.constant 0 : i32
    return %arg0, %c0_i32, %arg2 : i32, i32, i32
  }
  func.func @transform_5(%arg0: i32, %arg1: i32, %arg2: i32, %arg3: i32) -> (i32, i32, i32) {
    %c0_i32 = arith.constant 0 : i32
    return %arg0, %arg1, %arg2 : i32, i32, i32
  }
}

module attributes {stable_mosaic.version = 11 : i64} {
  func.func @_fused_linear_kernel(%arg0: i32, %arg1: i32, %arg2: i32, %arg3: i32, %arg4: memref<1x16x128xf32, #tpu.memory_space<vmem>>, %arg5: memref<128x32xbf16, #tpu.memory_space<vmem>>, %arg6: memref<1x16x32xf32, #tpu.memory_space<vmem>>) attributes {dimension_semantics = [#tpu.dimension_semantics<parallel>, #tpu.dimension_semantics<parallel>, #tpu.dimension_semantics<parallel>, #tpu.dimension_semantics<arbitrary>], iteration_bounds = array<i64: 2, 1, 1, 1>, scalar_prefetch = 0 : i64, scratch_operands = 0 : i64, tpu.core_type = #tpu.core_type<tc>, window_params = [{transform_indices = @transform_0, window_bounds = array<i64: 1, 16, 128>}, {transform_indices = @transform_1, window_bounds = array<i64: 128, 32>}, {transform_indices = @transform_2, window_bounds = array<i64: 1, 16, 32>}]} {
    %c0 = arith.constant 0 : index
    %c0_0 = arith.constant 0 : index
    %c0_1 = arith.constant 0 : index
    %0 = vector.load %arg4[%c0, %c0_0, %c0_1] : memref<1x16x128xf32, #tpu.memory_space<vmem>>, vector<1x16x128xf32>
    %1 = vector.shape_cast %0 : vector<1x16x128xf32> to vector<16x128xf32>
    %2 = arith.truncf %1 : vector<16x128xf32> to vector<16x128xbf16>
    %c0_2 = arith.constant 0 : index
    %c0_3 = arith.constant 0 : index
    %3 = vector.load %arg5[%c0_2, %c0_3] : memref<128x32xbf16, #tpu.memory_space<vmem>>, vector<128x32xbf16>
    %cst = arith.constant dense<0.000000e+00> : vector<16x32xf32>
    %4 = tpu.matmul %2, %3, %cst {dimension_numbers = #tpu.dot_dimension_numbers<[1], [0], [0], [1], [0, 0, 1, 1], [], []>} : vector<16x128xbf16>, vector<128x32xbf16>, vector<16x32xf32> -> vector<16x32xf32>
    %c0_4 = arith.constant 0 : index
    %c0_5 = arith.constant 0 : index
    %c0_6 = arith.constant 0 : index
    %5 = vector.load %arg6[%c0_4, %c0_5, %c0_6] : memref<1x16x32xf32, #tpu.memory_space<vmem>>, vector<1x16x32xf32>
    %6 = vector.shape_cast %5 : vector<1x16x32xf32> to vector<16x32xf32>
    %7 = vector.shape_cast %4 : vector<16x32xf32> to vector<1x16x32xf32>
    tpu.vector_store %arg6[%c0_4, %c0_5, %c0_6], %7 {strides = array<i32>} : memref<1x16x32xf32, #tpu.memory_space<vmem>>, vector<1x16x32xf32>,
    return
  }
  func.func @transform_0(%arg0: i32, %arg1: i32, %arg2: i32, %arg3: i32) -> (i32, i32, i32) {
    %c0_i32 = arith.constant 0 : i32
    return %arg0, %arg1, %arg3 : i32, i32, i32
  }
  func.func @transform_1(%arg0: i32, %arg1: i32, %arg2: i32, %arg3: i32) -> (i32, i32) {
    %c0_i32 = arith.constant 0 : i32
    return %arg3, %arg2 : i32, i32
  }
  func.func @transform_2(%arg0: i32, %arg1: i32, %arg2: i32, %arg3: i32) -> (i32, i32, i32) {
    %c0_i32 = arith.constant 0 : i32
    return %arg0, %arg1, %arg2 : i32, i32, i32
  }
}

</mosaic_0001>

<llo_original>
// kernel: _lambda_.10
$region0: #{_lambda_.10}
  #allocation0 [shape = 'u32[]', space=smem, size = 0x4, offset = 0x4, fixed_abs, tag = 'smem constant byte address 0x4 - core index']
  #allocation1 [shape = 'u32[72,128]{1,0:T(1,128)}', space=vmem, size = 0x9000, scoped, tag = 'internal scratch']
  %s0 = inlined_call_operand.vmem [shape: f32[2,16,32], index: 0, kind: input, shape index: {}]
  %s1 = inlined_call_operand.vmem [shape: bf16[32,128], index: 1, kind: input, shape index: {}]
  %s2 = inlined_call_operand.vmem [shape: f32[1,128], index: 2, kind: input, shape index: {}]
  %s3 = inlined_call_operand.vmem [shape: f32[2,16,128], index: 3, kind: output, shape index: {}]
  %s4 = sld [smem:[#allocation0]]
  $region45: #{_lambda_.10} parent=0
    _
  %s6 = ssub.s32 1, %s4
  %s7 = scalar_select 0, %s6, %s4
  loop: start=0, step=1, limit=4
  $region2: #{_lambda_.10} parent=0 // loop_pre_header
    _
  $region3: #{_lambda_.10} parent=0 // loop_header
    %s9 = sphi 0, %s13
    %p10 = scmp.ge.s32.totalorder %s9, 4
    %s16 = sphi 0, %s42
    %s17 = sphi 0, %s38
    %s18 = sphi 0, %s34
    %s19 = sphi 0, %s30
    %s20 = sphi 0, %s16
    %s21 = sphi 0, %s17
    %s22 = sphi 0, %s18
    %s23 = sphi 0, %s19
    %s24 = sphi 0, %s20
    %s25 = sphi 0, %s21
    %s26 = sphi 0, %s22
    %s27 = sphi 0, %s23
    %s49 = sphi 0, %s51
    %s52 = sphi 0, %s49
    %s53 = sphi 0, %s52
    %s69 = sphi 0, %s53
    %s77 = sphi 0, %s79
    %s80 = sphi 0, %s77
    %s81 = sphi 0, %s80
    %s97 = sphi 0, %s81
    %s103 = sphi 0, %s105
    %s106 = sphi 0, %s103
    %s107 = sphi 0, %s106
    %s123 = sphi 0, %s107
    %s133 = sphi 0, %s135
    %s136 = sphi 0, %s133
    %s137 = sphi 0, %s136
    %s153 = sphi 0, %s137
  $region4: #{_lambda_.10} parent=0 // loop_header_branch
    %12 = sbr.rel (%p10) target = $region8
  $region5: #{_lambda_.10} parent=0 // loop_body
    %s14 = ssub.s32 %s9, 1
    %s15 = ssub.s32 %s9, 2
    %s28 = sadd.s32 1, %s19
    %p29 = scmp.ge.s32.totalorder %s28, 1
    %s30 = scalar_select %p29, 0, %s28
    %s31 = sadd.s32 1, %s18
    %s32 = scalar_select %p29, %s31, %s18
    %p33 = scmp.ge.s32.totalorder %s32, 1
    %s34 = scalar_select %p33, 0, %s32
    %s35 = sadd.s32 1, %s17
    %s36 = scalar_select %p33, %s35, %s17
    %p37 = scmp.ge.s32.totalorder %s36, 1
    %s38 = scalar_select %p37, 0, %s36
    %s39 = sadd.s32 1, %s16
    %s40 = scalar_select %p37, %s39, %s16
    %p41 = scmp.ge.s32.totalorder %s40, 2
    %s42 = scalar_select %p41, 0, %s40
    %s43 = ssub.s32 %s16, %s42
    %s44 = ssub.s32 %s17, %s38
    %s45 = sor.u32 %s43, %s44
    %s46 = ssub.s32 %s19, %s30
    %s47 = sor.u32 %s45, %s46
    %p48 = scmp.eq.s32.totalorder %s47, 0
    %s50 = sadd.s32 %s49, 1
    %s51 = scalar_select %p48, %s49, %s50
    %p54 = pneg %p48
    %p55 = scmp.eq.s32.totalorder %s9, 1
    %p56 = por %p54, %p55
    %p57 = scmp.ne.s32.totalorder %s49, %s52
    %p58 = scmp.eq.s32.totalorder %s9, 0
    %p59 = por %p57, %p58
    %p60 = scmp.ne.s32.totalorder %s49, %s52
    %p61 = scmp.eq.s32.totalorder %s14, 1
    %p62 = por %p60, %p61
    %p63 = scmp.ne.s32.totalorder %s52, %s53
    %p64 = scmp.eq.s32.totalorder %s14, 0
    %p65 = por %p63, %p64
    %p66 = scmp.ne.s32.totalorder %s52, %s53
    %p67 = scmp.eq.s32.totalorder %s15, 1
    %p68 = por %p66, %p67
    %p70 = scmp.ne.s32.totalorder %s53, %s69
    %p71 = scmp.eq.s32.totalorder %s15, 0
    %p72 = por %p70, %p71
    %s73 = ssub.s32 %s19, %s30
    %s74 = ssub.s32 %s18, %s34
    %s75 = sor.u32 %s73, %s74
    %p76 = scmp.eq.s32.totalorder %s75, 0
    %s78 = sadd.s32 %s77, 1
    %s79 = scalar_select %p76, %s77, %s78
    %p82 = pneg %p76
    %p83 = scmp.eq.s32.totalorder %s9, 1
    %p84 = por %p82, %p83
    %p85 = scmp.ne.s32.totalorder %s77, %s80
    %p86 = scmp.eq.s32.totalorder %s9, 0
    %p87 = por %p85, %p86
    %p88 = scmp.ne.s32.totalorder %s77, %s80
    %p89 = scmp.eq.s32.totalorder %s14, 1
    %p90 = por %p88, %p89
    %p91 = scmp.ne.s32.totalorder %s80, %s81
    %p92 = scmp.eq.s32.totalorder %s14, 0
    %p93 = por %p91, %p92
    %p94 = scmp.ne.s32.totalorder %s80, %s81
    %p95 = scmp.eq.s32.totalorder %s15, 1
    %p96 = por %p94, %p95
    %p98 = scmp.ne.s32.totalorder %s81, %s97
    %p99 = scmp.eq.s32.totalorder %s15, 0
    %p100 = por %p98, %p99
    %s101 = ssub.s32 %s18, %s34
    %p102 = scmp.eq.s32.totalorder %s101, 0
    %s104 = sadd.s32 %s103, 1
    %s105 = scalar_select %p102, %s103, %s104
    %p108 = pneg %p102
    %p109 = scmp.eq.s32.totalorder %s9, 1
    %p110 = por %p108, %p109
    %p111 = scmp.ne.s32.totalorder %s103, %s106
    %p112 = scmp.eq.s32.totalorder %s9, 0
    %p113 = por %p111, %p112
    %p114 = scmp.ne.s32.totalorder %s103, %s106
    %p115 = scmp.eq.s32.totalorder %s14, 1
    %p116 = por %p114, %p115
    %p117 = scmp.ne.s32.totalorder %s106, %s107
    %p118 = scmp.eq.s32.totalorder %s14, 0
    %p119 = por %p117, %p118
    %p120 = scmp.ne.s32.totalorder %s106, %s107
    %p121 = scmp.eq.s32.totalorder %s15, 1
    %p122 = por %p120, %p121
    %p124 = scmp.ne.s32.totalorder %s107, %s123
    %p125 = scmp.eq.s32.totalorder %s15, 0
    %p126 = por %p124, %p125
    %s127 = ssub.s32 %s16, %s42
    %s128 = ssub.s32 %s17, %s38
    %s129 = sor.u32 %s127, %s128
    %s130 = ssub.s32 %s18, %s34
    %s131 = sor.u32 %s129, %s130
    %p132 = scmp.eq.s32.totalorder %s131, 0
    %s134 = sadd.s32 %s133, 1
    %s135 = scalar_select %p132, %s133, %s134
    %p138 = pneg %p132
    %p139 = scmp.eq.s32.totalorder %s9, 1
    %p140 = por %p138, %p139
    %p141 = scmp.ne.s32.totalorder %s133, %s136
    %p142 = scmp.eq.s32.totalorder %s9, 0
    %p143 = por %p141, %p142
    %p144 = scmp.ne.s32.totalorder %s133, %s136
    %p145 = scmp.eq.s32.totalorder %s14, 1
    %p146 = por %p144, %p145
    %p147 = scmp.ne.s32.totalorder %s136, %s137
    %p148 = scmp.eq.s32.totalorder %s14, 0
    %p149 = por %p147, %p148
    %p150 = scmp.ne.s32.totalorder %s136, %s137
    %p151 = scmp.eq.s32.totalorder %s15, 1
    %p152 = por %p150, %p151
    %p154 = scmp.ne.s32.totalorder %s137, %s153
    %p155 = scmp.eq.s32.totalorder %s15, 0
    %p156 = por %p154, %p155
    %p157 = scmp.le.s32.totalorder 1, %s9
    %p158 = scmp.lt.s32.totalorder %s9, 3
    %p159 = pnand %p157, %p158
    %p160 = pneg %p159
    // Predicated region
    $region9: #{_lambda_.10} parent=5 // pred_check
      _
    $region10: #{_lambda_.10} parent=5 // pred_check_branch
      %162 = sbr.rel (%p159) target = $region12
    $region11: #{_lambda_.10} parent=5 // pred_region
      %s163 = ssub.s32 %s9, 1
      // Predicated region
      $region13: #{_lambda_.10} parent=11 // pred_check
        %p164 = pneg %p93
      $region14: #{_lambda_.10} parent=11 // pred_check_branch
        %166 = sbr.rel (%p164) target = $region16
      $region15: #{_lambda_.10} parent=11 // pred_region
        %s167 = smul.u32 4, %s23
        %p168 = scmp.lt.s32.totalorder %s167, 3
        %s169 = scalar_select %p168, %s167, 3
        %p170 = scmp.lt.s32.totalorder %s22, 0
        %s171 = scalar_select %p170, %s22, 0
        %s172 = sadd.s32 %s171, %s169
        %s173 = smul.addr %s172, 4
        %s174 = scalar_lea.vmem %s1, %s173
        %s175 = smul.u32 4, %s23
      $region16: #{_lambda_.10} parent=11 // pred_fallthru
        _
      // Predicated region
      $region17: #{_lambda_.10} parent=11 // pred_check
        %p176 = pneg %p119
      $region18: #{_lambda_.10} parent=11 // pred_check_branch
        %178 = sbr.rel (%p176) target = $region20
      $region19: #{_lambda_.10} parent=11 // pred_region
        %p179 = scmp.lt.s32.totalorder %s22, 0
        %s180 = scalar_select %p179, %s22, 0
        %s181 = scalar_lea.vmem %s2, %s180
      $region20: #{_lambda_.10} parent=11 // pred_fallthru
        _
    $region12: #{_lambda_.10} parent=5 // pred_fallthru
      _
    %p182 = scmp.lt.s32.totalorder %s9, 2
    // Predicated region
    $region21: #{_lambda_.10} parent=5 // pred_check
      %p183 = pneg %p182
    $region22: #{_lambda_.10} parent=5 // pred_check_branch
      %185 = sbr.rel (%p183) target = $region24
    $region23: #{_lambda_.10} parent=5 // pred_region
      // Predicated region
      $region25: #{_lambda_.10} parent=23 // pred_check
        %p186 = pneg %p59
      $region26: #{_lambda_.10} parent=23 // pred_check_branch
        %188 = sbr.rel (%p186) target = $region28
      $region27: #{_lambda_.10} parent=23 // pred_region
        %s189 = smul.u32 2, %s17
        %p190 = scmp.lt.s32.totalorder %s16, 1
        %s191 = scalar_select %p190, %s16, 1
        %p192 = scmp.lt.s32.totalorder %s189, 1
        %s193 = scalar_select %p192, %s189, 1
        %p194 = scmp.lt.s32.totalorder %s19, 0
        %s195 = scalar_select %p194, %s19, 0
        %s196 = sadd.s32 %s195, %s193
        %s197 = smul.addr %s191, 2
        %s198 = sadd.s32 %s196, %s197
        %s199 = smul.addr %s198, 8
        %s200 = scalar_lea.vmem %s0, %s199
        %s201 = smul.u32 2, %s17
      $region28: #{_lambda_.10} parent=23 // pred_fallthru
        _
    $region24: #{_lambda_.10} parent=5 // pred_fallthru
      _
    %p202 = scmp.le.s32.totalorder 1, %s9
    %p203 = scmp.lt.s32.totalorder %s9, 3
    %p204 = pnand %p202, %p203
    %p205 = pneg %p204
    // Predicated region
    $region29: #{_lambda_.10} parent=5 // pred_check
      _
    $region30: #{_lambda_.10} parent=5 // pred_check_branch
      %207 = sbr.rel (%p204) target = $region32
    $region31: #{_lambda_.10} parent=5 // pred_region
      %s208 = ssub.s32 %s9, 1
      %s209 = smul.u32 2, %s21
      %p210 = scmp.lt.s32.totalorder %s20, 1
      %s211 = scalar_select %p210, %s20, 1
      %p212 = scmp.lt.s32.totalorder %s209, 1
      %s213 = scalar_select %p212, %s209, 1
      %p214 = scmp.lt.s32.totalorder %s23, 0
      %s215 = scalar_select %p214, %s23, 0
      %s216 = sadd.s32 %s215, %s213
      %s217 = smul.addr %s211, 2
      %s218 = sadd.s32 %s216, %s217
      %s219 = smul.addr %s218, 8
      %s220 = scalar_lea.vmem %s0, %s219
      %p221 = pneg %p65
      %p222 = pneg %p62
      %s223 = smul.u32 4, %s23
      %p224 = scmp.lt.s32.totalorder %s223, 3
      %s225 = scalar_select %p224, %s223, 3
      %p226 = scmp.lt.s32.totalorder %s22, 0
      %s227 = scalar_select %p226, %s22, 0
      %s228 = sadd.s32 %s227, %s225
      %s229 = smul.addr %s228, 4
      %s230 = scalar_lea.vmem %s1, %s229
      %p231 = pneg %p93
      %p232 = pneg %p90
      %p233 = scmp.lt.s32.totalorder %s22, 0
      %s234 = scalar_select %p233, %s22, 0
      %s235 = scalar_lea.vmem %s2, %s234
      %p236 = pneg %p119
      %p237 = pneg %p116
      %p238 = pneg %p149
      %p239 = pneg %p146
      %s240 = smul.u32 2, %s21
      %p241 = scmp.lt.s32.totalorder %s20, 1
      %s242 = scalar_select %p241, %s20, 1
      %p243 = scmp.lt.s32.totalorder %s240, 1
      %s244 = scalar_select %p243, %s240, 1
      %p245 = scmp.lt.s32.totalorder %s22, 0
      %s246 = scalar_select %p245, %s22, 0
      %s247 = sadd.s32 %s246, %s244
      %s248 = smul.addr %s242, 2
      %s249 = sadd.s32 %s247, %s248
      %s250 = smul.addr %s249, 8
      %s251 = scalar_lea.vmem %s3, %s250
      %s252 = smul.u32 2, %s21
      %p253 = scmp.lt.s32.totalorder %s20, 1
      %s254 = scalar_select %p253, %s20, 1
      %p255 = scmp.lt.s32.totalorder %s252, 1
      %s256 = scalar_select %p255, %s252, 1
      %p257 = scmp.lt.s32.totalorder %s23, 0
      %s258 = scalar_select %p257, %s23, 0
      %s259 = sadd.s32 %s258, %s256
      %s260 = smul.addr %s254, 2
      %s261 = sadd.s32 %s259, %s260
      %s262 = smul.addr %s261, 8
      %s263 = scalar_lea.vmem %s0, %s262
      %s264 = smul.u32 2, %s21
      %s265 = smul.u32 4, %s23
      %p266 = scmp.lt.s32.totalorder %s265, 3
      %s267 = scalar_select %p266, %s265, 3
      %p268 = scmp.lt.s32.totalorder %s22, 0
      %s269 = scalar_select %p268, %s22, 0
      %s270 = sadd.s32 %s269, %s267
      %s271 = smul.addr %s270, 4
      %s272 = scalar_lea.vmem %s1, %s271
      %s273 = smul.u32 4, %s23
      %p274 = scmp.lt.s32.totalorder %s22, 0
      %s275 = scalar_select %p274, %s22, 0
      %s276 = scalar_lea.vmem %s2, %s275
      %s277 = smul.u32 2, %s21
      %p278 = scmp.lt.s32.totalorder %s20, 1
      %s279 = scalar_select %p278, %s20, 1
      %p280 = scmp.lt.s32.totalorder %s277, 1
      %s281 = scalar_select %p280, %s277, 1
      %p282 = scmp.lt.s32.totalorder %s22, 0
      %s283 = scalar_select %p282, %s22, 0
      %s284 = sadd.s32 %s283, %s281
      %s285 = smul.addr %s279, 2
      %s286 = sadd.s32 %s284, %s285
      %s287 = smul.addr %s286, 8
      %s288 = scalar_lea.vmem %s3, %s287
      %s289 = smul.u32 2, %s21
      %v291 = vld [vmem:[%s263] sm:$0xff]
      %v292 = vld [vmem:[%s263 + $0x8] sm:$0xff]
      %v293 = vpack.c.bf16 %v292, %v291
      %v294 = vld [vmem:[%s272] sm:$0xf]
      %v295 = vld [vmem:[%s272 + $0x4] sm:$0xf]
      %v296 = vld [vmem:[%s272 + $0x8] sm:$0xf]
      %v297 = vld [vmem:[%s272 + $0xc] sm:$0xf]
      %v298 = vld [vmem:[%s276] sm:$0x1]
      %v300 = vperm.slane %v298, 0
      %v306 = vunpack.c.l.b16 %v294
      %v307 = vunpack.c.l.b16 %v295
      %v308 = vunpack.c.l.b16 %v296
      %v309 = vunpack.c.l.b16 %v297
      %v310 = vpack.c.b16 %v307, %v306
      %v311 = vpack.c.b16 %v309, %v308
      %vm314 = vcmask 261120
      %v316 = vsel %vm314, %v293, 0
      %318 = vmatpush.bf16.msra.mxu0 0
      %319 = vmatpush.bf16.msra.mxu0 0
      %320 = vmatpush.bf16.msra.mxu0 0
      %321 = vmatpush.bf16.msra.mxu0 0
      %322 = vmatpush.bf16.msra.mxu0 0
      %323 = vmatpush.bf16.msra.mxu0 0
      %324 = vmatpush.bf16.msra.mxu0 %v311
      %325 = vmatpush.bf16.msra.mxu0 %v310
      %326 = vmatmul.bf16.gmra.mxu0 %v316
      %v327 = vpop.f32.mrf.mxu0
      %v328 = vadd.f32 %v300, %v327
      %v329 = vpop.f32.mrf.mxu0
      %v330 = vadd.f32 %v300, %v329
      %331 = vdwg.mxu0
      %332 = vst [vmem:[%s288] sm:$0xff] %v328
      %333 = vst [vmem:[%s288 + $0x8] sm:$0xff] %v330
      %s334 = smul.u32 2, %s21
      %p335 = scmp.lt.s32.totalorder %s20, 1
      %s336 = scalar_select %p335, %s20, 1
      %p337 = scmp.lt.s32.totalorder %s334, 1
      %s338 = scalar_select %p337, %s334, 1
      %p339 = scmp.lt.s32.totalorder %s22, 0
      %s340 = scalar_select %p339, %s22, 0
      %s341 = sadd.s32 %s340, %s338
      %s342 = smul.addr %s336, 2
      %s343 = sadd.s32 %s341, %s342
      %s344 = smul.addr %s343, 8
      %s345 = scalar_lea.vmem %s3, %s344
      // Predicated region
      $region33: #{_lambda_.10} parent=31 // pred_check
        %p346 = pneg %p146
      $region34: #{_lambda_.10} parent=31 // pred_check_branch
        %348 = sbr.rel (%p346) target = $region36
      $region35: #{_lambda_.10} parent=31 // pred_region
        %s349 = smul.u32 2, %s21
      $region36: #{_lambda_.10} parent=31 // pred_fallthru
        _
    $region32: #{_lambda_.10} parent=5 // pred_fallthru
      _
    %p350 = scmp.le.s32.totalorder 2, %s9
    // Predicated region
    $region37: #{_lambda_.10} parent=5 // pred_check
      %p351 = pneg %p350
    $region38: #{_lambda_.10} parent=5 // pred_check_branch
      %353 = sbr.rel (%p351) target = $region40
    $region39: #{_lambda_.10} parent=5 // pred_region
      %s354 = ssub.s32 %s9, 2
      // Predicated region
      $region41: #{_lambda_.10} parent=39 // pred_check
        %p355 = pneg %p152
      $region42: #{_lambda_.10} parent=39 // pred_check_branch
        %357 = sbr.rel (%p355) target = $region44
      $region43: #{_lambda_.10} parent=39 // pred_region
        %s358 = smul.u32 2, %s25
        %p359 = scmp.lt.s32.totalorder %s24, 1
        %s360 = scalar_select %p359, %s24, 1
        %p361 = scmp.lt.s32.totalorder %s358, 1
        %s362 = scalar_select %p361, %s358, 1
        %p363 = scmp.lt.s32.totalorder %s26, 0
        %s364 = scalar_select %p363, %s26, 0
        %s365 = sadd.s32 %s364, %s362
        %s366 = smul.addr %s360, 2
        %s367 = sadd.s32 %s365, %s366
        %s368 = smul.addr %s367, 8
        %s369 = scalar_lea.vmem %s3, %s368
      $region44: #{_lambda_.10} parent=39 // pred_fallthru
        _
    $region40: #{_lambda_.10} parent=5 // pred_fallthru
      _
  $region6: #{_lambda_.10} parent=0 // loop_footer
    %s13 = sadd.s32 1, %s9
  $region7: #{_lambda_.10} parent=0 // loop_footer_branch
    %8 = sbr.rel target = $region3
  $region8: #{_lambda_.10} parent=0 // loop_exit
    _

// kernel: _lambda_.13
$region0: #{_lambda_.13}
  #allocation0 [shape = 'u32[]', space=smem, size = 0x4, offset = 0x4, fixed_abs, tag = 'smem constant byte address 0x4 - core index']
  #allocation1 [shape = 'u32[72,128]{1,0:T(1,128)}', space=vmem, size = 0x9000, scoped, tag = 'internal scratch']
  %s0 = inlined_call_operand.vmem [shape: f32[2,16,128], index: 0, kind: input, shape index: {}]
  %s1 = inlined_call_operand.vmem [shape: f32[2,1,128], index: 1, kind: input, shape index: {}]
  %s2 = inlined_call_operand.vmem [shape: f32[2,1,128], index: 2, kind: input, shape index: {}]
  %s3 = inlined_call_operand.hbm [shape: bf16[128,256], index: 3, kind: input, shape index: {}]
  %s4 = inlined_call_operand.vmem [shape: f32[1,256], index: 4, kind: input, shape index: {}]
  %s5 = inlined_call_operand.vmem [shape: bf16[2,16,256], index: 5, kind: output, shape index: {}]
  %s6 = sld [smem:[#allocation0]]
  $region57: #{_lambda_.13} parent=0
    _
  %s8 = ssub.s32 1, %s6
  %s9 = scalar_select 0, %s8, %s6
  $region1: #{_lambda_.13} parent=0
    #allocation2 [shape = 'u8[65536]{0}', space=vmem, size = 0x10000, scoped, tag = 'input window, operand 3, single buffered']
    #allocation3 [shape = 's32[2]{0}', space=sflag, size = 0x8, scoped, tag = 'scoped memory for _lambda_.13']
    %10 = vsyncpa [#allocation3], 0
    loop: start=0, step=1, limit=4
    $region2: #{_lambda_.13} parent=1 // loop_pre_header
      _
    $region3: #{_lambda_.13} parent=1 // loop_header
      %s12 = sphi 0, %s16
      %p13 = scmp.ge.s32.totalorder %s12, 4
      %s19 = sphi 0, %s45
      %s20 = sphi 0, %s41
      %s21 = sphi 0, %s37
      %s22 = sphi 0, %s33
      %s23 = sphi 0, %s19
      %s24 = sphi 0, %s20
      %s25 = sphi 0, %s21
      %s26 = sphi 0, %s22
      %s27 = sphi 0, %s23
      %s28 = sphi 0, %s24
      %s29 = sphi 0, %s25
      %s30 = sphi 0, %s26
      %s52 = sphi 0, %s54
      %s55 = sphi 0, %s52
      %s56 = sphi 0, %s55
      %s72 = sphi 0, %s56
      %s80 = sphi 0, %s82
      %s83 = sphi 0, %s80
      %s84 = sphi 0, %s83
      %s100 = sphi 0, %s84
      %s108 = sphi 0, %s110
      %s111 = sphi 0, %s108
      %s112 = sphi 0, %s111
      %s128 = sphi 0, %s112
      %s136 = sphi 0, %s138
      %s139 = sphi 0, %s136
      %s140 = sphi 0, %s139
      %s156 = sphi 0, %s140
      %s162 = sphi 0, %s164
      %s165 = sphi 0, %s162
      %s166 = sphi 0, %s165
      %s182 = sphi 0, %s166
      %s192 = sphi 0, %s194
      %s195 = sphi 0, %s192
      %s196 = sphi 0, %s195
      %s212 = sphi 0, %s196
    $region4: #{_lambda_.13} parent=1 // loop_header_branch
      %15 = sbr.rel (%p13) target = $region8
    $region5: #{_lambda_.13} parent=1 // loop_body
      %s17 = ssub.s32 %s12, 1
      %s18 = ssub.s32 %s12, 2
      %s31 = sadd.s32 1, %s22
      %p32 = scmp.ge.s32.totalorder %s31, 1
      %s33 = scalar_select %p32, 0, %s31
      %s34 = sadd.s32 1, %s21
      %s35 = scalar_select %p32, %s34, %s21
      %p36 = scmp.ge.s32.totalorder %s35, 1
      %s37 = scalar_select %p36, 0, %s35
      %s38 = sadd.s32 1, %s20
      %s39 = scalar_select %p36, %s38, %s20
      %p40 = scmp.ge.s32.totalorder %s39, 1
      %s41 = scalar_select %p40, 0, %s39
      %s42 = sadd.s32 1, %s19
      %s43 = scalar_select %p40, %s42, %s19
      %p44 = scmp.ge.s32.totalorder %s43, 2
      %s45 = scalar_select %p44, 0, %s43
      %s46 = ssub.s32 %s19, %s45
      %s47 = ssub.s32 %s20, %s41
      %s48 = sor.u32 %s46, %s47
      %s49 = ssub.s32 %s22, %s33
      %s50 = sor.u32 %s48, %s49
      %p51 = scmp.eq.s32.totalorder %s50, 0
      %s53 = sadd.s32 %s52, 1
      %s54 = scalar_select %p51, %s52, %s53
      %p57 = pneg %p51
      %p58 = scmp.eq.s32.totalorder %s12, 1
      %p59 = por %p57, %p58
      %p60 = scmp.ne.s32.totalorder %s52, %s55
      %p61 = scmp.eq.s32.totalorder %s12, 0
      %p62 = por %p60, %p61
      %p63 = scmp.ne.s32.totalorder %s52, %s55
      %p64 = scmp.eq.s32.totalorder %s17, 1
      %p65 = por %p63, %p64
      %p66 = scmp.ne.s32.totalorder %s55, %s56
      %p67 = scmp.eq.s32.totalorder %s17, 0
      %p68 = por %p66, %p67
      %p69 = scmp.ne.s32.totalorder %s55, %s56
      %p70 = scmp.eq.s32.totalorder %s18, 1
      %p71 = por %p69, %p70
      %p73 = scmp.ne.s32.totalorder %s56, %s72
      %p74 = scmp.eq.s32.totalorder %s18, 0
      %p75 = por %p73, %p74
      %s76 = ssub.s32 %s19, %s45
      %s77 = ssub.s32 %s22, %s33
      %s78 = sor.u32 %s76, %s77
      %p79 = scmp.eq.s32.totalorder %s78, 0
      %s81 = sadd.s32 %s80, 1
      %s82 = scalar_select %p79, %s80, %s81
      %p85 = pneg %p79
      %p86 = scmp.eq.s32.totalorder %s12, 1
      %p87 = por %p85, %p86
      %p88 = scmp.ne.s32.totalorder %s80, %s83
      %p89 = scmp.eq.s32.totalorder %s12, 0
      %p90 = por %p88, %p89
      %p91 = scmp.ne.s32.totalorder %s80, %s83
      %p92 = scmp.eq.s32.totalorder %s17, 1
      %p93 = por %p91, %p92
      %p94 = scmp.ne.s32.totalorder %s83, %s84
      %p95 = scmp.eq.s32.totalorder %s17, 0
      %p96 = por %p94, %p95
      %p97 = scmp.ne.s32.totalorder %s83, %s84
      %p98 = scmp.eq.s32.totalorder %s18, 1
      %p99 = por %p97, %p98
      %p101 = scmp.ne.s32.totalorder %s84, %s100
      %p102 = scmp.eq.s32.totalorder %s18, 0
      %p103 = por %p101, %p102
      %s104 = ssub.s32 %s19, %s45
      %s105 = ssub.s32 %s22, %s33
      %s106 = sor.u32 %s104, %s105
      %p107 = scmp.eq.s32.totalorder %s106, 0
      %s109 = sadd.s32 %s108, 1
      %s110 = scalar_select %p107, %s108, %s109
      %p113 = pneg %p107
      %p114 = scmp.eq.s32.totalorder %s12, 1
      %p115 = por %p113, %p114
      %p116 = scmp.ne.s32.totalorder %s108, %s111
      %p117 = scmp.eq.s32.totalorder %s12, 0
      %p118 = por %p116, %p117
      %p119 = scmp.ne.s32.totalorder %s108, %s111
      %p120 = scmp.eq.s32.totalorder %s17, 1
      %p121 = por %p119, %p120
      %p122 = scmp.ne.s32.totalorder %s111, %s112
      %p123 = scmp.eq.s32.totalorder %s17, 0
      %p124 = por %p122, %p123
      %p125 = scmp.ne.s32.totalorder %s111, %s112
      %p126 = scmp.eq.s32.totalorder %s18, 1
      %p127 = por %p125, %p126
      %p129 = scmp.ne.s32.totalorder %s112, %s128
      %p130 = scmp.eq.s32.totalorder %s18, 0
      %p131 = por %p129, %p130
      %s132 = ssub.s32 %s22, %s33
      %s133 = ssub.s32 %s21, %s37
      %s134 = sor.u32 %s132, %s133
      %p135 = scmp.eq.s32.totalorder %s134, 0
      %s137 = sadd.s32 %s136, 1
      %s138 = scalar_select %p135, %s136, %s137
      %p141 = pneg %p135
      %p142 = scmp.eq.s32.totalorder %s12, 1
      %p143 = por %p141, %p142
      %p144 = scmp.ne.s32.totalorder %s136, %s139
      %p145 = scmp.eq.s32.totalorder %s12, 0
      %p146 = por %p144, %p145
      %p147 = scmp.ne.s32.totalorder %s136, %s139
      %p148 = scmp.eq.s32.totalorder %s17, 1
      %p149 = por %p147, %p148
      %p150 = scmp.ne.s32.totalorder %s139, %s140
      %p151 = scmp.eq.s32.totalorder %s17, 0
      %p152 = por %p150, %p151
      %p153 = scmp.ne.s32.totalorder %s139, %s140
      %p154 = scmp.eq.s32.totalorder %s18, 1
      %p155 = por %p153, %p154
      %p157 = scmp.ne.s32.totalorder %s140, %s156
      %p158 = scmp.eq.s32.totalorder %s18, 0
      %p159 = por %p157, %p158
      %s160 = ssub.s32 %s21, %s37
      %p161 = scmp.eq.s32.totalorder %s160, 0
      %s163 = sadd.s32 %s162, 1
      %s164 = scalar_select %p161, %s162, %s163
      %p167 = pneg %p161
      %p168 = scmp.eq.s32.totalorder %s12, 1
      %p169 = por %p167, %p168
      %p170 = scmp.ne.s32.totalorder %s162, %s165
      %p171 = scmp.eq.s32.totalorder %s12, 0
      %p172 = por %p170, %p171
      %p173 = scmp.ne.s32.totalorder %s162, %s165
      %p174 = scmp.eq.s32.totalorder %s17, 1
      %p175 = por %p173, %p174
      %p176 = scmp.ne.s32.totalorder %s165, %s166
      %p177 = scmp.eq.s32.totalorder %s17, 0
      %p178 = por %p176, %p177
      %p179 = scmp.ne.s32.totalorder %s165, %s166
      %p180 = scmp.eq.s32.totalorder %s18, 1
      %p181 = por %p179, %p180
      %p183 = scmp.ne.s32.totalorder %s166, %s182
      %p184 = scmp.eq.s32.totalorder %s18, 0
      %p185 = por %p183, %p184
      %s186 = ssub.s32 %s19, %s45
      %s187 = ssub.s32 %s20, %s41
      %s188 = sor.u32 %s186, %s187
      %s189 = ssub.s32 %s21, %s37
      %s190 = sor.u32 %s188, %s189
      %p191 = scmp.eq.s32.totalorder %s190, 0
      %s193 = sadd.s32 %s192, 1
      %s194 = scalar_select %p191, %s192, %s193
      %p197 = pneg %p191
      %p198 = scmp.eq.s32.totalorder %s12, 1
      %p199 = por %p197, %p198
      %p200 = scmp.ne.s32.totalorder %s192, %s195
      %p201 = scmp.eq.s32.totalorder %s12, 0
      %p202 = por %p200, %p201
      %p203 = scmp.ne.s32.totalorder %s192, %s195
      %p204 = scmp.eq.s32.totalorder %s17, 1
      %p205 = por %p203, %p204
      %p206 = scmp.ne.s32.totalorder %s195, %s196
      %p207 = scmp.eq.s32.totalorder %s17, 0
      %p208 = por %p206, %p207
      %p209 = scmp.ne.s32.totalorder %s195, %s196
      %p210 = scmp.eq.s32.totalorder %s18, 1
      %p211 = por %p209, %p210
      %p213 = scmp.ne.s32.totalorder %s196, %s212
      %p214 = scmp.eq.s32.totalorder %s18, 0
      %p215 = por %p213, %p214
      %p216 = scmp.le.s32.totalorder 1, %s12
      %p217 = scmp.lt.s32.totalorder %s12, 3
      %p218 = pnand %p216, %p217
      %p219 = pneg %p218
      // Predicated region
      $region9: #{_lambda_.13} parent=5 // pred_check
        _
      $region10: #{_lambda_.13} parent=5 // pred_check_branch
        %221 = sbr.rel (%p218) target = $region12
      $region11: #{_lambda_.13} parent=5 // pred_region
        %s222 = ssub.s32 %s12, 1
        // Predicated region
        $region13: #{_lambda_.13} parent=11 // pred_check
          %p223 = pneg %p152
        $region14: #{_lambda_.13} parent=11 // pred_check_branch
          %225 = sbr.rel (%p223) target = $region16
        $region15: #{_lambda_.13} parent=11 // pred_region
          %s226 = smul.u32 16, %s26
          %s227 = smul.u32 2, %s25
          %229 = vsyncadd [#allocation3], 0
          %s230 = smul.addr %s226, 2
          %s231 = sadd.s32 %s227, %s230
          %s232 = smul.addr %s231, 4
          %s233 = scalar_lea.hbm %s3, %s232
          %s234 = sshll.u32 %s233, 4
          %s235 = int_to_ptr.hbm [resolvable:$true] %s234
          %s236 = sshll.u32 [#allocation2], 4
          %s237 = int_to_ptr.vmem [resolvable:$true] %s236
          %242 = dma.hbm_to_vmem [thread:$0]  %s235, 2048, %s237, [#allocation3], 128, 128, 8
        $region16: #{_lambda_.13} parent=11 // pred_fallthru
          _
        // Predicated region
        $region17: #{_lambda_.13} parent=11 // pred_check
          %p243 = pneg %p178
        $region18: #{_lambda_.13} parent=11 // pred_check_branch
          %245 = sbr.rel (%p243) target = $region20
        $region19: #{_lambda_.13} parent=11 // pred_region
          %s246 = smul.u32 2, %s25
          %p247 = scmp.lt.s32.totalorder %s246, 1
          %s248 = scalar_select %p247, %s246, 1
          %s249 = scalar_lea.vmem %s4, %s248
          %s250 = smul.u32 2, %s25
        $region20: #{_lambda_.13} parent=11 // pred_fallthru
          _
      $region12: #{_lambda_.13} parent=5 // pred_fallthru
        _
      %p251 = scmp.lt.s32.totalorder %s12, 2
      // Predicated region
      $region21: #{_lambda_.13} parent=5 // pred_check
        %p252 = pneg %p251
      $region22: #{_lambda_.13} parent=5 // pred_check_branch
        %254 = sbr.rel (%p252) target = $region24
      $region23: #{_lambda_.13} parent=5 // pred_region
        // Predicated region
        $region25: #{_lambda_.13} parent=23 // pred_check
          %p255 = pneg %p62
        $region26: #{_lambda_.13} parent=23 // pred_check_branch
          %257 = sbr.rel (%p255) target = $region28
        $region27: #{_lambda_.13} parent=23 // pred_region
          %s258 = smul.u32 2, %s20
          %p259 = scmp.lt.s32.totalorder %s19, 1
          %s260 = scalar_select %p259, %s19, 1
          %p261 = scmp.lt.s32.totalorder %s258, 1
          %s262 = scalar_select %p261, %s258, 1
          %p263 = scmp.lt.s32.totalorder %s22, 0
          %s264 = scalar_select %p263, %s22, 0
          %s265 = sadd.s32 %s264, %s262
          %s266 = smul.addr %s260, 2
          %s267 = sadd.s32 %s265, %s266
          %s268 = smul.addr %s267, 8
          %s269 = scalar_lea.vmem %s0, %s268
          %s270 = smul.u32 2, %s20
        $region28: #{_lambda_.13} parent=23 // pred_fallthru
          _
        // Predicated region
        $region29: #{_lambda_.13} parent=23 // pred_check
          %p271 = pneg %p90
        $region30: #{_lambda_.13} parent=23 // pred_check_branch
          %273 = sbr.rel (%p271) target = $region32
        $region31: #{_lambda_.13} parent=23 // pred_region
          %p274 = scmp.lt.s32.totalorder %s19, 1
          %s275 = scalar_select %p274, %s19, 1
          %p276 = scmp.lt.s32.totalorder %s22, 0
          %s277 = scalar_select %p276, %s22, 0
          %s278 = sadd.s32 %s277, %s275
          %s279 = scalar_lea.vmem %s1, %s278
        $region32: #{_lambda_.13} parent=23 // pred_fallthru
          _
        // Predicated region
        $region33: #{_lambda_.13} parent=23 // pred_check
          %p280 = pneg %p118
        $region34: #{_lambda_.13} parent=23 // pred_check_branch
          %282 = sbr.rel (%p280) target = $region36
        $region35: #{_lambda_.13} parent=23 // pred_region
          %p283 = scmp.lt.s32.totalorder %s19, 1
          %s284 = scalar_select %p283, %s19, 1
          %p285 = scmp.lt.s32.totalorder %s22, 0
          %s286 = scalar_select %p285, %s22, 0
          %s287 = sadd.s32 %s286, %s284
          %s288 = scalar_lea.vmem %s2, %s287
        $region36: #{_lambda_.13} parent=23 // pred_fallthru
          _
      $region24: #{_lambda_.13} parent=5 // pred_fallthru
        _
      %p289 = scmp.le.s32.totalorder 1, %s12
      %p290 = scmp.lt.s32.totalorder %s12, 3
      %p291 = pnand %p289, %p290
      %p292 = pneg %p291
      // Predicated region
      $region37: #{_lambda_.13} parent=5 // pred_check
        _
      $region38: #{_lambda_.13} parent=5 // pred_check_branch
        %294 = sbr.rel (%p291) target = $region40
      $region39: #{_lambda_.13} parent=5 // pred_region
        %s295 = ssub.s32 %s12, 1
        // Predicated region
        $region41: #{_lambda_.13} parent=39 // pred_check
          %p296 = pneg %p152
        $region42: #{_lambda_.13} parent=39 // pred_check_branch
          %298 = sbr.rel (%p296) target = $region44
        $region43: #{_lambda_.13} parent=39 // pred_region
          %300 = dma.done [#allocation3], 2048
        $region44: #{_lambda_.13} parent=39 // pred_fallthru
          _
        %s301 = smul.u32 2, %s24
        %p302 = scmp.lt.s32.totalorder %s23, 1
        %s303 = scalar_select %p302, %s23, 1
        %p304 = scmp.lt.s32.totalorder %s301, 1
        %s305 = scalar_select %p304, %s301, 1
        %p306 = scmp.lt.s32.totalorder %s26, 0
        %s307 = scalar_select %p306, %s26, 0
        %s308 = sadd.s32 %s307, %s305
        %s309 = smul.addr %s303, 2
        %s310 = sadd.s32 %s308, %s309
        %s311 = smul.addr %s310, 8
        %s312 = scalar_lea.vmem %s0, %s311
        %p313 = pneg %p68
        %p314 = pneg %p65
        %p315 = scmp.lt.s32.totalorder %s23, 1
        %s316 = scalar_select %p315, %s23, 1
        %p317 = scmp.lt.s32.totalorder %s26, 0
        %s318 = scalar_select %p317, %s26, 0
        %s319 = sadd.s32 %s318, %s316
        %s320 = scalar_lea.vmem %s1, %s319
        %p321 = pneg %p96
        %p322 = pneg %p93
        %p323 = scmp.lt.s32.totalorder %s23, 1
        %s324 = scalar_select %p323, %s23, 1
        %p325 = scmp.lt.s32.totalorder %s26, 0
        %s326 = scalar_select %p325, %s26, 0
        %s327 = sadd.s32 %s326, %s324
        %s328 = scalar_lea.vmem %s2, %s327
        %p329 = pneg %p124
        %p330 = pneg %p121
        %p331 = pneg %p152
        %p332 = pneg %p149
        %s333 = smul.u32 2, %s25
        %p334 = scmp.lt.s32.totalorder %s333, 1
        %s335 = scalar_select %p334, %s333, 1
        %s336 = scalar_lea.vmem %s4, %s335
        %p337 = pneg %p178
        %p338 = pneg %p175
        %p339 = pneg %p208
        %p340 = pneg %p205
        %s341 = smul.u32 2, %s24
        %s342 = smul.u32 2, %s25
        %p343 = scmp.lt.s32.totalorder %s23, 1
        %s344 = scalar_select %p343, %s23, 1
        %p345 = scmp.lt.s32.totalorder %s341, 1
        %s346 = scalar_select %p345, %s341, 1
        %p347 = scmp.lt.s32.totalorder %s342, 1
        %s348 = scalar_select %p347, %s342, 1
        %s349 = smul.addr %s346, 2
        %s350 = sadd.s32 %s348, %s349
        %s351 = smul.addr %s344, 4
        %s352 = sadd.s32 %s350, %s351
        %s353 = smul.addr %s352, 4
        %s354 = scalar_lea.vmem %s5, %s353
        %s355 = smul.u32 2, %s24
        %p356 = scmp.lt.s32.totalorder %s23, 1
        %s357 = scalar_select %p356, %s23, 1
        %p358 = scmp.lt.s32.totalorder %s355, 1
        %s359 = scalar_select %p358, %s355, 1
        %p360 = scmp.lt.s32.totalorder %s26, 0
        %s361 = scalar_select %p360, %s26, 0
        %s362 = sadd.s32 %s361, %s359
        %s363 = smul.addr %s357, 2
        %s364 = sadd.s32 %s362, %s363
        %s365 = smul.addr %s364, 8
        %s366 = scalar_lea.vmem %s0, %s365
        %s367 = smul.u32 2, %s24
        %p368 = scmp.lt.s32.totalorder %s23, 1
        %s369 = scalar_select %p368, %s23, 1
        %p370 = scmp.lt.s32.totalorder %s26, 0
        %s371 = scalar_select %p370, %s26, 0
        %s372 = sadd.s32 %s371, %s369
        %s373 = scalar_lea.vmem %s1, %s372
        %p374 = scmp.lt.s32.totalorder %s23, 1
        %s375 = scalar_select %p374, %s23, 1
        %p376 = scmp.lt.s32.totalorder %s26, 0
        %s377 = scalar_select %p376, %s26, 0
        %s378 = sadd.s32 %s377, %s375
        %s379 = scalar_lea.vmem %s2, %s378
        %s380 = smul.u32 16, %s26
        %s381 = smul.u32 2, %s25
        %s382 = smul.u32 2, %s25
        %p383 = scmp.lt.s32.totalorder %s382, 1
        %s384 = scalar_select %p383, %s382, 1
        %s385 = scalar_lea.vmem %s4, %s384
        %s386 = smul.u32 2, %s25
        %s387 = smul.u32 2, %s24
        %s388 = smul.u32 2, %s25
        %p389 = scmp.lt.s32.totalorder %s23, 1
        %s390 = scalar_select %p389, %s23, 1
        %p391 = scmp.lt.s32.totalorder %s387, 1
        %s392 = scalar_select %p391, %s387, 1
        %p393 = scmp.lt.s32.totalorder %s388, 1
        %s394 = scalar_select %p393, %s388, 1
        %s395 = smul.addr %s392, 2
        %s396 = sadd.s32 %s394, %s395
        %s397 = smul.addr %s390, 4
        %s398 = sadd.s32 %s396, %s397
        %s399 = smul.addr %s398, 4
        %s400 = scalar_lea.vmem %s5, %s399
        %s401 = smul.u32 2, %s24
        %s402 = smul.u32 2, %s25
        %v403 = vld [vmem:[%s366] sm:$0xff]
        %v404 = vld [vmem:[%s366 + $0x8] sm:$0xff]
        %405 = vadd.xlane.f32.xlu0 %v403
        %v406 = vpop.xlane.xlu0 %405
        %407 = vadd.xlane.f32.xlu0 %v404
        %v408 = vpop.xlane.xlu0 %407
        %v409 = vrcp.pop 128.0
        %v410 = vmul.f32 128.0, %v409
        %v411 = vsub.f32 1.0, %v410
        %v412 = vmul.f32 %v409, %v411
        %v413 = vadd.f32 %v409, %v412
        %vm414 = vweird.f32 %v409
        %v415 = vsel %vm414, %v409, %v413
        %v416 = vmul.f32 %v406, %v415
        %v417 = vmul.f32 %v408, %v415
        %v418 = vsub.f32 %v403, %v416
        %v419 = vsub.f32 %v404, %v417
        %v420 = vmul.f32 %v418, %v418
        %v421 = vmul.f32 %v419, %v419
        %422 = vadd.xlane.f32.xlu0 %v420
        %v423 = vpop.xlane.xlu0 %422
        %424 = vadd.xlane.f32.xlu0 %v421
        %v425 = vpop.xlane.xlu0 %424
        %v426 = vmul.f32 %v423, 0.007874016
        %v427 = vmul.f32 %v425, 0.007874016
        %vm428 = vcmp.eq.f32.partialorder %v426, 0.0
        %vm429 = vcmp.eq.f32.partialorder %v427, 0.0
        %v430 = vrsqrt.pop %v426
        %v431 = vmul.f32 %v430, %v426
        %v432 = vmul.f32 %v431, %v430
        %v433 = vmul.f32 0.5, %v432
        %v434 = vsub.f32 1.5, %v433
        %v435 = vmul.f32 %v430, %v434
        %vm436 = vweird.f32 %v426
        %vm437 = vweird.f32 %v430
        %vm438 = vmor %vm436, %vm437
        %v439 = vsel %vm438, %v430, %v435
        %v440 = vrsqrt.pop %v427
        %v441 = vmul.f32 %v440, %v427
        %v442 = vmul.f32 %v441, %v440
        %v443 = vmul.f32 0.5, %v442
        %v444 = vsub.f32 1.5, %v443
        %v445 = vmul.f32 %v440, %v444
        %vm446 = vweird.f32 %v427
        %vm447 = vweird.f32 %v440
        %vm448 = vmor %vm446, %vm447
        %v449 = vsel %vm448, %v440, %v445
        %v450 = vsel %vm428, 1.0, %v439
        %v451 = vsel %vm429, 1.0, %v449
        %v452 = vld [vmem:[%s373] sm:$0x1]
        %v453 = vmul.f32 %v418, %v450
        %v454 = vmul.f32 %v419, %v451
        %v456 = vperm.slane %v452, 0
        %v458 = vmul.f32 %v456, %v453
        %v459 = vmul.f32 %v456, %v454
        %v460 = vld [vmem:[%s379] sm:$0x1]
        %v462 = vperm.slane %v460, 0
        %v464 = vadd.f32 %v458, %v462
        %v465 = vadd.f32 %v459, %v462
        %v466 = vpack.c.bf16 %v465, %v464
        %v467 = vld [vmem:[#allocation2] sm:$0xff]
        %v468 = vld [vmem:[#allocation2 + $0x8] sm:$0xff]
        %v469 = vld [vmem:[#allocation2 + $0x10] sm:$0xff]
        %v470 = vld [vmem:[#allocation2 + $0x18] sm:$0xff]
        %v471 = vld [vmem:[#allocation2 + $0x20] sm:$0xff]
        %v472 = vld [vmem:[#allocation2 + $0x28] sm:$0xff]
        %v473 = vld [vmem:[#allocation2 + $0x30] sm:$0xff]
        %v474 = vld [vmem:[#allocation2 + $0x38] sm:$0xff]
        %v475 = vld [vmem:[#allocation2 + $0x40] sm:$0xff]
        %v476 = vld [vmem:[#allocation2 + $0x48] sm:$0xff]
        %v477 = vld [vmem:[#allocation2 + $0x50] sm:$0xff]
        %v478 = vld [vmem:[#allocation2 + $0x58] sm:$0xff]
        %v479 = vld [vmem:[#allocation2 + $0x60] sm:$0xff]
        %v480 = vld [vmem:[#allocation2 + $0x68] sm:$0xff]
        %v481 = vld [vmem:[#allocation2 + $0x70] sm:$0xff]
        %v482 = vld [vmem:[#allocation2 + $0x78] sm:$0xff]
        %v483 = vld [vmem:[%s385] sm:$0x3]
        %v485 = vperm.slane %v483, 0
        %v486 = vperm.slane %v483, 1
        %v505 = vunpack.c.l.b16 %v467
        %v506 = vunpack.c.h.b16 %v467
        %v507 = vunpack.c.l.b16 %v468
        %v508 = vunpack.c.h.b16 %v468
        %v509 = vunpack.c.l.b16 %v469
        %v510 = vunpack.c.h.b16 %v469
        %v511 = vunpack.c.l.b16 %v470
        %v512 = vunpack.c.h.b16 %v470
        %v513 = vunpack.c.l.b16 %v471
        %v514 = vunpack.c.h.b16 %v471
        %v515 = vunpack.c.l.b16 %v472
        %v516 = vunpack.c.h.b16 %v472
        %v517 = vunpack.c.l.b16 %v473
        %v518 = vunpack.c.h.b16 %v473
        %v519 = vunpack.c.l.b16 %v474
        %v520 = vunpack.c.h.b16 %v474
        %v521 = vunpack.c.l.b16 %v475
        %v522 = vunpack.c.h.b16 %v475
        %v523 = vunpack.c.l.b16 %v476
        %v524 = vunpack.c.h.b16 %v476
        %v525 = vunpack.c.l.b16 %v477
        %v526 = vunpack.c.h.b16 %v477
        %v527 = vunpack.c.l.b16 %v478
        %v528 = vunpack.c.h.b16 %v478
        %v529 = vunpack.c.l.b16 %v479
        %v530 = vunpack.c.h.b16 %v479
        %v531 = vunpack.c.l.b16 %v480
        %v532 = vunpack.c.h.b16 %v480
        %v533 = vunpack.c.l.b16 %v481
        %v534 = vunpack.c.h.b16 %v481
        %v535 = vunpack.c.l.b16 %v482
        %v536 = vunpack.c.h.b16 %v482
        %v537 = vpack.c.b16 %v507, %v505
        %v538 = vpack.c.b16 %v508, %v506
        %v539 = vpack.c.b16 %v511, %v509
        %v540 = vpack.c.b16 %v512, %v510
        %v541 = vpack.c.b16 %v515, %v513
        %v542 = vpack.c.b16 %v516, %v514
        %v543 = vpack.c.b16 %v519, %v517
        %v544 = vpack.c.b16 %v520, %v518
        %v545 = vpack.c.b16 %v523, %v521
        %v546 = vpack.c.b16 %v524, %v522
        %v547 = vpack.c.b16 %v527, %v525
        %v548 = vpack.c.b16 %v528, %v526
        %v549 = vpack.c.b16 %v531, %v529
        %v550 = vpack.c.b16 %v532, %v530
        %v551 = vpack.c.b16 %v535, %v533
        %v552 = vpack.c.b16 %v536, %v534
        %569 = vmatpush.bf16.msra.mxu0 %v551
        %570 = vmatpush.bf16.msra.mxu0 %v549
        %571 = vmatpush.bf16.msra.mxu0 %v547
        %572 = vmatpush.bf16.msra.mxu0 %v545
        %573 = vmatpush.bf16.msra.mxu0 %v543
        %574 = vmatpush.bf16.msra.mxu0 %v541
        %575 = vmatpush.bf16.msra.mxu0 %v539
        %576 = vmatpush.bf16.msra.mxu0 %v537
        %577 = vmatmul.bf16.gmra.mxu0 %v466
        %v578 = vpop.f32.mrf.mxu0
        %v579 = vadd.f32 %v485, %v578
        %v580 = vpop.f32.mrf.mxu0
        %v581 = vadd.f32 %v485, %v580
        %582 = vdwg.mxu0
        %583 = vmatpush.bf16.msra.mxu0 %v552
        %584 = vmatpush.bf16.msra.mxu0 %v550
        %585 = vmatpush.bf16.msra.mxu0 %v548
        %586 = vmatpush.bf16.msra.mxu0 %v546
        %587 = vmatpush.bf16.msra.mxu0 %v544
        %588 = vmatpush.bf16.msra.mxu0 %v542
        %589 = vmatpush.bf16.msra.mxu0 %v540
        %590 = vmatpush.bf16.msra.mxu0 %v538
        %591 = vmatmul.bf16.gmra.mxu0 %v466
        %v592 = vpop.f32.mrf.mxu0
        %v593 = vadd.f32 %v486, %v592
        %v594 = vpop.f32.mrf.mxu0
        %v595 = vadd.f32 %v486, %v594
        %596 = vdwg.mxu0
        %v597 = vmul.f32 %v579, %v579
        %v598 = vmul.f32 %v593, %v593
        %v599 = vmul.f32 %v581, %v581
        %v600 = vmul.f32 %v595, %v595
        %v601 = vmul.f32 %v579, %v597
        %v602 = vmul.f32 %v593, %v598
        %v603 = vmul.f32 %v581, %v599
        %v604 = vmul.f32 %v595, %v600
        %v605 = vmul.f32 %v601, 0.044715
        %v606 = vmul.f32 %v602, 0.044715
        %v607 = vmul.f32 %v603, 0.044715
        %v608 = vmul.f32 %v604, 0.044715
        %v609 = vadd.f32 %v579, %v605
        %v610 = vadd.f32 %v593, %v606
        %v611 = vadd.f32 %v581, %v607
        %v612 = vadd.f32 %v595, %v608
        %v613 = vmul.f32 %v609, 0.7978846
        %v614 = vmul.f32 %v610, 0.7978846
        %v615 = vmul.f32 %v611, 0.7978846
        %v616 = vmul.f32 %v612, 0.7978846
        %v617 = vtanh.pop %v613
        %v618 = vtanh.pop %v614
        %v619 = vtanh.pop %v615
        %v620 = vtanh.pop %v616
        %v621 = vadd.f32 %v617, 1.0
        %v622 = vadd.f32 %v618, 1.0
        %v623 = vadd.f32 %v619, 1.0
        %v624 = vadd.f32 %v620, 1.0
        %v625 = vmul.f32 %v621, 0.5
        %v626 = vmul.f32 %v622, 0.5
        %v627 = vmul.f32 %v623, 0.5
        %v628 = vmul.f32 %v624, 0.5
        %v629 = vmul.f32 %v579, %v625
        %v630 = vmul.f32 %v593, %v626
        %v631 = vmul.f32 %v581, %v627
        %v632 = vmul.f32 %v595, %v628
        %v633 = vpack.c.bf16 %v630, %v629
        %v634 = vpack.c.bf16 %v632, %v631
        %635 = vst [vmem:[%s400] sm:$0xff] %v633
        %636 = vst [vmem:[%s400 + $0x8] sm:$0xff] %v634
        %s637 = smul.u32 2, %s24
        %s638 = smul.u32 2, %s25
        %p639 = scmp.lt.s32.totalorder %s23, 1
        %s640 = scalar_select %p639, %s23, 1
        %p641 = scmp.lt.s32.totalorder %s637, 1
        %s642 = scalar_select %p641, %s637, 1
        %p643 = scmp.lt.s32.totalorder %s638, 1
        %s644 = scalar_select %p643, %s638, 1
        %s645 = smul.addr %s642, 2
        %s646 = sadd.s32 %s644, %s645
        %s647 = smul.addr %s640, 4
        %s648 = sadd.s32 %s646, %s647
        %s649 = smul.addr %s648, 4
        %s650 = scalar_lea.vmem %s5, %s649
        // Predicated region
        $region45: #{_lambda_.13} parent=39 // pred_check
          %p651 = pneg %p205
        $region46: #{_lambda_.13} parent=39 // pred_check_branch
          %653 = sbr.rel (%p651) target = $region48
        $region47: #{_lambda_.13} parent=39 // pred_region
          %s654 = smul.u32 2, %s24
          %s655 = smul.u32 2, %s25
        $region48: #{_lambda_.13} parent=39 // pred_fallthru
          _
      $region40: #{_lambda_.13} parent=5 // pred_fallthru
        _
      %p656 = scmp.le.s32.totalorder 2, %s12
      // Predicated region
      $region49: #{_lambda_.13} parent=5 // pred_check
        %p657 = pneg %p656
      $region50: #{_lambda_.13} parent=5 // pred_check_branch
        %659 = sbr.rel (%p657) target = $region52
      $region51: #{_lambda_.13} parent=5 // pred_region
        %s660 = ssub.s32 %s12, 2
        // Predicated region
        $region53: #{_lambda_.13} parent=51 // pred_check
          %p661 = pneg %p211
        $region54: #{_lambda_.13} parent=51 // pred_check_branch
          %663 = sbr.rel (%p661) target = $region56
        $region55: #{_lambda_.13} parent=51 // pred_region
          %s664 = smul.u32 2, %s28
          %s665 = smul.u32 2, %s29
          %p666 = scmp.lt.s32.totalorder %s27, 1
          %s667 = scalar_select %p666, %s27, 1
          %p668 = scmp.lt.s32.totalorder %s664, 1
          %s669 = scalar_select %p668, %s664, 1
          %p670 = scmp.lt.s32.totalorder %s665, 1
          %s671 = scalar_select %p670, %s665, 1
          %s672 = smul.addr %s669, 2
          %s673 = sadd.s32 %s671, %s672
          %s674 = smul.addr %s667, 4
          %s675 = sadd.s32 %s673, %s674
          %s676 = smul.addr %s675, 4
          %s677 = scalar_lea.vmem %s5, %s676
        $region56: #{_lambda_.13} parent=51 // pred_fallthru
          _
      $region52: #{_lambda_.13} parent=5 // pred_fallthru
        _
    $region6: #{_lambda_.13} parent=1 // loop_footer
      %s16 = sadd.s32 1, %s12
    $region7: #{_lambda_.13} parent=1 // loop_footer_branch
      %11 = sbr.rel target = $region3
    $region8: #{_lambda_.13} parent=1 // loop_exit
      _
    %678 = vsyncpa [#allocation3], 1
    %s679 = scalar_lea.sflag [#allocation3], 1
    %680 = vsyncpa %s679, 1

// kernel: _lambda_.11
$region0: #{_lambda_.11}
  #allocation0 [shape = 'u32[]', space=smem, size = 0x4, offset = 0x4, fixed_abs, tag = 'smem constant byte address 0x4 - core index']
  #allocation1 [shape = 'u32[72,128]{1,0:T(1,128)}', space=vmem, size = 0x9000, scoped, tag = 'internal scratch']
  %s0 = inlined_call_operand.vmem [shape: f32[2,16,128], index: 0, kind: input, shape index: {}]
  %s1 = inlined_call_operand.vmem [shape: f32[2,1,128], index: 1, kind: input, shape index: {}]
  %s2 = inlined_call_operand.vmem [shape: f32[2,1,128], index: 2, kind: input, shape index: {}]
  %s3 = inlined_call_operand.hbm [shape: bf16[128,384], index: 3, kind: input, shape index: {}]
  %s4 = inlined_call_operand.vmem [shape: f32[1,384], index: 4, kind: input, shape index: {}]
  %s5 = inlined_call_operand.vmem [shape: bf16[2,16,384], index: 5, kind: output, shape index: {}]
  %s6 = sld [smem:[#allocation0]]
  $region57: #{_lambda_.11} parent=0
    _
  %s8 = ssub.s32 1, %s6
  %s9 = scalar_select 0, %s8, %s6
  $region1: #{_lambda_.11} parent=0
    #allocation2 [shape = 'u8[98304]{0}', space=vmem, size = 0x18000, scoped, tag = 'input window, operand 3, single buffered']
    #allocation3 [shape = 's32[2]{0}', space=sflag, size = 0x8, scoped, tag = 'scoped memory for _lambda_.11']
    %10 = vsyncpa [#allocation3], 0
    loop: start=0, step=1, limit=4
    $region2: #{_lambda_.11} parent=1 // loop_pre_header
      _
    $region3: #{_lambda_.11} parent=1 // loop_header
      %s12 = sphi 0, %s16
      %p13 = scmp.ge.s32.totalorder %s12, 4
      %s19 = sphi 0, %s45
      %s20 = sphi 0, %s41
      %s21 = sphi 0, %s37
      %s22 = sphi 0, %s33
      %s23 = sphi 0, %s19
      %s24 = sphi 0, %s20
      %s25 = sphi 0, %s21
      %s26 = sphi 0, %s22
      %s27 = sphi 0, %s23
      %s28 = sphi 0, %s24
      %s29 = sphi 0, %s25
      %s30 = sphi 0, %s26
      %s52 = sphi 0, %s54
      %s55 = sphi 0, %s52
      %s56 = sphi 0, %s55
      %s72 = sphi 0, %s56
      %s80 = sphi 0, %s82
      %s83 = sphi 0, %s80
      %s84 = sphi 0, %s83
      %s100 = sphi 0, %s84
      %s108 = sphi 0, %s110
      %s111 = sphi 0, %s108
      %s112 = sphi 0, %s111
      %s128 = sphi 0, %s112
      %s136 = sphi 0, %s138
      %s139 = sphi 0, %s136
      %s140 = sphi 0, %s139
      %s156 = sphi 0, %s140
      %s162 = sphi 0, %s164
      %s165 = sphi 0, %s162
      %s166 = sphi 0, %s165
      %s182 = sphi 0, %s166
      %s192 = sphi 0, %s194
      %s195 = sphi 0, %s192
      %s196 = sphi 0, %s195
      %s212 = sphi 0, %s196
    $region4: #{_lambda_.11} parent=1 // loop_header_branch
      %15 = sbr.rel (%p13) target = $region8
    $region5: #{_lambda_.11} parent=1 // loop_body
      %s17 = ssub.s32 %s12, 1
      %s18 = ssub.s32 %s12, 2
      %s31 = sadd.s32 1, %s22
      %p32 = scmp.ge.s32.totalorder %s31, 1
      %s33 = scalar_select %p32, 0, %s31
      %s34 = sadd.s32 1, %s21
      %s35 = scalar_select %p32, %s34, %s21
      %p36 = scmp.ge.s32.totalorder %s35, 1
      %s37 = scalar_select %p36, 0, %s35
      %s38 = sadd.s32 1, %s20
      %s39 = scalar_select %p36, %s38, %s20
      %p40 = scmp.ge.s32.totalorder %s39, 1
      %s41 = scalar_select %p40, 0, %s39
      %s42 = sadd.s32 1, %s19
      %s43 = scalar_select %p40, %s42, %s19
      %p44 = scmp.ge.s32.totalorder %s43, 2
      %s45 = scalar_select %p44, 0, %s43
      %s46 = ssub.s32 %s19, %s45
      %s47 = ssub.s32 %s20, %s41
      %s48 = sor.u32 %s46, %s47
      %s49 = ssub.s32 %s22, %s33
      %s50 = sor.u32 %s48, %s49
      %p51 = scmp.eq.s32.totalorder %s50, 0
      %s53 = sadd.s32 %s52, 1
      %s54 = scalar_select %p51, %s52, %s53
      %p57 = pneg %p51
      %p58 = scmp.eq.s32.totalorder %s12, 1
      %p59 = por %p57, %p58
      %p60 = scmp.ne.s32.totalorder %s52, %s55
      %p61 = scmp.eq.s32.totalorder %s12, 0
      %p62 = por %p60, %p61
      %p63 = scmp.ne.s32.totalorder %s52, %s55
      %p64 = scmp.eq.s32.totalorder %s17, 1
      %p65 = por %p63, %p64
      %p66 = scmp.ne.s32.totalorder %s55, %s56
      %p67 = scmp.eq.s32.totalorder %s17, 0
      %p68 = por %p66, %p67
      %p69 = scmp.ne.s32.totalorder %s55, %s56
      %p70 = scmp.eq.s32.totalorder %s18, 1
      %p71 = por %p69, %p70
      %p73 = scmp.ne.s32.totalorder %s56, %s72
      %p74 = scmp.eq.s32.totalorder %s18, 0
      %p75 = por %p73, %p74
      %s76 = ssub.s32 %s19, %s45
      %s77 = ssub.s32 %s22, %s33
      %s78 = sor.u32 %s76, %s77
      %p79 = scmp.eq.s32.totalorder %s78, 0
      %s81 = sadd.s32 %s80, 1
      %s82 = scalar_select %p79, %s80, %s81
      %p85 = pneg %p79
      %p86 = scmp.eq.s32.totalorder %s12, 1
      %p87 = por %p85, %p86
      %p88 = scmp.ne.s32.totalorder %s80, %s83
      %p89 = scmp.eq.s32.totalorder %s12, 0
      %p90 = por %p88, %p89
      %p91 = scmp.ne.s32.totalorder %s80, %s83
      %p92 = scmp.eq.s32.totalorder %s17, 1
      %p93 = por %p91, %p92
      %p94 = scmp.ne.s32.totalorder %s83, %s84
      %p95 = scmp.eq.s32.totalorder %s17, 0
      %p96 = por %p94, %p95
      %p97 = scmp.ne.s32.totalorder %s83, %s84
      %p98 = scmp.eq.s32.totalorder %s18, 1
      %p99 = por %p97, %p98
      %p101 = scmp.ne.s32.totalorder %s84, %s100
      %p102 = scmp.eq.s32.totalorder %s18, 0
      %p103 = por %p101, %p102
      %s104 = ssub.s32 %s19, %s45
      %s105 = ssub.s32 %s22, %s33
      %s106 = sor.u32 %s104, %s105
      %p107 = scmp.eq.s32.totalorder %s106, 0
      %s109 = sadd.s32 %s108, 1
      %s110 = scalar_select %p107, %s108, %s109
      %p113 = pneg %p107
      %p114 = scmp.eq.s32.totalorder %s12, 1
      %p115 = por %p113, %p114
      %p116 = scmp.ne.s32.totalorder %s108, %s111
      %p117 = scmp.eq.s32.totalorder %s12, 0
      %p118 = por %p116, %p117
      %p119 = scmp.ne.s32.totalorder %s108, %s111
      %p120 = scmp.eq.s32.totalorder %s17, 1
      %p121 = por %p119, %p120
      %p122 = scmp.ne.s32.totalorder %s111, %s112
      %p123 = scmp.eq.s32.totalorder %s17, 0
      %p124 = por %p122, %p123
      %p125 = scmp.ne.s32.totalorder %s111, %s112
      %p126 = scmp.eq.s32.totalorder %s18, 1
      %p127 = por %p125, %p126
      %p129 = scmp.ne.s32.totalorder %s112, %s128
      %p130 = scmp.eq.s32.totalorder %s18, 0
      %p131 = por %p129, %p130
      %s132 = ssub.s32 %s22, %s33
      %s133 = ssub.s32 %s21, %s37
      %s134 = sor.u32 %s132, %s133
      %p135 = scmp.eq.s32.totalorder %s134, 0
      %s137 = sadd.s32 %s136, 1
      %s138 = scalar_select %p135, %s136, %s137
      %p141 = pneg %p135
      %p142 = scmp.eq.s32.totalorder %s12, 1
      %p143 = por %p141, %p142
      %p144 = scmp.ne.s32.totalorder %s136, %s139
      %p145 = scmp.eq.s32.totalorder %s12, 0
      %p146 = por %p144, %p145
      %p147 = scmp.ne.s32.totalorder %s136, %s139
      %p148 = scmp.eq.s32.totalorder %s17, 1
      %p149 = por %p147, %p148
      %p150 = scmp.ne.s32.totalorder %s139, %s140
      %p151 = scmp.eq.s32.totalorder %s17, 0
      %p152 = por %p150, %p151
      %p153 = scmp.ne.s32.totalorder %s139, %s140
      %p154 = scmp.eq.s32.totalorder %s18, 1
      %p155 = por %p153, %p154
      %p157 = scmp.ne.s32.totalorder %s140, %s156
      %p158 = scmp.eq.s32.totalorder %s18, 0
      %p159 = por %p157, %p158
      %s160 = ssub.s32 %s21, %s37
      %p161 = scmp.eq.s32.totalorder %s160, 0
      %s163 = sadd.s32 %s162, 1
      %s164 = scalar_select %p161, %s162, %s163
      %p167 = pneg %p161
      %p168 = scmp.eq.s32.totalorder %s12, 1
      %p169 = por %p167, %p168
      %p170 = scmp.ne.s32.totalorder %s162, %s165
      %p171 = scmp.eq.s32.totalorder %s12, 0
      %p172 = por %p170, %p171
      %p173 = scmp.ne.s32.totalorder %s162, %s165
      %p174 = scmp.eq.s32.totalorder %s17, 1
      %p175 = por %p173, %p174
      %p176 = scmp.ne.s32.totalorder %s165, %s166
      %p177 = scmp.eq.s32.totalorder %s17, 0
      %p178 = por %p176, %p177
      %p179 = scmp.ne.s32.totalorder %s165, %s166
      %p180 = scmp.eq.s32.totalorder %s18, 1
      %p181 = por %p179, %p180
      %p183 = scmp.ne.s32.totalorder %s166, %s182
      %p184 = scmp.eq.s32.totalorder %s18, 0
      %p185 = por %p183, %p184
      %s186 = ssub.s32 %s19, %s45
      %s187 = ssub.s32 %s20, %s41
      %s188 = sor.u32 %s186, %s187
      %s189 = ssub.s32 %s21, %s37
      %s190 = sor.u32 %s188, %s189
      %p191 = scmp.eq.s32.totalorder %s190, 0
      %s193 = sadd.s32 %s192, 1
      %s194 = scalar_select %p191, %s192, %s193
      %p197 = pneg %p191
      %p198 = scmp.eq.s32.totalorder %s12, 1
      %p199 = por %p197, %p198
      %p200 = scmp.ne.s32.totalorder %s192, %s195
      %p201 = scmp.eq.s32.totalorder %s12, 0
      %p202 = por %p200, %p201
      %p203 = scmp.ne.s32.totalorder %s192, %s195
      %p204 = scmp.eq.s32.totalorder %s17, 1
      %p205 = por %p203, %p204
      %p206 = scmp.ne.s32.totalorder %s195, %s196
      %p207 = scmp.eq.s32.totalorder %s17, 0
      %p208 = por %p206, %p207
      %p209 = scmp.ne.s32.totalorder %s195, %s196
      %p210 = scmp.eq.s32.totalorder %s18, 1
      %p211 = por %p209, %p210
      %p213 = scmp.ne.s32.totalorder %s196, %s212
      %p214 = scmp.eq.s32.totalorder %s18, 0
      %p215 = por %p213, %p214
      %p216 = scmp.le.s32.totalorder 1, %s12
      %p217 = scmp.lt.s32.totalorder %s12, 3
      %p218 = pnand %p216, %p217
      %p219 = pneg %p218
      // Predicated region
      $region9: #{_lambda_.11} parent=5 // pred_check
        _
      $region10: #{_lambda_.11} parent=5 // pred_check_branch
        %221 = sbr.rel (%p218) target = $region12
      $region11: #{_lambda_.11} parent=5 // pred_region
        %s222 = ssub.s32 %s12, 1
        // Predicated region
        $region13: #{_lambda_.11} parent=11 // pred_check
          %p223 = pneg %p152
        $region14: #{_lambda_.11} parent=11 // pred_check_branch
          %225 = sbr.rel (%p223) target = $region16
        $region15: #{_lambda_.11} parent=11 // pred_region
          %s226 = smul.u32 16, %s26
          %s227 = smul.u32 3, %s25
          %229 = vsyncadd [#allocation3], 0
          %s230 = smul.addr %s226, 3
          %s231 = sadd.s32 %s227, %s230
          %s232 = smul.addr %s231, 4
          %s233 = scalar_lea.hbm %s3, %s232
          %s234 = sshll.u32 %s233, 4
          %s235 = int_to_ptr.hbm [resolvable:$true] %s234
          %s236 = sshll.u32 [#allocation2], 4
          %s237 = int_to_ptr.vmem [resolvable:$true] %s236
          %242 = dma.hbm_to_vmem [thread:$0]  %s235, 3072, %s237, [#allocation3], 192, 192, 12
        $region16: #{_lambda_.11} parent=11 // pred_fallthru
          _
        // Predicated region
        $region17: #{_lambda_.11} parent=11 // pred_check
          %p243 = pneg %p178
        $region18: #{_lambda_.11} parent=11 // pred_check_branch
          %245 = sbr.rel (%p243) target = $region20
        $region19: #{_lambda_.11} parent=11 // pred_region
          %s246 = smul.u32 3, %s25
          %p247 = scmp.lt.s32.totalorder %s246, 2
          %s248 = scalar_select %p247, %s246, 2
          %s249 = scalar_lea.vmem %s4, %s248
          %s250 = smul.u32 3, %s25
        $region20: #{_lambda_.11} parent=11 // pred_fallthru
          _
      $region12: #{_lambda_.11} parent=5 // pred_fallthru
        _
      %p251 = scmp.lt.s32.totalorder %s12, 2
      // Predicated region
      $region21: #{_lambda_.11} parent=5 // pred_check
        %p252 = pneg %p251
      $region22: #{_lambda_.11} parent=5 // pred_check_branch
        %254 = sbr.rel (%p252) target = $region24
      $region23: #{_lambda_.11} parent=5 // pred_region
        // Predicated region
        $region25: #{_lambda_.11} parent=23 // pred_check
          %p255 = pneg %p62
        $region26: #{_lambda_.11} parent=23 // pred_check_branch
          %257 = sbr.rel (%p255) target = $region28
        $region27: #{_lambda_.11} parent=23 // pred_region
          %s258 = smul.u32 2, %s20
          %p259 = scmp.lt.s32.totalorder %s19, 1
          %s260 = scalar_select %p259, %s19, 1
          %p261 = scmp.lt.s32.totalorder %s258, 1
          %s262 = scalar_select %p261, %s258, 1
          %p263 = scmp.lt.s32.totalorder %s22, 0
          %s264 = scalar_select %p263, %s22, 0
          %s265 = sadd.s32 %s264, %s262
          %s266 = smul.addr %s260, 2
          %s267 = sadd.s32 %s265, %s266
          %s268 = smul.addr %s267, 8
          %s269 = scalar_lea.vmem %s0, %s268
          %s270 = smul.u32 2, %s20
        $region28: #{_lambda_.11} parent=23 // pred_fallthru
          _
        // Predicated region
        $region29: #{_lambda_.11} parent=23 // pred_check
          %p271 = pneg %p90
        $region30: #{_lambda_.11} parent=23 // pred_check_branch
          %273 = sbr.rel (%p271) target = $region32
        $region31: #{_lambda_.11} parent=23 // pred_region
          %p274 = scmp.lt.s32.totalorder %s19, 1
          %s275 = scalar_select %p274, %s19, 1
          %p276 = scmp.lt.s32.totalorder %s22, 0
          %s277 = scalar_select %p276, %s22, 0
          %s278 = sadd.s32 %s277, %s275
          %s279 = scalar_lea.vmem %s1, %s278
        $region32: #{_lambda_.11} parent=23 // pred_fallthru
          _
        // Predicated region
        $region33: #{_lambda_.11} parent=23 // pred_check
          %p280 = pneg %p118
        $region34: #{_lambda_.11} parent=23 // pred_check_branch
          %282 = sbr.rel (%p280) target = $region36
        $region35: #{_lambda_.11} parent=23 // pred_region
          %p283 = scmp.lt.s32.totalorder %s19, 1
          %s284 = scalar_select %p283, %s19, 1
          %p285 = scmp.lt.s32.totalorder %s22, 0
          %s286 = scalar_select %p285, %s22, 0
          %s287 = sadd.s32 %s286, %s284
          %s288 = scalar_lea.vmem %s2, %s287
        $region36: #{_lambda_.11} parent=23 // pred_fallthru
          _
      $region24: #{_lambda_.11} parent=5 // pred_fallthru
        _
      %p289 = scmp.le.s32.totalorder 1, %s12
      %p290 = scmp.lt.s32.totalorder %s12, 3
      %p291 = pnand %p289, %p290
      %p292 = pneg %p291
      // Predicated region
      $region37: #{_lambda_.11} parent=5 // pred_check
        _
      $region38: #{_lambda_.11} parent=5 // pred_check_branch
        %294 = sbr.rel (%p291) target = $region40
      $region39: #{_lambda_.11} parent=5 // pred_region
        %s295 = ssub.s32 %s12, 1
        // Predicated region
        $region41: #{_lambda_.11} parent=39 // pred_check
          %p296 = pneg %p152
        $region42: #{_lambda_.11} parent=39 // pred_check_branch
          %298 = sbr.rel (%p296) target = $region44
        $region43: #{_lambda_.11} parent=39 // pred_region
          %300 = dma.done [#allocation3], 3072
        $region44: #{_lambda_.11} parent=39 // pred_fallthru
          _
        %s301 = smul.u32 2, %s24
        %p302 = scmp.lt.s32.totalorder %s23, 1
        %s303 = scalar_select %p302, %s23, 1
        %p304 = scmp.lt.s32.totalorder %s301, 1
        %s305 = scalar_select %p304, %s301, 1
        %p306 = scmp.lt.s32.totalorder %s26, 0
        %s307 = scalar_select %p306, %s26, 0
        %s308 = sadd.s32 %s307, %s305
        %s309 = smul.addr %s303, 2
        %s310 = sadd.s32 %s308, %s309
        %s311 = smul.addr %s310, 8
        %s312 = scalar_lea.vmem %s0, %s311
        %p313 = pneg %p68
        %p314 = pneg %p65
        %p315 = scmp.lt.s32.totalorder %s23, 1
        %s316 = scalar_select %p315, %s23, 1
        %p317 = scmp.lt.s32.totalorder %s26, 0
        %s318 = scalar_select %p317, %s26, 0
        %s319 = sadd.s32 %s318, %s316
        %s320 = scalar_lea.vmem %s1, %s319
        %p321 = pneg %p96
        %p322 = pneg %p93
        %p323 = scmp.lt.s32.totalorder %s23, 1
        %s324 = scalar_select %p323, %s23, 1
        %p325 = scmp.lt.s32.totalorder %s26, 0
        %s326 = scalar_select %p325, %s26, 0
        %s327 = sadd.s32 %s326, %s324
        %s328 = scalar_lea.vmem %s2, %s327
        %p329 = pneg %p124
        %p330 = pneg %p121
        %p331 = pneg %p152
        %p332 = pneg %p149
        %s333 = smul.u32 3, %s25
        %p334 = scmp.lt.s32.totalorder %s333, 2
        %s335 = scalar_select %p334, %s333, 2
        %s336 = scalar_lea.vmem %s4, %s335
        %p337 = pneg %p178
        %p338 = pneg %p175
        %p339 = pneg %p208
        %p340 = pneg %p205
        %s341 = smul.u32 2, %s24
        %s342 = smul.u32 3, %s25
        %p343 = scmp.lt.s32.totalorder %s23, 1
        %s344 = scalar_select %p343, %s23, 1
        %p345 = scmp.lt.s32.totalorder %s341, 1
        %s346 = scalar_select %p345, %s341, 1
        %p347 = scmp.lt.s32.totalorder %s342, 2
        %s348 = scalar_select %p347, %s342, 2
        %s349 = smul.addr %s346, 3
        %s350 = sadd.s32 %s348, %s349
        %s351 = smul.addr %s344, 6
        %s352 = sadd.s32 %s350, %s351
        %s353 = smul.addr %s352, 4
        %s354 = scalar_lea.vmem %s5, %s353
        %s355 = smul.u32 2, %s24
        %p356 = scmp.lt.s32.totalorder %s23, 1
        %s357 = scalar_select %p356, %s23, 1
        %p358 = scmp.lt.s32.totalorder %s355, 1
        %s359 = scalar_select %p358, %s355, 1
        %p360 = scmp.lt.s32.totalorder %s26, 0
        %s361 = scalar_select %p360, %s26, 0
        %s362 = sadd.s32 %s361, %s359
        %s363 = smul.addr %s357, 2
        %s364 = sadd.s32 %s362, %s363
        %s365 = smul.addr %s364, 8
        %s366 = scalar_lea.vmem %s0, %s365
        %s367 = smul.u32 2, %s24
        %p368 = scmp.lt.s32.totalorder %s23, 1
        %s369 = scalar_select %p368, %s23, 1
        %p370 = scmp.lt.s32.totalorder %s26, 0
        %s371 = scalar_select %p370, %s26, 0
        %s372 = sadd.s32 %s371, %s369
        %s373 = scalar_lea.vmem %s1, %s372
        %p374 = scmp.lt.s32.totalorder %s23, 1
        %s375 = scalar_select %p374, %s23, 1
        %p376 = scmp.lt.s32.totalorder %s26, 0
        %s377 = scalar_select %p376, %s26, 0
        %s378 = sadd.s32 %s377, %s375
        %s379 = scalar_lea.vmem %s2, %s378
        %s380 = smul.u32 16, %s26
        %s381 = smul.u32 3, %s25
        %s382 = smul.u32 3, %s25
        %p383 = scmp.lt.s32.totalorder %s382, 2
        %s384 = scalar_select %p383, %s382, 2
        %s385 = scalar_lea.vmem %s4, %s384
        %s386 = smul.u32 3, %s25
        %s387 = smul.u32 2, %s24
        %s388 = smul.u32 3, %s25
        %p389 = scmp.lt.s32.totalorder %s23, 1
        %s390 = scalar_select %p389, %s23, 1
        %p391 = scmp.lt.s32.totalorder %s387, 1
        %s392 = scalar_select %p391, %s387, 1
        %p393 = scmp.lt.s32.totalorder %s388, 2
        %s394 = scalar_select %p393, %s388, 2
        %s395 = smul.addr %s392, 3
        %s396 = sadd.s32 %s394, %s395
        %s397 = smul.addr %s390, 6
        %s398 = sadd.s32 %s396, %s397
        %s399 = smul.addr %s398, 4
        %s400 = scalar_lea.vmem %s5, %s399
        %s401 = smul.u32 2, %s24
        %s402 = smul.u32 3, %s25
        %v403 = vld [vmem:[%s366] sm:$0xff]
        %v404 = vld [vmem:[%s366 + $0x8] sm:$0xff]
        %405 = vadd.xlane.f32.xlu0 %v403
        %v406 = vpop.xlane.xlu0 %405
        %407 = vadd.xlane.f32.xlu0 %v404
        %v408 = vpop.xlane.xlu0 %407
        %v409 = vrcp.pop 128.0
        %v410 = vmul.f32 128.0, %v409
        %v411 = vsub.f32 1.0, %v410
        %v412 = vmul.f32 %v409, %v411
        %v413 = vadd.f32 %v409, %v412
        %vm414 = vweird.f32 %v409
        %v415 = vsel %vm414, %v409, %v413
        %v416 = vmul.f32 %v406, %v415
        %v417 = vmul.f32 %v408, %v415
        %v418 = vsub.f32 %v403, %v416
        %v419 = vsub.f32 %v404, %v417
        %v420 = vmul.f32 %v418, %v418
        %v421 = vmul.f32 %v419, %v419
        %422 = vadd.xlane.f32.xlu0 %v420
        %v423 = vpop.xlane.xlu0 %422
        %424 = vadd.xlane.f32.xlu0 %v421
        %v425 = vpop.xlane.xlu0 %424
        %v426 = vmul.f32 %v423, 0.007874016
        %v427 = vmul.f32 %v425, 0.007874016
        %vm428 = vcmp.eq.f32.partialorder %v426, 0.0
        %vm429 = vcmp.eq.f32.partialorder %v427, 0.0
        %v430 = vrsqrt.pop %v426
        %v431 = vmul.f32 %v430, %v426
        %v432 = vmul.f32 %v431, %v430
        %v433 = vmul.f32 0.5, %v432
        %v434 = vsub.f32 1.5, %v433
        %v435 = vmul.f32 %v430, %v434
        %vm436 = vweird.f32 %v426
        %vm437 = vweird.f32 %v430
        %vm438 = vmor %vm436, %vm437
        %v439 = vsel %vm438, %v430, %v435
        %v440 = vrsqrt.pop %v427
        %v441 = vmul.f32 %v440, %v427
        %v442 = vmul.f32 %v441, %v440
        %v443 = vmul.f32 0.5, %v442
        %v444 = vsub.f32 1.5, %v443
        %v445 = vmul.f32 %v440, %v444
        %vm446 = vweird.f32 %v427
        %vm447 = vweird.f32 %v440
        %vm448 = vmor %vm446, %vm447
        %v449 = vsel %vm448, %v440, %v445
        %v450 = vsel %vm428, 1.0, %v439
        %v451 = vsel %vm429, 1.0, %v449
        %v452 = vld [vmem:[%s373] sm:$0x1]
        %v453 = vmul.f32 %v418, %v450
        %v454 = vmul.f32 %v419, %v451
        %v456 = vperm.slane %v452, 0
        %v458 = vmul.f32 %v456, %v453
        %v459 = vmul.f32 %v456, %v454
        %v460 = vld [vmem:[%s379] sm:$0x1]
        %v462 = vperm.slane %v460, 0
        %v464 = vadd.f32 %v458, %v462
        %v465 = vadd.f32 %v459, %v462
        %v466 = vpack.c.bf16 %v465, %v464
        %v467 = vld [vmem:[#allocation2] sm:$0xff]
        %v468 = vld [vmem:[#allocation2 + $0x8] sm:$0xf]
        %v469 = vld [vmem:[#allocation2 + $0xc] sm:$0xff]
        %v470 = vld [vmem:[#allocation2 + $0x14] sm:$0xf]
        %v471 = vld [vmem:[#allocation2 + $0x18] sm:$0xff]
        %v472 = vld [vmem:[#allocation2 + $0x20] sm:$0xf]
        %v473 = vld [vmem:[#allocation2 + $0x24] sm:$0xff]
        %v474 = vld [vmem:[#allocation2 + $0x2c] sm:$0xf]
        %v475 = vld [vmem:[#allocation2 + $0x30] sm:$0xff]
        %v476 = vld [vmem:[#allocation2 + $0x38] sm:$0xf]
        %v477 = vld [vmem:[#allocation2 + $0x3c] sm:$0xff]
        %v478 = vld [vmem:[#allocation2 + $0x44] sm:$0xf]
        %v479 = vld [vmem:[#allocation2 + $0x48] sm:$0xff]
        %v480 = vld [vmem:[#allocation2 + $0x50] sm:$0xf]
        %v481 = vld [vmem:[#allocation2 + $0x54] sm:$0xff]
        %v482 = vld [vmem:[#allocation2 + $0x5c] sm:$0xf]
        %v483 = vld [vmem:[#allocation2 + $0x60] sm:$0xff]
        %v484 = vld [vmem:[#allocation2 + $0x68] sm:$0xf]
        %v485 = vld [vmem:[#allocation2 + $0x6c] sm:$0xff]
        %v486 = vld [vmem:[#allocation2 + $0x74] sm:$0xf]
        %v487 = vld [vmem:[#allocation2 + $0x78] sm:$0xff]
        %v488 = vld [vmem:[#allocation2 + $0x80] sm:$0xf]
        %v489 = vld [vmem:[#allocation2 + $0x84] sm:$0xff]
        %v490 = vld [vmem:[#allocation2 + $0x8c] sm:$0xf]
        %v491 = vld [vmem:[#allocation2 + $0x90] sm:$0xff]
        %v492 = vld [vmem:[#allocation2 + $0x98] sm:$0xf]
        %v493 = vld [vmem:[#allocation2 + $0x9c] sm:$0xff]
        %v494 = vld [vmem:[#allocation2 + $0xa4] sm:$0xf]
        %v495 = vld [vmem:[#allocation2 + $0xa8] sm:$0xff]
        %v496 = vld [vmem:[#allocation2 + $0xb0] sm:$0xf]
        %v497 = vld [vmem:[#allocation2 + $0xb4] sm:$0xff]
        %v498 = vld [vmem:[#allocation2 + $0xbc] sm:$0xf]
        %v499 = vld [vmem:[%s385] sm:$0x7]
        %v501 = vperm.slane %v499, 0
        %v502 = vperm.slane %v499, 1
        %v503 = vperm.slane %v499, 2
        %v539 = vunpack.c.l.b16 %v467
        %v540 = vunpack.c.h.b16 %v467
        %v541 = vunpack.c.l.b16 %v468
        %v542 = vunpack.c.l.b16 %v469
        %v543 = vunpack.c.h.b16 %v469
        %v544 = vunpack.c.l.b16 %v470
        %v545 = vunpack.c.l.b16 %v471
        %v546 = vunpack.c.h.b16 %v471
        %v547 = vunpack.c.l.b16 %v472
        %v548 = vunpack.c.l.b16 %v473
        %v549 = vunpack.c.h.b16 %v473
        %v550 = vunpack.c.l.b16 %v474
        %v551 = vunpack.c.l.b16 %v475
        %v552 = vunpack.c.h.b16 %v475
        %v553 = vunpack.c.l.b16 %v476
        %v554 = vunpack.c.l.b16 %v477
        %v555 = vunpack.c.h.b16 %v477
        %v556 = vunpack.c.l.b16 %v478
        %v557 = vunpack.c.l.b16 %v479
        %v558 = vunpack.c.h.b16 %v479
        %v559 = vunpack.c.l.b16 %v480
        %v560 = vunpack.c.l.b16 %v481
        %v561 = vunpack.c.h.b16 %v481
        %v562 = vunpack.c.l.b16 %v482
        %v563 = vunpack.c.l.b16 %v483
        %v564 = vunpack.c.h.b16 %v483
        %v565 = vunpack.c.l.b16 %v484
        %v566 = vunpack.c.l.b16 %v485
        %v567 = vunpack.c.h.b16 %v485
        %v568 = vunpack.c.l.b16 %v486
        %v569 = vunpack.c.l.b16 %v487
        %v570 = vunpack.c.h.b16 %v487
        %v571 = vunpack.c.l.b16 %v488
        %v572 = vunpack.c.l.b16 %v489
        %v573 = vunpack.c.h.b16 %v489
        %v574 = vunpack.c.l.b16 %v490
        %v575 = vunpack.c.l.b16 %v491
        %v576 = vunpack.c.h.b16 %v491
        %v577 = vunpack.c.l.b16 %v492
        %v578 = vunpack.c.l.b16 %v493
        %v579 = vunpack.c.h.b16 %v493
        %v580 = vunpack.c.l.b16 %v494
        %v581 = vunpack.c.l.b16 %v495
        %v582 = vunpack.c.h.b16 %v495
        %v583 = vunpack.c.l.b16 %v496
        %v584 = vunpack.c.l.b16 %v497
        %v585 = vunpack.c.h.b16 %v497
        %v586 = vunpack.c.l.b16 %v498
        %v587 = vpack.c.b16 %v542, %v539
        %v588 = vpack.c.b16 %v543, %v540
        %v589 = vpack.c.b16 %v544, %v541
        %v590 = vpack.c.b16 %v548, %v545
        %v591 = vpack.c.b16 %v549, %v546
        %v592 = vpack.c.b16 %v550, %v547
        %v593 = vpack.c.b16 %v554, %v551
        %v594 = vpack.c.b16 %v555, %v552
        %v595 = vpack.c.b16 %v556, %v553
        %v596 = vpack.c.b16 %v560, %v557
        %v597 = vpack.c.b16 %v561, %v558
        %v598 = vpack.c.b16 %v562, %v559
        %v599 = vpack.c.b16 %v566, %v563
        %v600 = vpack.c.b16 %v567, %v564
        %v601 = vpack.c.b16 %v568, %v565
        %v602 = vpack.c.b16 %v572, %v569
        %v603 = vpack.c.b16 %v573, %v570
        %v604 = vpack.c.b16 %v574, %v571
        %v605 = vpack.c.b16 %v578, %v575
        %v606 = vpack.c.b16 %v579, %v576
        %v607 = vpack.c.b16 %v580, %v577
        %v608 = vpack.c.b16 %v584, %v581
        %v609 = vpack.c.b16 %v585, %v582
        %v610 = vpack.c.b16 %v586, %v583
        %635 = vmatpush.bf16.msra.mxu0 %v608
        %636 = vmatpush.bf16.msra.mxu0 %v605
        %637 = vmatpush.bf16.msra.mxu0 %v602
        %638 = vmatpush.bf16.msra.mxu0 %v599
        %639 = vmatpush.bf16.msra.mxu0 %v596
        %640 = vmatpush.bf16.msra.mxu0 %v593
        %641 = vmatpush.bf16.msra.mxu0 %v590
        %642 = vmatpush.bf16.msra.mxu0 %v587
        %643 = vmatmul.bf16.gmra.mxu0 %v466
        %v644 = vpop.f32.mrf.mxu0
        %v645 = vadd.f32 %v501, %v644
        %v646 = vpop.f32.mrf.mxu0
        %v647 = vadd.f32 %v501, %v646
        %648 = vdwg.mxu0
        %649 = vmatpush.bf16.msra.mxu0 %v609
        %650 = vmatpush.bf16.msra.mxu0 %v606
        %651 = vmatpush.bf16.msra.mxu0 %v603
        %652 = vmatpush.bf16.msra.mxu0 %v600
        %653 = vmatpush.bf16.msra.mxu0 %v597
        %654 = vmatpush.bf16.msra.mxu0 %v594
        %655 = vmatpush.bf16.msra.mxu0 %v591
        %656 = vmatpush.bf16.msra.mxu0 %v588
        %657 = vmatmul.bf16.gmra.mxu0 %v466
        %v658 = vpop.f32.mrf.mxu0
        %v659 = vadd.f32 %v502, %v658
        %v660 = vpop.f32.mrf.mxu0
        %v661 = vadd.f32 %v502, %v660
        %662 = vdwg.mxu0
        %663 = vmatpush.bf16.msra.mxu0 %v610
        %664 = vmatpush.bf16.msra.mxu0 %v607
        %665 = vmatpush.bf16.msra.mxu0 %v604
        %666 = vmatpush.bf16.msra.mxu0 %v601
        %667 = vmatpush.bf16.msra.mxu0 %v598
        %668 = vmatpush.bf16.msra.mxu0 %v595
        %669 = vmatpush.bf16.msra.mxu0 %v592
        %670 = vmatpush.bf16.msra.mxu0 %v589
        %671 = vmatmul.bf16.gmra.mxu0 %v466
        %v672 = vpop.f32.mrf.mxu0
        %v673 = vadd.f32 %v503, %v672
        %v674 = vpop.f32.mrf.mxu0
        %v675 = vadd.f32 %v503, %v674
        %676 = vdwg.mxu0
        %v677 = vpack.c.bf16 %v659, %v645
        %v678 = vpack.c.bf16 %v673, %v673
        %v679 = vpack.c.bf16 %v661, %v647
        %v680 = vpack.c.bf16 %v675, %v675
        %681 = vst [vmem:[%s400] sm:$0xff] %v677
        %682 = vst [vmem:[%s400 + $0x8] sm:$0xf] %v678
        %683 = vst [vmem:[%s400 + $0xc] sm:$0xff] %v679
        %684 = vst [vmem:[%s400 + $0x14] sm:$0xf] %v680
        %s685 = smul.u32 2, %s24
        %s686 = smul.u32 3, %s25
        %p687 = scmp.lt.s32.totalorder %s23, 1
        %s688 = scalar_select %p687, %s23, 1
        %p689 = scmp.lt.s32.totalorder %s685, 1
        %s690 = scalar_select %p689, %s685, 1
        %p691 = scmp.lt.s32.totalorder %s686, 2
        %s692 = scalar_select %p691, %s686, 2
        %s693 = smul.addr %s690, 3
        %s694 = sadd.s32 %s692, %s693
        %s695 = smul.addr %s688, 6
        %s696 = sadd.s32 %s694, %s695
        %s697 = smul.addr %s696, 4
        %s698 = scalar_lea.vmem %s5, %s697
        // Predicated region
        $region45: #{_lambda_.11} parent=39 // pred_check
          %p699 = pneg %p205
        $region46: #{_lambda_.11} parent=39 // pred_check_branch
          %701 = sbr.rel (%p699) target = $region48
        $region47: #{_lambda_.11} parent=39 // pred_region
          %s702 = smul.u32 2, %s24
          %s703 = smul.u32 3, %s25
        $region48: #{_lambda_.11} parent=39 // pred_fallthru
          _
      $region40: #{_lambda_.11} parent=5 // pred_fallthru
        _
      %p704 = scmp.le.s32.totalorder 2, %s12
      // Predicated region
      $region49: #{_lambda_.11} parent=5 // pred_check
        %p705 = pneg %p704
      $region50: #{_lambda_.11} parent=5 // pred_check_branch
        %707 = sbr.rel (%p705) target = $region52
      $region51: #{_lambda_.11} parent=5 // pred_region
        %s708 = ssub.s32 %s12, 2
        // Predicated region
        $region53: #{_lambda_.11} parent=51 // pred_check
          %p709 = pneg %p211
        $region54: #{_lambda_.11} parent=51 // pred_check_branch
          %711 = sbr.rel (%p709) target = $region56
        $region55: #{_lambda_.11} parent=51 // pred_region
          %s712 = smul.u32 2, %s28
          %s713 = smul.u32 3, %s29
          %p714 = scmp.lt.s32.totalorder %s27, 1
          %s715 = scalar_select %p714, %s27, 1
          %p716 = scmp.lt.s32.totalorder %s712, 1
          %s717 = scalar_select %p716, %s712, 1
          %p718 = scmp.lt.s32.totalorder %s713, 2
          %s719 = scalar_select %p718, %s713, 2
          %s720 = smul.addr %s717, 3
          %s721 = sadd.s32 %s719, %s720
          %s722 = smul.addr %s715, 6
          %s723 = sadd.s32 %s721, %s722
          %s724 = smul.addr %s723, 4
          %s725 = scalar_lea.vmem %s5, %s724
        $region56: #{_lambda_.11} parent=51 // pred_fallthru
          _
      $region52: #{_lambda_.11} parent=5 // pred_fallthru
        _
    $region6: #{_lambda_.11} parent=1 // loop_footer
      %s16 = sadd.s32 1, %s12
    $region7: #{_lambda_.11} parent=1 // loop_footer_branch
      %11 = sbr.rel target = $region3
    $region8: #{_lambda_.11} parent=1 // loop_exit
      _
    %726 = vsyncpa [#allocation3], 1
    %s727 = scalar_lea.sflag [#allocation3], 1
    %728 = vsyncpa %s727, 1

// kernel: _lambda_.12
$region0: #{_lambda_.12}
  #allocation0 [shape = 'u32[]', space=smem, size = 0x4, offset = 0x4, fixed_abs, tag = 'smem constant byte address 0x4 - core index']
  #allocation1 [shape = 'u32[72,128]{1,0:T(1,128)}', space=vmem, size = 0x9000, scoped, tag = 'internal scratch']
  #allocation2 [shape = 'f32[4,16,1]{2,1,0:T(8,128)}', space=vmem, size = 0x8000, scoped, tag = 'scratch operand']
  #allocation3 [shape = 'f32[4,16,1]{2,1,0:T(8,128)}', space=vmem, size = 0x8000, scoped, tag = 'scratch operand']
  #allocation4 [shape = 'f32[16,128]{1,0:T(8,128)}', space=vmem, size = 0x2000, scoped, tag = 'scratch operand']
  %s0 = inlined_call_operand.vmem [shape: bf16[2,16,384], index: 0, kind: input, shape index: {}, may-alias: {0,1,2}]
  %s1 = inlined_call_operand.vmem [shape: bf16[2,16,384], index: 1, kind: input, shape index: {}, may-alias: {0,1,2}]
  %s2 = inlined_call_operand.vmem [shape: bf16[2,16,384], index: 2, kind: input, shape index: {}, may-alias: {0,1,2}]
  %s3 = inlined_call_operand.hbm [shape: bf16[128,128], index: 3, kind: input, shape index: {}]
  %s4 = inlined_call_operand.vmem [shape: f32[1,128], index: 4, kind: input, shape index: {}]
  %s5 = inlined_call_operand.vmem [shape: f32[2,16,128], index: 5, kind: input, shape index: {}]
  %s6 = inlined_call_operand.vmem [shape: f32[2,1,128], index: 6, kind: input, shape index: {}]
  %s7 = inlined_call_operand.vmem [shape: f32[2,16,128], index: 7, kind: output, shape index: {}]
  %s8 = sld [smem:[#allocation0]]
  $region196: #{_lambda_.12} parent=0
    _
  %s10 = ssub.s32 1, %s8
  %s11 = scalar_select 0, %s10, %s8
  $region1: #{_lambda_.12} parent=0
    #allocation5 [shape = 'u8[8192]{0}', space=vmem, size = 0x2000, scoped, tag = 'input window, operand 0']
    #allocation6 [shape = 'u8[8192]{0}', space=vmem, size = 0x2000, scoped, tag = 'input window, operand 1']
    #allocation7 [shape = 'u8[8192]{0}', space=vmem, size = 0x2000, scoped, tag = 'input window, operand 2']
    #allocation8 [shape = 'u8[32768]{0}', space=vmem, size = 0x8000, scoped, tag = 'input window, operand 3, single buffered']
    #allocation9 [shape = 's32[2]{0}', space=sflag, size = 0x8, scoped, tag = 'scoped memory for _lambda_.12']
    %12 = vsyncpa [#allocation9], 0
    loop: start=0, step=1, limit=4
    $region2: #{_lambda_.12} parent=1 // loop_pre_header
      _
    $region3: #{_lambda_.12} parent=1 // loop_header
      %s14 = sphi 0, %s18
      %p15 = scmp.ge.s32.totalorder %s14, 4
      %s21 = sphi 0, %s40
      %s22 = sphi 0, %s36
      %s23 = sphi 0, %s32
      %s24 = sphi 0, %s21
      %s25 = sphi 0, %s22
      %s26 = sphi 0, %s23
      %s27 = sphi 0, %s24
      %s28 = sphi 0, %s25
      %s29 = sphi 0, %s26
      %s45 = sphi 0, %s47
      %s48 = sphi 0, %s45
      %s49 = sphi 0, %s48
      %s65 = sphi 0, %s49
      %s73 = sphi 0, %s75
      %s76 = sphi 0, %s73
      %s77 = sphi 0, %s76
      %s93 = sphi 0, %s77
      %s101 = sphi 0, %s103
      %s104 = sphi 0, %s101
      %s105 = sphi 0, %s104
      %s121 = sphi 0, %s105
      %s125 = sphi 0, %s125
      %s127 = sphi 0, %s125
      %s128 = sphi 0, %s127
      %s142 = sphi 0, %s128
      %s146 = sphi 0, %s146
      %s148 = sphi 0, %s146
      %s149 = sphi 0, %s148
      %s163 = sphi 0, %s149
      %s171 = sphi 0, %s173
      %s174 = sphi 0, %s171
      %s175 = sphi 0, %s174
      %s191 = sphi 0, %s175
      %s197 = sphi 0, %s199
      %s200 = sphi 0, %s197
      %s201 = sphi 0, %s200
      %s217 = sphi 0, %s201
      %s225 = sphi 0, %s227
      %s228 = sphi 0, %s225
      %s229 = sphi 0, %s228
      %s245 = sphi 0, %s229
    $region4: #{_lambda_.12} parent=1 // loop_header_branch
      %17 = sbr.rel (%p15) target = $region8
    $region5: #{_lambda_.12} parent=1 // loop_body
      %s19 = ssub.s32 %s14, 1
      %s20 = ssub.s32 %s14, 2
      %s30 = sadd.s32 1, %s23
      %p31 = scmp.ge.s32.totalorder %s30, 1
      %s32 = scalar_select %p31, 0, %s30
      %s33 = sadd.s32 1, %s22
      %s34 = scalar_select %p31, %s33, %s22
      %p35 = scmp.ge.s32.totalorder %s34, 1
      %s36 = scalar_select %p35, 0, %s34
      %s37 = sadd.s32 1, %s21
      %s38 = scalar_select %p35, %s37, %s21
      %p39 = scmp.ge.s32.totalorder %s38, 2
      %s40 = scalar_select %p39, 0, %s38
      %s41 = ssub.s32 %s21, %s40
      %s42 = ssub.s32 %s22, %s36
      %s43 = sor.u32 %s41, %s42
      %p44 = scmp.eq.s32.totalorder %s43, 0
      %s46 = sadd.s32 %s45, 1
      %s47 = scalar_select %p44, %s45, %s46
      %p50 = pneg %p44
      %p51 = scmp.eq.s32.totalorder %s14, 1
      %p52 = por %p50, %p51
      %p53 = scmp.ne.s32.totalorder %s45, %s48
      %p54 = scmp.eq.s32.totalorder %s14, 0
      %p55 = por %p53, %p54
      %p56 = scmp.ne.s32.totalorder %s45, %s48
      %p57 = scmp.eq.s32.totalorder %s19, 1
      %p58 = por %p56, %p57
      %p59 = scmp.ne.s32.totalorder %s48, %s49
      %p60 = scmp.eq.s32.totalorder %s19, 0
      %p61 = por %p59, %p60
      %p62 = scmp.ne.s32.totalorder %s48, %s49
      %p63 = scmp.eq.s32.totalorder %s20, 1
      %p64 = por %p62, %p63
      %p66 = scmp.ne.s32.totalorder %s49, %s65
      %p67 = scmp.eq.s32.totalorder %s20, 0
      %p68 = por %p66, %p67
      %s69 = ssub.s32 %s21, %s40
      %s70 = ssub.s32 %s23, %s32
      %s71 = sor.u32 %s69, %s70
      %p72 = scmp.eq.s32.totalorder %s71, 0
      %s74 = sadd.s32 %s73, 1
      %s75 = scalar_select %p72, %s73, %s74
      %p78 = pneg %p72
      %p79 = scmp.eq.s32.totalorder %s14, 1
      %p80 = por %p78, %p79
      %p81 = scmp.ne.s32.totalorder %s73, %s76
      %p82 = scmp.eq.s32.totalorder %s14, 0
      %p83 = por %p81, %p82
      %p84 = scmp.ne.s32.totalorder %s73, %s76
      %p85 = scmp.eq.s32.totalorder %s19, 1
      %p86 = por %p84, %p85
      %p87 = scmp.ne.s32.totalorder %s76, %s77
      %p88 = scmp.eq.s32.totalorder %s19, 0
      %p89 = por %p87, %p88
      %p90 = scmp.ne.s32.totalorder %s76, %s77
      %p91 = scmp.eq.s32.totalorder %s20, 1
      %p92 = por %p90, %p91
      %p94 = scmp.ne.s32.totalorder %s77, %s93
      %p95 = scmp.eq.s32.totalorder %s20, 0
      %p96 = por %p94, %p95
      %s97 = ssub.s32 %s21, %s40
      %s98 = ssub.s32 %s23, %s32
      %s99 = sor.u32 %s97, %s98
      %p100 = scmp.eq.s32.totalorder %s99, 0
      %s102 = sadd.s32 %s101, 1
      %s103 = scalar_select %p100, %s101, %s102
      %p106 = pneg %p100
      %p107 = scmp.eq.s32.totalorder %s14, 1
      %p108 = por %p106, %p107
      %p109 = scmp.ne.s32.totalorder %s101, %s104
      %p110 = scmp.eq.s32.totalorder %s14, 0
      %p111 = por %p109, %p110
      %p112 = scmp.ne.s32.totalorder %s101, %s104
      %p113 = scmp.eq.s32.totalorder %s19, 1
      %p114 = por %p112, %p113
      %p115 = scmp.ne.s32.totalorder %s104, %s105
      %p116 = scmp.eq.s32.totalorder %s19, 0
      %p117 = por %p115, %p116
      %p118 = scmp.ne.s32.totalorder %s104, %s105
      %p119 = scmp.eq.s32.totalorder %s20, 1
      %p120 = por %p118, %p119
      %p122 = scmp.ne.s32.totalorder %s105, %s121
      %p123 = scmp.eq.s32.totalorder %s20, 0
      %p124 = por %p122, %p123
      %s126 = sadd.s32 %s125, 1
      %p129 = scmp.eq.s32.totalorder %s14, 1
      %p130 = scmp.ne.s32.totalorder %s125, %s127
      %p131 = scmp.eq.s32.totalorder %s14, 0
      %p132 = por %p130, %p131
      %p133 = scmp.ne.s32.totalorder %s125, %s127
      %p134 = scmp.eq.s32.totalorder %s19, 1
      %p135 = por %p133, %p134
      %p136 = scmp.ne.s32.totalorder %s127, %s128
      %p137 = scmp.eq.s32.totalorder %s19, 0
      %p138 = por %p136, %p137
      %p139 = scmp.ne.s32.totalorder %s127, %s128
      %p140 = scmp.eq.s32.totalorder %s20, 1
      %p141 = por %p139, %p140
      %p143 = scmp.ne.s32.totalorder %s128, %s142
      %p144 = scmp.eq.s32.totalorder %s20, 0
      %p145 = por %p143, %p144
      %s147 = sadd.s32 %s146, 1
      %p150 = scmp.eq.s32.totalorder %s14, 1
      %p151 = scmp.ne.s32.totalorder %s146, %s148
      %p152 = scmp.eq.s32.totalorder %s14, 0
      %p153 = por %p151, %p152
      %p154 = scmp.ne.s32.totalorder %s146, %s148
      %p155 = scmp.eq.s32.totalorder %s19, 1
      %p156 = por %p154, %p155
      %p157 = scmp.ne.s32.totalorder %s148, %s149
      %p158 = scmp.eq.s32.totalorder %s19, 0
      %p159 = por %p157, %p158
      %p160 = scmp.ne.s32.totalorder %s148, %s149
      %p161 = scmp.eq.s32.totalorder %s20, 1
      %p162 = por %p160, %p161
      %p164 = scmp.ne.s32.totalorder %s149, %s163
      %p165 = scmp.eq.s32.totalorder %s20, 0
      %p166 = por %p164, %p165
      %s167 = ssub.s32 %s21, %s40
      %s168 = ssub.s32 %s22, %s36
      %s169 = sor.u32 %s167, %s168
      %p170 = scmp.eq.s32.totalorder %s169, 0
      %s172 = sadd.s32 %s171, 1
      %s173 = scalar_select %p170, %s171, %s172
      %p176 = pneg %p170
      %p177 = scmp.eq.s32.totalorder %s14, 1
      %p178 = por %p176, %p177
      %p179 = scmp.ne.s32.totalorder %s171, %s174
      %p180 = scmp.eq.s32.totalorder %s14, 0
      %p181 = por %p179, %p180
      %p182 = scmp.ne.s32.totalorder %s171, %s174
      %p183 = scmp.eq.s32.totalorder %s19, 1
      %p184 = por %p182, %p183
      %p185 = scmp.ne.s32.totalorder %s174, %s175
      %p186 = scmp.eq.s32.totalorder %s19, 0
      %p187 = por %p185, %p186
      %p188 = scmp.ne.s32.totalorder %s174, %s175
      %p189 = scmp.eq.s32.totalorder %s20, 1
      %p190 = por %p188, %p189
      %p192 = scmp.ne.s32.totalorder %s175, %s191
      %p193 = scmp.eq.s32.totalorder %s20, 0
      %p194 = por %p192, %p193
      %s195 = ssub.s32 %s21, %s40
      %p196 = scmp.eq.s32.totalorder %s195, 0
      %s198 = sadd.s32 %s197, 1
      %s199 = scalar_select %p196, %s197, %s198
      %p202 = pneg %p196
      %p203 = scmp.eq.s32.totalorder %s14, 1
      %p204 = por %p202, %p203
      %p205 = scmp.ne.s32.totalorder %s197, %s200
      %p206 = scmp.eq.s32.totalorder %s14, 0
      %p207 = por %p205, %p206
      %p208 = scmp.ne.s32.totalorder %s197, %s200
      %p209 = scmp.eq.s32.totalorder %s19, 1
      %p210 = por %p208, %p209
      %p211 = scmp.ne.s32.totalorder %s200, %s201
      %p212 = scmp.eq.s32.totalorder %s19, 0
      %p213 = por %p211, %p212
      %p214 = scmp.ne.s32.totalorder %s200, %s201
      %p215 = scmp.eq.s32.totalorder %s20, 1
      %p216 = por %p214, %p215
      %p218 = scmp.ne.s32.totalorder %s201, %s217
      %p219 = scmp.eq.s32.totalorder %s20, 0
      %p220 = por %p218, %p219
      %s221 = ssub.s32 %s21, %s40
      %s222 = ssub.s32 %s22, %s36
      %s223 = sor.u32 %s221, %s222
      %p224 = scmp.eq.s32.totalorder %s223, 0
      %s226 = sadd.s32 %s225, 1
      %s227 = scalar_select %p224, %s225, %s226
      %p230 = pneg %p224
      %p231 = scmp.eq.s32.totalorder %s14, 1
      %p232 = por %p230, %p231
      %p233 = scmp.ne.s32.totalorder %s225, %s228
      %p234 = scmp.eq.s32.totalorder %s14, 0
      %p235 = por %p233, %p234
      %p236 = scmp.ne.s32.totalorder %s225, %s228
      %p237 = scmp.eq.s32.totalorder %s19, 1
      %p238 = por %p236, %p237
      %p239 = scmp.ne.s32.totalorder %s228, %s229
      %p240 = scmp.eq.s32.totalorder %s19, 0
      %p241 = por %p239, %p240
      %p242 = scmp.ne.s32.totalorder %s228, %s229
      %p243 = scmp.eq.s32.totalorder %s20, 1
      %p244 = por %p242, %p243
      %p246 = scmp.ne.s32.totalorder %s229, %s245
      %p247 = scmp.eq.s32.totalorder %s20, 0
      %p248 = por %p246, %p247
      %p249 = scmp.le.s32.totalorder 1, %s14
      %p250 = scmp.lt.s32.totalorder %s14, 3
      %p251 = pnand %p249, %p250
      %p252 = pneg %p251
      // Predicated region
      $region9: #{_lambda_.12} parent=5 // pred_check
        _
      $region10: #{_lambda_.12} parent=5 // pred_check_branch
        %254 = sbr.rel (%p251) target = $region12
      $region11: #{_lambda_.12} parent=5 // pred_region
        %s255 = ssub.s32 %s14, 1
        // Predicated region
        $region13: #{_lambda_.12} parent=11 // pred_check
          %p256 = pneg %p138
        $region14: #{_lambda_.12} parent=11 // pred_check_branch
          %258 = sbr.rel (%p256) target = $region16
        $region15: #{_lambda_.12} parent=11 // pred_region
          %260 = vsyncadd [#allocation9], 0
          %s261 = sshll.u32 %s3, 4
          %s262 = int_to_ptr.hbm [resolvable:$true] %s261
          %s263 = sshll.u32 [#allocation8], 4
          %s264 = int_to_ptr.vmem [resolvable:$true] %s263
          %269 = dma.hbm_to_vmem [thread:$0]  %s262, 1024, %s264, [#allocation9], 64, 64, 4
        $region16: #{_lambda_.12} parent=11 // pred_fallthru
          _
        // Predicated region
        $region17: #{_lambda_.12} parent=11 // pred_check
          %p270 = pneg %p159
        $region18: #{_lambda_.12} parent=11 // pred_check_branch
          %272 = sbr.rel (%p270) target = $region20
        $region19: #{_lambda_.12} parent=11 // pred_region
          _
        $region20: #{_lambda_.12} parent=11 // pred_fallthru
          _
      $region12: #{_lambda_.12} parent=5 // pred_fallthru
        _
      %p273 = scmp.lt.s32.totalorder %s14, 2
      // Predicated region
      $region21: #{_lambda_.12} parent=5 // pred_check
        %p274 = pneg %p273
      $region22: #{_lambda_.12} parent=5 // pred_check_branch
        %276 = sbr.rel (%p274) target = $region24
      $region23: #{_lambda_.12} parent=5 // pred_region
        // Predicated region
        $region25: #{_lambda_.12} parent=23 // pred_check
          %p277 = pneg %p55
        $region26: #{_lambda_.12} parent=23 // pred_check_branch
          %279 = sbr.rel (%p277) target = $region28
        $region27: #{_lambda_.12} parent=23 // pred_region
          %s280 = sand.u32 %s45, 1
          %s281 = sand.u32 %s45, 1
          %s282 = smul.addr %s281, 8
          %s283 = scalar_lea.vmem [#allocation5], %s282
          %s284 = smul.u32 2, %s22
          %s285 = smul.addr %s284, 3
          %s286 = smul.addr %s21, 6
          %s287 = sadd.s32 %s285, %s286
          %s288 = smul.addr %s287, 4
          %s289 = scalar_lea.vmem %s0, %s288
          // Predicated region
          $region29: #{_lambda_.12} parent=27 // pred_check
            _
          $region30: #{_lambda_.12} parent=27 // pred_check_branch
            %291 = sbr.rel (0) target = $region32
          $region31: #{_lambda_.12} parent=27 // pred_region
            // Predicated region
            $region33: #{_lambda_.12} parent=31 // pred_check
              _
            $region34: #{_lambda_.12} parent=31 // pred_check_branch
              %293 = sbr.rel target = $region36
            $region35: #{_lambda_.12} parent=31 // pred_region
              // Predicated region
              $region48: #{_lambda_.12} parent=35 // pred_check
                _
              $region49: #{_lambda_.12} parent=35 // pred_check_branch
                %311 = sbr.rel (0) target = $region51
              $region50: #{_lambda_.12} parent=35 // pred_region
                loop: start=0, step=1, limit=1
                $region52: #{_lambda_.12} parent=50 // loop_pre_header
                  _
                $region53: #{_lambda_.12} parent=50 // loop_header
                  %s313 = sphi 0, %s317
                  %p314 = scmp.ge.s32.totalorder %s313, 1
                  %s318 = sphi %s289, %s289
                  %s319 = sphi %s283, %s283
                $region54: #{_lambda_.12} parent=50 // loop_header_branch
                  %316 = sbr.rel (%p314) target = $region58
                $region55: #{_lambda_.12} parent=50 // loop_body
                  _
                $region56: #{_lambda_.12} parent=50 // loop_footer
                  %s317 = sadd.s32 1, %s313
                $region57: #{_lambda_.12} parent=50 // loop_footer_branch
                  %312 = sbr.rel target = $region53
                $region58: #{_lambda_.12} parent=50 // loop_exit
                  _
                %s321 = ssub.s32 16, 1
                loop: start=0, step=1, limit=1
                $region59: #{_lambda_.12} parent=50 // loop_pre_header
                  _
                $region60: #{_lambda_.12} parent=50 // loop_header
                  %s323 = sphi 0, %s327
                  %p324 = scmp.ge.s32.totalorder %s323, 1
                  %s328 = sphi %s289, %s289
                  %s329 = sphi %s283, %s283
                $region61: #{_lambda_.12} parent=50 // loop_header_branch
                  %326 = sbr.rel (%p324) target = $region65
                $region62: #{_lambda_.12} parent=50 // loop_body
                  %v330 = vld [vmem:[%s328] sm:%s321]
                  %331 = vst [vmem:[%s329] sm:%s321] %v330
                  %v332 = vld [vmem:[%s328 + $0xc] sm:%s321]
                  %333 = vst [vmem:[%s329 + $0x4] sm:%s321] %v332
                $region63: #{_lambda_.12} parent=50 // loop_footer
                  %s327 = sadd.s32 1, %s323
                $region64: #{_lambda_.12} parent=50 // loop_footer_branch
                  %322 = sbr.rel target = $region60
                $region65: #{_lambda_.12} parent=50 // loop_exit
                  _
              $region51: #{_lambda_.12} parent=35 // pred_fallthru
                _
            $region36: #{_lambda_.12} parent=31 // pred_fallthru
              _
            // Predicated region
            $region37: #{_lambda_.12} parent=31 // pred_check
              _
            $region38: #{_lambda_.12} parent=31 // pred_check_branch
              %295 = sbr.rel (0) target = $region40
            $region39: #{_lambda_.12} parent=31 // pred_region
              %s297 = ssub.s32 16, 1
              loop: start=0, step=1, limit=1
              $region41: #{_lambda_.12} parent=39 // loop_pre_header
                _
              $region42: #{_lambda_.12} parent=39 // loop_header
                %s299 = sphi 0, %s303
                %p300 = scmp.ge.s32.totalorder %s299, 1
                %s304 = sphi %s289, %s289
                %s305 = sphi %s283, %s283
              $region43: #{_lambda_.12} parent=39 // loop_header_branch
                %302 = sbr.rel (%p300) target = $region47
              $region44: #{_lambda_.12} parent=39 // loop_body
                %v306 = vld [vmem:[%s304] sm:%s297]
                %307 = vst [vmem:[%s305] sm:%s297] %v306
                %v308 = vld [vmem:[%s304 + $0xc] sm:%s297]
                %309 = vst [vmem:[%s305 + $0x4] sm:%s297] %v308
              $region45: #{_lambda_.12} parent=39 // loop_footer
                %s303 = sadd.s32 1, %s299
              $region46: #{_lambda_.12} parent=39 // loop_footer_branch
                %298 = sbr.rel target = $region42
              $region47: #{_lambda_.12} parent=39 // loop_exit
                _
            $region40: #{_lambda_.12} parent=31 // pred_fallthru
              _
          $region32: #{_lambda_.12} parent=27 // pred_fallthru
            _
          %334 = vnop
        $region28: #{_lambda_.12} parent=23 // pred_fallthru
          _
        // Predicated region
        $region66: #{_lambda_.12} parent=23 // pred_check
          %p335 = pneg %p83
        $region67: #{_lambda_.12} parent=23 // pred_check_branch
          %337 = sbr.rel (%p335) target = $region69
        $region68: #{_lambda_.12} parent=23 // pred_region
          %s338 = sand.u32 %s73, 1
          %s339 = sand.u32 %s73, 1
          %s340 = smul.addr %s339, 8
          %s341 = scalar_lea.vmem [#allocation6], %s340
          %s342 = smul.u32 2, %s23
          %s343 = smul.addr %s342, 3
          %s344 = sadd.s32 1, %s343
          %s345 = smul.addr %s21, 6
          %s346 = sadd.s32 %s344, %s345
          %s347 = smul.addr %s346, 4
          %s348 = scalar_lea.vmem %s1, %s347
          // Predicated region
          $region70: #{_lambda_.12} parent=68 // pred_check
            _
          $region71: #{_lambda_.12} parent=68 // pred_check_branch
            %350 = sbr.rel (0) target = $region73
          $region72: #{_lambda_.12} parent=68 // pred_region
            // Predicated region
            $region74: #{_lambda_.12} parent=72 // pred_check
              _
            $region75: #{_lambda_.12} parent=72 // pred_check_branch
              %352 = sbr.rel target = $region77
            $region76: #{_lambda_.12} parent=72 // pred_region
              // Predicated region
              $region89: #{_lambda_.12} parent=76 // pred_check
                _
              $region90: #{_lambda_.12} parent=76 // pred_check_branch
                %370 = sbr.rel (0) target = $region92
              $region91: #{_lambda_.12} parent=76 // pred_region
                loop: start=0, step=1, limit=1
                $region93: #{_lambda_.12} parent=91 // loop_pre_header
                  _
                $region94: #{_lambda_.12} parent=91 // loop_header
                  %s372 = sphi 0, %s376
                  %p373 = scmp.ge.s32.totalorder %s372, 1
                  %s377 = sphi %s348, %s348
                  %s378 = sphi %s341, %s341
                $region95: #{_lambda_.12} parent=91 // loop_header_branch
                  %375 = sbr.rel (%p373) target = $region99
                $region96: #{_lambda_.12} parent=91 // loop_body
                  _
                $region97: #{_lambda_.12} parent=91 // loop_footer
                  %s376 = sadd.s32 1, %s372
                $region98: #{_lambda_.12} parent=91 // loop_footer_branch
                  %371 = sbr.rel target = $region94
                $region99: #{_lambda_.12} parent=91 // loop_exit
                  _
                %s380 = ssub.s32 16, 1
                loop: start=0, step=1, limit=1
                $region100: #{_lambda_.12} parent=91 // loop_pre_header
                  _
                $region101: #{_lambda_.12} parent=91 // loop_header
                  %s382 = sphi 0, %s386
                  %p383 = scmp.ge.s32.totalorder %s382, 1
                  %s387 = sphi %s348, %s348
                  %s388 = sphi %s341, %s341
                $region102: #{_lambda_.12} parent=91 // loop_header_branch
                  %385 = sbr.rel (%p383) target = $region106
                $region103: #{_lambda_.12} parent=91 // loop_body
                  %v389 = vld [vmem:[%s387] sm:%s380]
                  %390 = vst [vmem:[%s388] sm:%s380] %v389
                  %v391 = vld [vmem:[%s387 + $0xc] sm:%s380]
                  %392 = vst [vmem:[%s388 + $0x4] sm:%s380] %v391
                $region104: #{_lambda_.12} parent=91 // loop_footer
                  %s386 = sadd.s32 1, %s382
                $region105: #{_lambda_.12} parent=91 // loop_footer_branch
                  %381 = sbr.rel target = $region101
                $region106: #{_lambda_.12} parent=91 // loop_exit
                  _
              $region92: #{_lambda_.12} parent=76 // pred_fallthru
                _
            $region77: #{_lambda_.12} parent=72 // pred_fallthru
              _
            // Predicated region
            $region78: #{_lambda_.12} parent=72 // pred_check
              _
            $region79: #{_lambda_.12} parent=72 // pred_check_branch
              %354 = sbr.rel (0) target = $region81
            $region80: #{_lambda_.12} parent=72 // pred_region
              %s356 = ssub.s32 16, 1
              loop: start=0, step=1, limit=1
              $region82: #{_lambda_.12} parent=80 // loop_pre_header
                _
              $region83: #{_lambda_.12} parent=80 // loop_header
                %s358 = sphi 0, %s362
                %p359 = scmp.ge.s32.totalorder %s358, 1
                %s363 = sphi %s348, %s348
                %s364 = sphi %s341, %s341
              $region84: #{_lambda_.12} parent=80 // loop_header_branch
                %361 = sbr.rel (%p359) target = $region88
              $region85: #{_lambda_.12} parent=80 // loop_body
                %v365 = vld [vmem:[%s363] sm:%s356]
                %366 = vst [vmem:[%s364] sm:%s356] %v365
                %v367 = vld [vmem:[%s363 + $0xc] sm:%s356]
                %368 = vst [vmem:[%s364 + $0x4] sm:%s356] %v367
              $region86: #{_lambda_.12} parent=80 // loop_footer
                %s362 = sadd.s32 1, %s358
              $region87: #{_lambda_.12} parent=80 // loop_footer_branch
                %357 = sbr.rel target = $region83
              $region88: #{_lambda_.12} parent=80 // loop_exit
                _
            $region81: #{_lambda_.12} parent=72 // pred_fallthru
              _
          $region73: #{_lambda_.12} parent=68 // pred_fallthru
            _
          %393 = vnop
        $region69: #{_lambda_.12} parent=23 // pred_fallthru
          _
        // Predicated region
        $region107: #{_lambda_.12} parent=23 // pred_check
          %p394 = pneg %p111
        $region108: #{_lambda_.12} parent=23 // pred_check_branch
          %396 = sbr.rel (%p394) target = $region110
        $region109: #{_lambda_.12} parent=23 // pred_region
          %s397 = sand.u32 %s101, 1
          %s398 = sand.u32 %s101, 1
          %s399 = smul.addr %s398, 8
          %s400 = scalar_lea.vmem [#allocation7], %s399
          %s401 = smul.u32 2, %s23
          %s402 = smul.addr %s401, 3
          %s403 = sadd.s32 2, %s402
          %s404 = smul.addr %s21, 6
          %s405 = sadd.s32 %s403, %s404
          %s406 = smul.addr %s405, 4
          %s407 = scalar_lea.vmem %s2, %s406
          // Predicated region
          $region111: #{_lambda_.12} parent=109 // pred_check
            _
          $region112: #{_lambda_.12} parent=109 // pred_check_branch
            %409 = sbr.rel (0) target = $region114
          $region113: #{_lambda_.12} parent=109 // pred_region
            // Predicated region
            $region115: #{_lambda_.12} parent=113 // pred_check
              _
            $region116: #{_lambda_.12} parent=113 // pred_check_branch
              %411 = sbr.rel target = $region118
            $region117: #{_lambda_.12} parent=113 // pred_region
              // Predicated region
              $region130: #{_lambda_.12} parent=117 // pred_check
                _
              $region131: #{_lambda_.12} parent=117 // pred_check_branch
                %429 = sbr.rel (0) target = $region133
              $region132: #{_lambda_.12} parent=117 // pred_region
                loop: start=0, step=1, limit=1
                $region134: #{_lambda_.12} parent=132 // loop_pre_header
                  _
                $region135: #{_lambda_.12} parent=132 // loop_header
                  %s431 = sphi 0, %s435
                  %p432 = scmp.ge.s32.totalorder %s431, 1
                  %s436 = sphi %s407, %s407
                  %s437 = sphi %s400, %s400
                $region136: #{_lambda_.12} parent=132 // loop_header_branch
                  %434 = sbr.rel (%p432) target = $region140
                $region137: #{_lambda_.12} parent=132 // loop_body
                  _
                $region138: #{_lambda_.12} parent=132 // loop_footer
                  %s435 = sadd.s32 1, %s431
                $region139: #{_lambda_.12} parent=132 // loop_footer_branch
                  %430 = sbr.rel target = $region135
                $region140: #{_lambda_.12} parent=132 // loop_exit
                  _
                %s439 = ssub.s32 16, 1
                loop: start=0, step=1, limit=1
                $region141: #{_lambda_.12} parent=132 // loop_pre_header
                  _
                $region142: #{_lambda_.12} parent=132 // loop_header
                  %s441 = sphi 0, %s445
                  %p442 = scmp.ge.s32.totalorder %s441, 1
                  %s446 = sphi %s407, %s407
                  %s447 = sphi %s400, %s400
                $region143: #{_lambda_.12} parent=132 // loop_header_branch
                  %444 = sbr.rel (%p442) target = $region147
                $region144: #{_lambda_.12} parent=132 // loop_body
                  %v448 = vld [vmem:[%s446] sm:%s439]
                  %449 = vst [vmem:[%s447] sm:%s439] %v448
                  %v450 = vld [vmem:[%s446 + $0xc] sm:%s439]
                  %451 = vst [vmem:[%s447 + $0x4] sm:%s439] %v450
                $region145: #{_lambda_.12} parent=132 // loop_footer
                  %s445 = sadd.s32 1, %s441
                $region146: #{_lambda_.12} parent=132 // loop_footer_branch
                  %440 = sbr.rel target = $region142
                $region147: #{_lambda_.12} parent=132 // loop_exit
                  _
              $region133: #{_lambda_.12} parent=117 // pred_fallthru
                _
            $region118: #{_lambda_.12} parent=113 // pred_fallthru
              _
            // Predicated region
            $region119: #{_lambda_.12} parent=113 // pred_check
              _
            $region120: #{_lambda_.12} parent=113 // pred_check_branch
              %413 = sbr.rel (0) target = $region122
            $region121: #{_lambda_.12} parent=113 // pred_region
              %s415 = ssub.s32 16, 1
              loop: start=0, step=1, limit=1
              $region123: #{_lambda_.12} parent=121 // loop_pre_header
                _
              $region124: #{_lambda_.12} parent=121 // loop_header
                %s417 = sphi 0, %s421
                %p418 = scmp.ge.s32.totalorder %s417, 1
                %s422 = sphi %s407, %s407
                %s423 = sphi %s400, %s400
              $region125: #{_lambda_.12} parent=121 // loop_header_branch
                %420 = sbr.rel (%p418) target = $region129
              $region126: #{_lambda_.12} parent=121 // loop_body
                %v424 = vld [vmem:[%s422] sm:%s415]
                %425 = vst [vmem:[%s423] sm:%s415] %v424
                %v426 = vld [vmem:[%s422 + $0xc] sm:%s415]
                %427 = vst [vmem:[%s423 + $0x4] sm:%s415] %v426
              $region127: #{_lambda_.12} parent=121 // loop_footer
                %s421 = sadd.s32 1, %s417
              $region128: #{_lambda_.12} parent=121 // loop_footer_branch
                %416 = sbr.rel target = $region124
              $region129: #{_lambda_.12} parent=121 // loop_exit
                _
            $region122: #{_lambda_.12} parent=113 // pred_fallthru
              _
          $region114: #{_lambda_.12} parent=109 // pred_fallthru
            _
          %452 = vnop
        $region110: #{_lambda_.12} parent=23 // pred_fallthru
          _
        // Predicated region
        $region148: #{_lambda_.12} parent=23 // pred_check
          %p453 = pneg %p181
        $region149: #{_lambda_.12} parent=23 // pred_check_branch
          %455 = sbr.rel (%p453) target = $region151
        $region150: #{_lambda_.12} parent=23 // pred_region
          %s456 = smul.u32 2, %s22
          %p457 = scmp.lt.s32.totalorder %s21, 1
          %s458 = scalar_select %p457, %s21, 1
          %p459 = scmp.lt.s32.totalorder %s456, 1
          %s460 = scalar_select %p459, %s456, 1
          %s461 = smul.addr %s458, 2
          %s462 = sadd.s32 %s460, %s461
          %s463 = smul.addr %s462, 8
          %s464 = scalar_lea.vmem %s5, %s463
          %s465 = smul.u32 2, %s22
        $region151: #{_lambda_.12} parent=23 // pred_fallthru
          _
        // Predicated region
        $region152: #{_lambda_.12} parent=23 // pred_check
          %p466 = pneg %p207
        $region153: #{_lambda_.12} parent=23 // pred_check_branch
          %468 = sbr.rel (%p466) target = $region155
        $region154: #{_lambda_.12} parent=23 // pred_region
          %p469 = scmp.lt.s32.totalorder %s21, 1
          %s470 = scalar_select %p469, %s21, 1
          %s471 = scalar_lea.vmem %s6, %s470
        $region155: #{_lambda_.12} parent=23 // pred_fallthru
          _
      $region24: #{_lambda_.12} parent=5 // pred_fallthru
        _
      %p472 = scmp.le.s32.totalorder 1, %s14
      %p473 = scmp.lt.s32.totalorder %s14, 3
      %p474 = pnand %p472, %p473
      %p475 = pneg %p474
      // Predicated region
      $region156: #{_lambda_.12} parent=5 // pred_check
        _
      $region157: #{_lambda_.12} parent=5 // pred_check_branch
        %477 = sbr.rel (%p474) target = $region159
      $region158: #{_lambda_.12} parent=5 // pred_region
        %s478 = ssub.s32 %s14, 1
        %s479 = sand.u32 %s48, 1
        %s480 = sand.u32 %s48, 1
        %s481 = smul.addr %s480, 8
        %s482 = scalar_lea.vmem [#allocation5], %s481
        // Predicated region
        $region160: #{_lambda_.12} parent=158 // pred_check
          %p483 = pneg %p61
        $region161: #{_lambda_.12} parent=158 // pred_check_branch
          %485 = sbr.rel (%p483) target = $region163
        $region162: #{_lambda_.12} parent=158 // pred_region
          _
        $region163: #{_lambda_.12} parent=158 // pred_fallthru
          _
        %s486 = sand.u32 %s76, 1
        %s487 = sand.u32 %s76, 1
        %s488 = smul.addr %s487, 8
        %s489 = scalar_lea.vmem [#allocation6], %s488
        // Predicated region
        $region164: #{_lambda_.12} parent=158 // pred_check
          %p490 = pneg %p89
        $region165: #{_lambda_.12} parent=158 // pred_check_branch
          %492 = sbr.rel (%p490) target = $region167
        $region166: #{_lambda_.12} parent=158 // pred_region
          _
        $region167: #{_lambda_.12} parent=158 // pred_fallthru
          _
        %s493 = sand.u32 %s104, 1
        %s494 = sand.u32 %s104, 1
        %s495 = smul.addr %s494, 8
        %s496 = scalar_lea.vmem [#allocation7], %s495
        // Predicated region
        $region168: #{_lambda_.12} parent=158 // pred_check
          %p497 = pneg %p117
        $region169: #{_lambda_.12} parent=158 // pred_check_branch
          %499 = sbr.rel (%p497) target = $region171
        $region170: #{_lambda_.12} parent=158 // pred_region
          _
        $region171: #{_lambda_.12} parent=158 // pred_fallthru
          _
        // Predicated region
        $region172: #{_lambda_.12} parent=158 // pred_check
          %p500 = pneg %p138
        $region173: #{_lambda_.12} parent=158 // pred_check_branch
          %502 = sbr.rel (%p500) target = $region175
        $region174: #{_lambda_.12} parent=158 // pred_region
          %504 = dma.done [#allocation9], 1024
        $region175: #{_lambda_.12} parent=158 // pred_fallthru
          _
        %s505 = sand.u32 %s48, 1
        %s506 = sand.u32 %s48, 1
        %s507 = smul.addr %s506, 8
        %s508 = scalar_lea.vmem [#allocation5], %s507
        %p509 = pneg %p61
        %p510 = pneg %p58
        %s511 = sand.u32 %s76, 1
        %s512 = sand.u32 %s76, 1
        %s513 = smul.addr %s512, 8
        %s514 = scalar_lea.vmem [#allocation6], %s513
        %p515 = pneg %p89
        %p516 = pneg %p86
        %s517 = sand.u32 %s104, 1
        %s518 = sand.u32 %s104, 1
        %s519 = smul.addr %s518, 8
        %s520 = scalar_lea.vmem [#allocation7], %s519
        %p521 = pneg %p117
        %p522 = pneg %p114
        %p523 = pneg %p138
        %p524 = pneg %p135
        %p525 = pneg %p159
        %p526 = pneg %p156
        %s527 = smul.u32 2, %s25
        %p528 = scmp.lt.s32.totalorder %s24, 1
        %s529 = scalar_select %p528, %s24, 1
        %p530 = scmp.lt.s32.totalorder %s527, 1
        %s531 = scalar_select %p530, %s527, 1
        %s532 = smul.addr %s529, 2
        %s533 = sadd.s32 %s531, %s532
        %s534 = smul.addr %s533, 8
        %s535 = scalar_lea.vmem %s5, %s534
        %p536 = pneg %p187
        %p537 = pneg %p184
        %p538 = scmp.lt.s32.totalorder %s24, 1
        %s539 = scalar_select %p538, %s24, 1
        %s540 = scalar_lea.vmem %s6, %s539
        %p541 = pneg %p213
        %p542 = pneg %p210
        %p543 = pneg %p241
        %p544 = pneg %p238
        %s545 = smul.u32 2, %s25
        %p546 = scmp.lt.s32.totalorder %s24, 1
        %s547 = scalar_select %p546, %s24, 1
        %p548 = scmp.lt.s32.totalorder %s545, 1
        %s549 = scalar_select %p548, %s545, 1
        %s550 = smul.addr %s547, 2
        %s551 = sadd.s32 %s549, %s550
        %s552 = smul.addr %s551, 8
        %s553 = scalar_lea.vmem %s7, %s552
        %s554 = smul.u32 2, %s25
        %s555 = smul.u32 2, %s26
        %s556 = smul.u32 2, %s26
        %s557 = smul.u32 2, %s25
        %p558 = scmp.lt.s32.totalorder %s24, 1
        %s559 = scalar_select %p558, %s24, 1
        %p560 = scmp.lt.s32.totalorder %s557, 1
        %s561 = scalar_select %p560, %s557, 1
        %s562 = smul.addr %s559, 2
        %s563 = sadd.s32 %s561, %s562
        %s564 = smul.addr %s563, 8
        %s565 = scalar_lea.vmem %s5, %s564
        %s566 = smul.u32 2, %s25
        %p567 = scmp.lt.s32.totalorder %s24, 1
        %s568 = scalar_select %p567, %s24, 1
        %s569 = scalar_lea.vmem %s6, %s568
        %s570 = smul.u32 2, %s25
        %p571 = scmp.lt.s32.totalorder %s24, 1
        %s572 = scalar_select %p571, %s24, 1
        %p573 = scmp.lt.s32.totalorder %s570, 1
        %s574 = scalar_select %p573, %s570, 1
        %s575 = smul.addr %s572, 2
        %s576 = sadd.s32 %s574, %s575
        %s577 = smul.addr %s576, 8
        %s578 = scalar_lea.vmem %s7, %s577
        %s579 = smul.u32 2, %s25
        %p581 = scmp.eq.s32.totalorder %s26, 0
        // Predicated region
        $region176: #{_lambda_.12} parent=158 // pred_check
          %p582 = pneg %p581
        $region177: #{_lambda_.12} parent=158 // pred_check_branch
          %584 = sbr.rel (%p582) target = $region179
        $region178: #{_lambda_.12} parent=158 // pred_region
          %vm585 = vcmask 7168
          %586 = vst.msk [vmem:[#allocation2] sm:$0xff] %vm585, -inf
          %587 = vst.msk [vmem:[#allocation2 + $0x8] sm:$0xff] %vm585, -inf
          %588 = vst.msk [vmem:[#allocation2 + $0x10] sm:$0xff] %vm585, -inf
          %589 = vst.msk [vmem:[#allocation2 + $0x18] sm:$0xff] %vm585, -inf
          %590 = vst.msk [vmem:[#allocation2 + $0x20] sm:$0xff] %vm585, -inf
          %591 = vst.msk [vmem:[#allocation2 + $0x28] sm:$0xff] %vm585, -inf
          %592 = vst.msk [vmem:[#allocation2 + $0x30] sm:$0xff] %vm585, -inf
          %593 = vst.msk [vmem:[#allocation2 + $0x38] sm:$0xff] %vm585, -inf
          %594 = vst.msk [vmem:[#allocation3] sm:$0xff] %vm585, 0.0
          %595 = vst.msk [vmem:[#allocation3 + $0x8] sm:$0xff] %vm585, 0.0
          %596 = vst.msk [vmem:[#allocation3 + $0x10] sm:$0xff] %vm585, 0.0
          %597 = vst.msk [vmem:[#allocation3 + $0x18] sm:$0xff] %vm585, 0.0
          %598 = vst.msk [vmem:[#allocation3 + $0x20] sm:$0xff] %vm585, 0.0
          %599 = vst.msk [vmem:[#allocation3 + $0x28] sm:$0xff] %vm585, 0.0
          %600 = vst.msk [vmem:[#allocation3 + $0x30] sm:$0xff] %vm585, 0.0
          %601 = vst.msk [vmem:[#allocation3 + $0x38] sm:$0xff] %vm585, 0.0
          %602 = vst [vmem:[#allocation4] sm:$0xff] 0.0
          %603 = vst [vmem:[#allocation4 + $0x8] sm:$0xff] 0.0
        $region179: #{_lambda_.12} parent=158 // pred_fallthru
          _
        %v604 = vld [vmem:[%s482] sm:$0xf]
        %v605 = vld [vmem:[%s482 + $0x4] sm:$0xf]
        %v606 = vunpack.c.l.bf16 %v604
        %v607 = vunpack.c.l.bf16 %v605
        %v608 = vmul.f32 %v606, 0.17677669
        %v609 = vmul.f32 %v607, 0.17677669
        %v610 = vpack.c.bf16 %v608, %v608
        %v611 = vpack.c.bf16 %v609, %v609
        %v612 = vld [vmem:[%s489] sm:$0xf]
        %v613 = vld [vmem:[%s489 + $0x4] sm:$0xf]
        %v614 = vld [vmem:[%s496] sm:$0xf]
        %v615 = vld [vmem:[%s496 + $0x4] sm:$0xf]
        %v618 = vunpack.c.l.b16 %v610
        %v619 = vunpack.c.l.b16 %v611
        %v620 = vpack.c.b16 %v619, %v618
        %v623 = vunpack.c.l.b16 %v612
        %v624 = vunpack.c.l.b16 %v613
        %v625 = vpack.c.b16 %v624, %v623
        %vm626 = vcmask 261120
        %v628 = vsel %vm626, %v620, 0
        %v631 = vsel %vm626, %v625, 0
        %633 = vmatpush.bf16.xpose.msra.mxu0 0
        %634 = vmatpush.bf16.xpose.msra.mxu0 0
        %635 = vmatpush.bf16.xpose.msra.mxu0 0
        %636 = vmatpush.bf16.xpose.msra.mxu0 0
        %637 = vmatpush.bf16.xpose.msra.mxu0 0
        %638 = vmatpush.bf16.xpose.msra.mxu0 0
        %639 = vmatpush.bf16.xpose.msra.mxu0 0
        %640 = vmatpush.bf16.xpose.msra.mxu0 %v631
        %641 = vmatmul.bf16.gmra.mxu0 %v628
        %v642 = vpop.f32.mrf.mxu0
        %v643 = vadd.f32 0.0, %v642
        %v644 = vpop.f32.mrf.mxu0
        %v645 = vadd.f32 0.0, %v644
        %646 = vdwg.mxu0
        %v647 = vld [vmem:[#allocation2] sm:$0xff]
        %v648 = vld [vmem:[#allocation2 + $0x8] sm:$0xff]
        %vm649 = vcmask 130048
        %v650 = vsel %vm649, %v643, -inf
        %651 = vmax.xlane.f32.xlu0 %v650
        %v652 = vpop.xlane.xlu0 %651
        %v653 = vsel %vm649, %v645, -inf
        %654 = vmax.xlane.f32.xlu0 %v653
        %v655 = vpop.xlane.xlu0 %654
        %v656 = vmax.f32 %v647, %v652
        %v657 = vmax.f32 %v648, %v655
        %v658 = vsub.f32 %v647, %v656
        %v659 = vsub.f32 %v648, %v657
        %v660 = vmul.f32 %v658, 1.442695
        %v661 = vpow.pop %v660
        %v662 = vmul.f32 %v659, 1.442695
        %v663 = vpow.pop %v662
        %665 = vset.pattern.permute.xlu0 0
        %666 = vperm.xlu0 %665, %v656
        %v667 = vpop.permute.xlu0 %666
        %670 = vset.pattern.permute.xlu0 0
        %671 = vperm.xlu0 %670, %v657
        %v672 = vpop.permute.xlu0 %671
        %v674 = vsub.f32 %v643, %v667
        %v675 = vsub.f32 %v645, %v672
        %v676 = vmul.f32 %v674, 1.442695
        %v677 = vpow.pop %v676
        %v678 = vmul.f32 %v675, 1.442695
        %v679 = vpow.pop %v678
        %v680 = vld [vmem:[#allocation3] sm:$0xff]
        %v681 = vld [vmem:[#allocation3 + $0x8] sm:$0xff]
        %v682 = vmul.f32 %v661, %v680
        %v683 = vmul.f32 %v663, %v681
        %v684 = vsel %vm649, %v677, 0.0
        %685 = vadd.xlane.f32.xlu0 %v684
        %v686 = vpop.xlane.xlu0 %685
        %v687 = vsel %vm649, %v679, 0.0
        %688 = vadd.xlane.f32.xlu0 %v687
        %v689 = vpop.xlane.xlu0 %688
        %v690 = vadd.f32 %v682, %v686
        %v691 = vadd.f32 %v683, %v689
        %vm692 = vcmask 7168
        %693 = vst.msk [vmem:[#allocation3] sm:$0xff] %vm692, %v690
        %694 = vst.msk [vmem:[#allocation3 + $0x8] sm:$0xff] %vm692, %v691
        %v695 = vld [vmem:[#allocation4] sm:$0xff]
        %v696 = vld [vmem:[#allocation4 + $0x8] sm:$0xff]
        %698 = vset.pattern.permute.xlu0 0
        %699 = vperm.xlu0 %698, %v661
        %v700 = vpop.permute.xlu0 %699
        %703 = vset.pattern.permute.xlu0 0
        %704 = vperm.xlu0 %703, %v663
        %v705 = vpop.permute.xlu0 %704
        %v707 = vmul.f32 %v700, %v695
        %v708 = vmul.f32 %v705, %v696
        %v709 = vpack.c.bf16 %v679, %v677
        %v712 = vunpack.c.l.b16 %v614
        %v713 = vunpack.c.l.b16 %v615
        %v714 = vpack.c.b16 %v713, %v712
        %v717 = vsel %vm649, %v709, 0
        %719 = vmatpush.bf16.msra.mxu0 0
        %720 = vmatpush.bf16.msra.mxu0 0
        %721 = vmatpush.bf16.msra.mxu0 0
        %722 = vmatpush.bf16.msra.mxu0 0
        %723 = vmatpush.bf16.msra.mxu0 0
        %724 = vmatpush.bf16.msra.mxu0 0
        %725 = vmatpush.bf16.msra.mxu0 0
        %726 = vmatpush.bf16.msra.mxu0 %v714
        %727 = vmatmul.bf16.gmra.mxu0 %v717
        %v728 = vpop.f32.mrf.mxu0
        %v729 = vadd.f32 0.0, %v728
        %v730 = vpop.f32.mrf.mxu0
        %v731 = vadd.f32 0.0, %v730
        %732 = vdwg.mxu0
        %v733 = vadd.f32 %v707, %v729
        %v734 = vadd.f32 %v708, %v731
        %735 = vst.msk [vmem:[#allocation4] sm:$0xff] %vm626, %v733
        %736 = vst.msk [vmem:[#allocation4 + $0x8] sm:$0xff] %vm626, %v734
        %737 = vst.msk [vmem:[#allocation2] sm:$0xff] %vm692, %v656
        %738 = vst.msk [vmem:[#allocation2 + $0x8] sm:$0xff] %vm692, %v657
        %739 = vrot.lane.b32.xlu0 %v620, 96
        %v740 = vpop.permute.xlu0 %739
        %741 = vrot.lane.b32.xlu0 %v625, 96
        %v742 = vpop.permute.xlu0 %741
        %v744 = vsel %vm626, %v740, 0
        %v747 = vsel %vm626, %v742, 0
        %749 = vmatpush.bf16.xpose.msra.mxu0 0
        %750 = vmatpush.bf16.xpose.msra.mxu0 0
        %751 = vmatpush.bf16.xpose.msra.mxu0 0
        %752 = vmatpush.bf16.xpose.msra.mxu0 0
        %753 = vmatpush.bf16.xpose.msra.mxu0 0
        %754 = vmatpush.bf16.xpose.msra.mxu0 0
        %755 = vmatpush.bf16.xpose.msra.mxu0 0
        %756 = vmatpush.bf16.xpose.msra.mxu0 %v747
        %757 = vmatmul.bf16.gmra.mxu0 %v744
        %v758 = vpop.f32.mrf.mxu0
        %v759 = vadd.f32 0.0, %v758
        %v760 = vpop.f32.mrf.mxu0
        %v761 = vadd.f32 0.0, %v760
        %762 = vdwg.mxu0
        %s763 = scalar_lea.vmem [#allocation2], 16
        %v764 = vld [vmem:[%s763] sm:$0xff]
        %v765 = vld [vmem:[%s763 + $0x8] sm:$0xff]
        %v766 = vsel %vm649, %v759, -inf
        %767 = vmax.xlane.f32.xlu0 %v766
        %v768 = vpop.xlane.xlu0 %767
        %v769 = vsel %vm649, %v761, -inf
        %770 = vmax.xlane.f32.xlu0 %v769
        %v771 = vpop.xlane.xlu0 %770
        %v772 = vmax.f32 %v764, %v768
        %v773 = vmax.f32 %v765, %v771
        %v774 = vsub.f32 %v764, %v772
        %v775 = vsub.f32 %v765, %v773
        %v776 = vmul.f32 %v774, 1.442695
        %v777 = vpow.pop %v776
        %v778 = vmul.f32 %v775, 1.442695
        %v779 = vpow.pop %v778
        %781 = vset.pattern.permute.xlu0 0
        %782 = vperm.xlu0 %781, %v772
        %v783 = vpop.permute.xlu0 %782
        %786 = vset.pattern.permute.xlu0 0
        %787 = vperm.xlu0 %786, %v773
        %v788 = vpop.permute.xlu0 %787
        %v790 = vsub.f32 %v759, %v783
        %v791 = vsub.f32 %v761, %v788
        %v792 = vmul.f32 %v790, 1.442695
        %v793 = vpow.pop %v792
        %v794 = vmul.f32 %v791, 1.442695
        %v795 = vpow.pop %v794
        %s796 = scalar_lea.vmem [#allocation3], 16
        %v797 = vld [vmem:[%s796] sm:$0xff]
        %v798 = vld [vmem:[%s796 + $0x8] sm:$0xff]
        %v799 = vmul.f32 %v777, %v797
        %v800 = vmul.f32 %v779, %v798
        %v801 = vsel %vm649, %v793, 0.0
        %802 = vadd.xlane.f32.xlu0 %v801
        %v803 = vpop.xlane.xlu0 %802
        %v804 = vsel %vm649, %v795, 0.0
        %805 = vadd.xlane.f32.xlu0 %v804
        %v806 = vpop.xlane.xlu0 %805
        %v807 = vadd.f32 %v799, %v803
        %v808 = vadd.f32 %v800, %v806
        %809 = vst.msk [vmem:[%s796] sm:$0xff] %vm692, %v807
        %810 = vst.msk [vmem:[%s796 + $0x8] sm:$0xff] %vm692, %v808
        %v811 = vld [vmem:[#allocation4] sm:$0xff]
        %v812 = vld [vmem:[#allocation4 + $0x8] sm:$0xff]
        %814 = vset.pattern.permute.xlu0 0
        %815 = vperm.xlu0 %814, %v777
        %v816 = vpop.permute.xlu0 %815
        %819 = vset.pattern.permute.xlu0 0
        %820 = vperm.xlu0 %819, %v779
        %v821 = vpop.permute.xlu0 %820
        %v823 = vmul.f32 %v816, %v811
        %v824 = vmul.f32 %v821, %v812
        %v825 = vpack.c.bf16 %v795, %v793
        %826 = vrot.lane.b32.xlu0 %v714, 96
        %v827 = vpop.permute.xlu0 %826
        %v830 = vsel %vm649, %v825, 0
        %832 = vmatpush.bf16.msra.mxu0 0
        %833 = vmatpush.bf16.msra.mxu0 0
        %834 = vmatpush.bf16.msra.mxu0 0
        %835 = vmatpush.bf16.msra.mxu0 0
        %836 = vmatpush.bf16.msra.mxu0 0
        %837 = vmatpush.bf16.msra.mxu0 0
        %838 = vmatpush.bf16.msra.mxu0 0
        %839 = vmatpush.bf16.msra.mxu0 %v827
        %840 = vmatmul.bf16.gmra.mxu0 %v830
        %v841 = vpop.f32.mrf.mxu0
        %v842 = vadd.f32 0.0, %v841
        %v843 = vpop.f32.mrf.mxu0
        %v844 = vadd.f32 0.0, %v843
        %845 = vdwg.mxu0
        %848 = vrot.lane.b32.xlu0 %v842, 32
        %v849 = vpop.permute.xlu0 %848
        %850 = vrot.lane.b32.xlu0 %v844, 32
        %v851 = vpop.permute.xlu0 %850
        %v854 = vadd.f32 %v823, %v849
        %v855 = vadd.f32 %v824, %v851
        %vm856 = vcmask 523520
        %857 = vst.msk [vmem:[#allocation4] sm:$0xff] %vm856, %v854
        %858 = vst.msk [vmem:[#allocation4 + $0x8] sm:$0xff] %vm856, %v855
        %859 = vst.msk [vmem:[%s763] sm:$0xff] %vm692, %v772
        %860 = vst.msk [vmem:[%s763 + $0x8] sm:$0xff] %vm692, %v773
        %861 = vrot.lane.b32.xlu0 %v620, 64
        %v862 = vpop.permute.xlu0 %861
        %863 = vrot.lane.b32.xlu0 %v625, 64
        %v864 = vpop.permute.xlu0 %863
        %v866 = vsel %vm626, %v862, 0
        %v869 = vsel %vm626, %v864, 0
        %871 = vmatpush.bf16.xpose.msra.mxu0 0
        %872 = vmatpush.bf16.xpose.msra.mxu0 0
        %873 = vmatpush.bf16.xpose.msra.mxu0 0
        %874 = vmatpush.bf16.xpose.msra.mxu0 0
        %875 = vmatpush.bf16.xpose.msra.mxu0 0
        %876 = vmatpush.bf16.xpose.msra.mxu0 0
        %877 = vmatpush.bf16.xpose.msra.mxu0 0
        %878 = vmatpush.bf16.xpose.msra.mxu0 %v869
        %879 = vmatmul.bf16.gmra.mxu0 %v866
        %v880 = vpop.f32.mrf.mxu0
        %v881 = vadd.f32 0.0, %v880
        %v882 = vpop.f32.mrf.mxu0
        %v883 = vadd.f32 0.0, %v882
        %884 = vdwg.mxu0
        %s885 = scalar_lea.vmem [#allocation2], 32
        %v886 = vld [vmem:[%s885] sm:$0xff]
        %v887 = vld [vmem:[%s885 + $0x8] sm:$0xff]
        %v888 = vsel %vm649, %v881, -inf
        %889 = vmax.xlane.f32.xlu0 %v888
        %v890 = vpop.xlane.xlu0 %889
        %v891 = vsel %vm649, %v883, -inf
        %892 = vmax.xlane.f32.xlu0 %v891
        %v893 = vpop.xlane.xlu0 %892
        %v894 = vmax.f32 %v886, %v890
        %v895 = vmax.f32 %v887, %v893
        %v896 = vsub.f32 %v886, %v894
        %v897 = vsub.f32 %v887, %v895
        %v898 = vmul.f32 %v896, 1.442695
        %v899 = vpow.pop %v898
        %v900 = vmul.f32 %v897, 1.442695
        %v901 = vpow.pop %v900
        %903 = vset.pattern.permute.xlu0 0
        %904 = vperm.xlu0 %903, %v894
        %v905 = vpop.permute.xlu0 %904
        %908 = vset.pattern.permute.xlu0 0
        %909 = vperm.xlu0 %908, %v895
        %v910 = vpop.permute.xlu0 %909
        %v912 = vsub.f32 %v881, %v905
        %v913 = vsub.f32 %v883, %v910
        %v914 = vmul.f32 %v912, 1.442695
        %v915 = vpow.pop %v914
        %v916 = vmul.f32 %v913, 1.442695
        %v917 = vpow.pop %v916
        %s918 = scalar_lea.vmem [#allocation3], 32
        %v919 = vld [vmem:[%s918] sm:$0xff]
        %v920 = vld [vmem:[%s918 + $0x8] sm:$0xff]
        %v921 = vmul.f32 %v899, %v919
        %v922 = vmul.f32 %v901, %v920
        %v923 = vsel %vm649, %v915, 0.0
        %924 = vadd.xlane.f32.xlu0 %v923
        %v925 = vpop.xlane.xlu0 %924
        %v926 = vsel %vm649, %v917, 0.0
        %927 = vadd.xlane.f32.xlu0 %v926
        %v928 = vpop.xlane.xlu0 %927
        %v929 = vadd.f32 %v921, %v925
        %v930 = vadd.f32 %v922, %v928
        %931 = vst.msk [vmem:[%s918] sm:$0xff] %vm692, %v929
        %932 = vst.msk [vmem:[%s918 + $0x8] sm:$0xff] %vm692, %v930
        %v933 = vld [vmem:[#allocation4] sm:$0xff]
        %v934 = vld [vmem:[#allocation4 + $0x8] sm:$0xff]
        %936 = vset.pattern.permute.xlu0 0
        %937 = vperm.xlu0 %936, %v899
        %v938 = vpop.permute.xlu0 %937
        %941 = vset.pattern.permute.xlu0 0
        %942 = vperm.xlu0 %941, %v901
        %v943 = vpop.permute.xlu0 %942
        %v945 = vmul.f32 %v938, %v933
        %v946 = vmul.f32 %v943, %v934
        %v947 = vpack.c.bf16 %v917, %v915
        %948 = vrot.lane.b32.xlu0 %v714, 64
        %v949 = vpop.permute.xlu0 %948
        %v952 = vsel %vm649, %v947, 0
        %954 = vmatpush.bf16.msra.mxu0 0
        %955 = vmatpush.bf16.msra.mxu0 0
        %956 = vmatpush.bf16.msra.mxu0 0
        %957 = vmatpush.bf16.msra.mxu0 0
        %958 = vmatpush.bf16.msra.mxu0 0
        %959 = vmatpush.bf16.msra.mxu0 0
        %960 = vmatpush.bf16.msra.mxu0 0
        %961 = vmatpush.bf16.msra.mxu0 %v949
        %962 = vmatmul.bf16.gmra.mxu0 %v952
        %v963 = vpop.f32.mrf.mxu0
        %v964 = vadd.f32 0.0, %v963
        %v965 = vpop.f32.mrf.mxu0
        %v966 = vadd.f32 0.0, %v965
        %967 = vdwg.mxu0
        %970 = vrot.lane.b32.xlu0 %v964, 64
        %v971 = vpop.permute.xlu0 %970
        %972 = vrot.lane.b32.xlu0 %v966, 64
        %v973 = vpop.permute.xlu0 %972
        %v976 = vadd.f32 %v945, %v971
        %v977 = vadd.f32 %v946, %v973
        %vm978 = vcmask 785920
        %979 = vst.msk [vmem:[#allocation4] sm:$0xff] %vm978, %v976
        %980 = vst.msk [vmem:[#allocation4 + $0x8] sm:$0xff] %vm978, %v977
        %981 = vst.msk [vmem:[%s885] sm:$0xff] %vm692, %v894
        %982 = vst.msk [vmem:[%s885 + $0x8] sm:$0xff] %vm692, %v895
        %983 = vrot.lane.b32.xlu0 %v620, 32
        %v984 = vpop.permute.xlu0 %983
        %985 = vrot.lane.b32.xlu0 %v625, 32
        %v986 = vpop.permute.xlu0 %985
        %v988 = vsel %vm626, %v984, 0
        %v991 = vsel %vm626, %v986, 0
        %993 = vmatpush.bf16.xpose.msra.mxu0 0
        %994 = vmatpush.bf16.xpose.msra.mxu0 0
        %995 = vmatpush.bf16.xpose.msra.mxu0 0
        %996 = vmatpush.bf16.xpose.msra.mxu0 0
        %997 = vmatpush.bf16.xpose.msra.mxu0 0
        %998 = vmatpush.bf16.xpose.msra.mxu0 0
        %999 = vmatpush.bf16.xpose.msra.mxu0 0
        %1000 = vmatpush.bf16.xpose.msra.mxu0 %v991
        %1001 = vmatmul.bf16.gmra.mxu0 %v988
        %v1002 = vpop.f32.mrf.mxu0
        %v1003 = vadd.f32 0.0, %v1002
        %v1004 = vpop.f32.mrf.mxu0
        %v1005 = vadd.f32 0.0, %v1004
        %1006 = vdwg.mxu0
        %s1007 = scalar_lea.vmem [#allocation2], 48
        %v1008 = vld [vmem:[%s1007] sm:$0xff]
        %v1009 = vld [vmem:[%s1007 + $0x8] sm:$0xff]
        %v1010 = vsel %vm649, %v1003, -inf
        %1011 = vmax.xlane.f32.xlu0 %v1010
        %v1012 = vpop.xlane.xlu0 %1011
        %v1013 = vsel %vm649, %v1005, -inf
        %1014 = vmax.xlane.f32.xlu0 %v1013
        %v1015 = vpop.xlane.xlu0 %1014
        %v1016 = vmax.f32 %v1008, %v1012
        %v1017 = vmax.f32 %v1009, %v1015
        %v1018 = vsub.f32 %v1008, %v1016
        %v1019 = vsub.f32 %v1009, %v1017
        %v1020 = vmul.f32 %v1018, 1.442695
        %v1021 = vpow.pop %v1020
        %v1022 = vmul.f32 %v1019, 1.442695
        %v1023 = vpow.pop %v1022
        %1025 = vset.pattern.permute.xlu0 0
        %1026 = vperm.xlu0 %1025, %v1016
        %v1027 = vpop.permute.xlu0 %1026
        %1030 = vset.pattern.permute.xlu0 0
        %1031 = vperm.xlu0 %1030, %v1017
        %v1032 = vpop.permute.xlu0 %1031
        %v1034 = vsub.f32 %v1003, %v1027
        %v1035 = vsub.f32 %v1005, %v1032
        %v1036 = vmul.f32 %v1034, 1.442695
        %v1037 = vpow.pop %v1036
        %v1038 = vmul.f32 %v1035, 1.442695
        %v1039 = vpow.pop %v1038
        %s1040 = scalar_lea.vmem [#allocation3], 48
        %v1041 = vld [vmem:[%s1040] sm:$0xff]
        %v1042 = vld [vmem:[%s1040 + $0x8] sm:$0xff]
        %v1043 = vmul.f32 %v1021, %v1041
        %v1044 = vmul.f32 %v1023, %v1042
        %v1045 = vsel %vm649, %v1037, 0.0
        %1046 = vadd.xlane.f32.xlu0 %v1045
        %v1047 = vpop.xlane.xlu0 %1046
        %v1048 = vsel %vm649, %v1039, 0.0
        %1049 = vadd.xlane.f32.xlu0 %v1048
        %v1050 = vpop.xlane.xlu0 %1049
        %v1051 = vadd.f32 %v1043, %v1047
        %v1052 = vadd.f32 %v1044, %v1050
        %1053 = vst.msk [vmem:[%s1040] sm:$0xff] %vm692, %v1051
        %1054 = vst.msk [vmem:[%s1040 + $0x8] sm:$0xff] %vm692, %v1052
        %v1055 = vld [vmem:[#allocation4] sm:$0xff]
        %v1056 = vld [vmem:[#allocation4 + $0x8] sm:$0xff]
        %1058 = vset.pattern.permute.xlu0 0
        %1059 = vperm.xlu0 %1058, %v1021
        %v1060 = vpop.permute.xlu0 %1059
        %1063 = vset.pattern.permute.xlu0 0
        %1064 = vperm.xlu0 %1063, %v1023
        %v1065 = vpop.permute.xlu0 %1064
        %v1067 = vmul.f32 %v1060, %v1055
        %v1068 = vmul.f32 %v1065, %v1056
        %v1069 = vpack.c.bf16 %v1039, %v1037
        %1070 = vrot.lane.b32.xlu0 %v714, 32
        %v1071 = vpop.permute.xlu0 %1070
        %v1074 = vsel %vm649, %v1069, 0
        %1076 = vmatpush.bf16.msra.mxu0 0
        %1077 = vmatpush.bf16.msra.mxu0 0
        %1078 = vmatpush.bf16.msra.mxu0 0
        %1079 = vmatpush.bf16.msra.mxu0 0
        %1080 = vmatpush.bf16.msra.mxu0 0
        %1081 = vmatpush.bf16.msra.mxu0 0
        %1082 = vmatpush.bf16.msra.mxu0 0
        %1083 = vmatpush.bf16.msra.mxu0 %v1071
        %1084 = vmatmul.bf16.gmra.mxu0 %v1074
        %v1085 = vpop.f32.mrf.mxu0
        %v1086 = vadd.f32 0.0, %v1085
        %v1087 = vpop.f32.mrf.mxu0
        %v1088 = vadd.f32 0.0, %v1087
        %1089 = vdwg.mxu0
        %1092 = vrot.lane.b32.xlu0 %v1086, 96
        %v1093 = vpop.permute.xlu0 %1092
        %1094 = vrot.lane.b32.xlu0 %v1088, 96
        %v1095 = vpop.permute.xlu0 %1094
        %v1098 = vadd.f32 %v1067, %v1093
        %v1099 = vadd.f32 %v1068, %v1095
        %vm1100 = vcmask 1048320
        %1101 = vst.msk [vmem:[#allocation4] sm:$0xff] %vm1100, %v1098
        %1102 = vst.msk [vmem:[#allocation4 + $0x8] sm:$0xff] %vm1100, %v1099
        %1103 = vst.msk [vmem:[%s1007] sm:$0xff] %vm692, %v1016
        %1104 = vst.msk [vmem:[%s1007 + $0x8] sm:$0xff] %vm692, %v1017
        // Predicated region
        $region180: #{_lambda_.12} parent=158 // pred_check
          %p1105 = pneg %p581
        $region181: #{_lambda_.12} parent=158 // pred_check_branch
          %1107 = sbr.rel (%p1105) target = $region183
        $region182: #{_lambda_.12} parent=158 // pred_region
          %v1108 = vld [vmem:[#allocation4] sm:$0xff]
          %v1109 = vld [vmem:[#allocation4 + $0x8] sm:$0xff]
          %v1110 = vld [vmem:[#allocation3] sm:$0xff]
          %v1111 = vld [vmem:[#allocation3 + $0x8] sm:$0xff]
          %v1112 = vrcp.pop %v1110
          %v1113 = vrcp.pop %v1111
          %1115 = vset.pattern.permute.xlu0 0
          %1116 = vperm.xlu0 %1115, %v1112
          %v1117 = vpop.permute.xlu0 %1116
          %1120 = vset.pattern.permute.xlu0 0
          %1121 = vperm.xlu0 %1120, %v1113
          %v1122 = vpop.permute.xlu0 %1121
          %v1124 = vmul.f32 %v1108, %v1117
          %v1125 = vmul.f32 %v1109, %v1122
          %1126 = vst.msk [vmem:[#allocation4] sm:$0xff] %vm626, %v1124
          %1127 = vst.msk [vmem:[#allocation4 + $0x8] sm:$0xff] %vm626, %v1125
          %v1128 = vld [vmem:[#allocation4] sm:$0xff]
          %v1129 = vld [vmem:[#allocation4 + $0x8] sm:$0xff]
          %v1130 = vld [vmem:[%s796] sm:$0xff]
          %v1131 = vld [vmem:[%s796 + $0x8] sm:$0xff]
          %v1132 = vrcp.pop %v1130
          %v1133 = vrcp.pop %v1131
          %1135 = vset.pattern.permute.xlu0 0
          %1136 = vperm.xlu0 %1135, %v1132
          %v1137 = vpop.permute.xlu0 %1136
          %1140 = vset.pattern.permute.xlu0 0
          %1141 = vperm.xlu0 %1140, %v1133
          %v1142 = vpop.permute.xlu0 %1141
          %v1144 = vmul.f32 %v1128, %v1137
          %v1145 = vmul.f32 %v1129, %v1142
          %1146 = vst.msk [vmem:[#allocation4] sm:$0xff] %vm856, %v1144
          %1147 = vst.msk [vmem:[#allocation4 + $0x8] sm:$0xff] %vm856, %v1145
          %v1148 = vld [vmem:[#allocation4] sm:$0xff]
          %v1149 = vld [vmem:[#allocation4 + $0x8] sm:$0xff]
          %v1150 = vld [vmem:[%s918] sm:$0xff]
          %v1151 = vld [vmem:[%s918 + $0x8] sm:$0xff]
          %v1152 = vrcp.pop %v1150
          %v1153 = vrcp.pop %v1151
          %1155 = vset.pattern.permute.xlu0 0
          %1156 = vperm.xlu0 %1155, %v1152
          %v1157 = vpop.permute.xlu0 %1156
          %1160 = vset.pattern.permute.xlu0 0
          %1161 = vperm.xlu0 %1160, %v1153
          %v1162 = vpop.permute.xlu0 %1161
          %v1164 = vmul.f32 %v1148, %v1157
          %v1165 = vmul.f32 %v1149, %v1162
          %1166 = vst.msk [vmem:[#allocation4] sm:$0xff] %vm978, %v1164
          %1167 = vst.msk [vmem:[#allocation4 + $0x8] sm:$0xff] %vm978, %v1165
          %v1168 = vld [vmem:[#allocation4] sm:$0xff]
          %v1169 = vld [vmem:[#allocation4 + $0x8] sm:$0xff]
          %v1170 = vld [vmem:[%s1040] sm:$0xff]
          %v1171 = vld [vmem:[%s1040 + $0x8] sm:$0xff]
          %v1172 = vrcp.pop %v1170
          %v1173 = vrcp.pop %v1171
          %1175 = vset.pattern.permute.xlu0 0
          %1176 = vperm.xlu0 %1175, %v1172
          %v1177 = vpop.permute.xlu0 %1176
          %1180 = vset.pattern.permute.xlu0 0
          %1181 = vperm.xlu0 %1180, %v1173
          %v1182 = vpop.permute.xlu0 %1181
          %v1184 = vmul.f32 %v1168, %v1177
          %v1185 = vmul.f32 %v1169, %v1182
          %1186 = vst.msk [vmem:[#allocation4] sm:$0xff] %vm1100, %v1184
          %1187 = vst.msk [vmem:[#allocation4 + $0x8] sm:$0xff] %vm1100, %v1185
          %v1188 = vld [vmem:[#allocation4] sm:$0xff]
          %v1189 = vld [vmem:[#allocation4 + $0x8] sm:$0xff]
          %v1190 = vpack.c.bf16 %v1189, %v1188
          %v1191 = vld [vmem:[#allocation8] sm:$0xf]
          %v1192 = vld [vmem:[#allocation8 + $0x4] sm:$0xf]
          %v1193 = vld [vmem:[#allocation8 + $0x8] sm:$0xf]
          %v1194 = vld [vmem:[#allocation8 + $0xc] sm:$0xf]
          %v1195 = vld [vmem:[#allocation8 + $0x10] sm:$0xf]
          %v1196 = vld [vmem:[#allocation8 + $0x14] sm:$0xf]
          %v1197 = vld [vmem:[#allocation8 + $0x18] sm:$0xf]
          %v1198 = vld [vmem:[#allocation8 + $0x1c] sm:$0xf]
          %v1199 = vld [vmem:[#allocation8 + $0x20] sm:$0xf]
          %v1200 = vld [vmem:[#allocation8 + $0x24] sm:$0xf]
          %v1201 = vld [vmem:[#allocation8 + $0x28] sm:$0xf]
          %v1202 = vld [vmem:[#allocation8 + $0x2c] sm:$0xf]
          %v1203 = vld [vmem:[#allocation8 + $0x30] sm:$0xf]
          %v1204 = vld [vmem:[#allocation8 + $0x34] sm:$0xf]
          %v1205 = vld [vmem:[#allocation8 + $0x38] sm:$0xf]
          %v1206 = vld [vmem:[#allocation8 + $0x3c] sm:$0xf]
          %v1207 = vld [vmem:[%s4] sm:$0x1]
          %v1209 = vperm.slane %v1207, 0
          %v1227 = vunpack.c.l.b16 %v1191
          %v1228 = vunpack.c.l.b16 %v1192
          %v1229 = vunpack.c.l.b16 %v1193
          %v1230 = vunpack.c.l.b16 %v1194
          %v1231 = vunpack.c.l.b16 %v1195
          %v1232 = vunpack.c.l.b16 %v1196
          %v1233 = vunpack.c.l.b16 %v1197
          %v1234 = vunpack.c.l.b16 %v1198
          %v1235 = vunpack.c.l.b16 %v1199
          %v1236 = vunpack.c.l.b16 %v1200
          %v1237 = vunpack.c.l.b16 %v1201
          %v1238 = vunpack.c.l.b16 %v1202
          %v1239 = vunpack.c.l.b16 %v1203
          %v1240 = vunpack.c.l.b16 %v1204
          %v1241 = vunpack.c.l.b16 %v1205
          %v1242 = vunpack.c.l.b16 %v1206
          %v1243 = vpack.c.b16 %v1228, %v1227
          %v1244 = vpack.c.b16 %v1230, %v1229
          %v1245 = vpack.c.b16 %v1232, %v1231
          %v1246 = vpack.c.b16 %v1234, %v1233
          %v1247 = vpack.c.b16 %v1236, %v1235
          %v1248 = vpack.c.b16 %v1238, %v1237
          %v1249 = vpack.c.b16 %v1240, %v1239
          %v1250 = vpack.c.b16 %v1242, %v1241
          %1259 = vmatpush.bf16.msra.mxu0 %v1250
          %1260 = vmatpush.bf16.msra.mxu0 %v1249
          %1261 = vmatpush.bf16.msra.mxu0 %v1248
          %1262 = vmatpush.bf16.msra.mxu0 %v1247
          %1263 = vmatpush.bf16.msra.mxu0 %v1246
          %1264 = vmatpush.bf16.msra.mxu0 %v1245
          %1265 = vmatpush.bf16.msra.mxu0 %v1244
          %1266 = vmatpush.bf16.msra.mxu0 %v1243
          %1267 = vmatmul.bf16.gmra.mxu0 %v1190
          %v1268 = vpop.f32.mrf.mxu0
          %v1269 = vadd.f32 %v1209, %v1268
          %v1270 = vpop.f32.mrf.mxu0
          %v1271 = vadd.f32 %v1209, %v1270
          %1272 = vdwg.mxu0
          %v1273 = vld [vmem:[%s565] sm:$0xff]
          %v1274 = vld [vmem:[%s565 + $0x8] sm:$0xff]
          %v1275 = vld [vmem:[%s569] sm:$0x1]
          %v1277 = vperm.slane %v1275, 0
          %v1279 = vmul.f32 %v1269, %v1277
          %v1280 = vmul.f32 %v1271, %v1277
          %v1281 = vadd.f32 %v1273, %v1279
          %v1282 = vadd.f32 %v1274, %v1280
          %1283 = vst [vmem:[%s578] sm:$0xff] %v1281
          %1284 = vst [vmem:[%s578 + $0x8] sm:$0xff] %v1282
        $region183: #{_lambda_.12} parent=158 // pred_fallthru
          _
        %s1285 = smul.u32 2, %s25
        %p1286 = scmp.lt.s32.totalorder %s24, 1
        %s1287 = scalar_select %p1286, %s24, 1
        %p1288 = scmp.lt.s32.totalorder %s1285, 1
        %s1289 = scalar_select %p1288, %s1285, 1
        %s1290 = smul.addr %s1287, 2
        %s1291 = sadd.s32 %s1289, %s1290
        %s1292 = smul.addr %s1291, 8
        %s1293 = scalar_lea.vmem %s7, %s1292
        // Predicated region
        $region184: #{_lambda_.12} parent=158 // pred_check
          %p1294 = pneg %p238
        $region185: #{_lambda_.12} parent=158 // pred_check_branch
          %1296 = sbr.rel (%p1294) target = $region187
        $region186: #{_lambda_.12} parent=158 // pred_region
          %s1297 = smul.u32 2, %s25
        $region187: #{_lambda_.12} parent=158 // pred_fallthru
          _
      $region159: #{_lambda_.12} parent=5 // pred_fallthru
        _
      %p1298 = scmp.le.s32.totalorder 2, %s14
      // Predicated region
      $region188: #{_lambda_.12} parent=5 // pred_check
        %p1299 = pneg %p1298
      $region189: #{_lambda_.12} parent=5 // pred_check_branch
        %1301 = sbr.rel (%p1299) target = $region191
      $region190: #{_lambda_.12} parent=5 // pred_region
        %s1302 = ssub.s32 %s14, 2
        // Predicated region
        $region192: #{_lambda_.12} parent=190 // pred_check
          %p1303 = pneg %p244
        $region193: #{_lambda_.12} parent=190 // pred_check_branch
          %1305 = sbr.rel (%p1303) target = $region195
        $region194: #{_lambda_.12} parent=190 // pred_region
          %s1306 = smul.u32 2, %s28
          %p1307 = scmp.lt.s32.totalorder %s27, 1
          %s1308 = scalar_select %p1307, %s27, 1
          %p1309 = scmp.lt.s32.totalorder %s1306, 1
          %s1310 = scalar_select %p1309, %s1306, 1
          %s1311 = smul.addr %s1308, 2
          %s1312 = sadd.s32 %s1310, %s1311
          %s1313 = smul.addr %s1312, 8
          %s1314 = scalar_lea.vmem %s7, %s1313
        $region195: #{_lambda_.12} parent=190 // pred_fallthru
          _
      $region191: #{_lambda_.12} parent=5 // pred_fallthru
        _
    $region6: #{_lambda_.12} parent=1 // loop_footer
      %s18 = sadd.s32 1, %s14
    $region7: #{_lambda_.12} parent=1 // loop_footer_branch
      %13 = sbr.rel target = $region3
    $region8: #{_lambda_.12} parent=1 // loop_exit
      _
    %1315 = vsyncpa [#allocation9], 1
    %s1316 = scalar_lea.sflag [#allocation9], 1
    %1317 = vsyncpa %s1316, 1

// kernel: _lambda_.19
$region0: #{_lambda_.19}
  #allocation0 [shape = 'u32[]', space=smem, size = 0x4, offset = 0x4, fixed_abs, tag = 'smem constant byte address 0x4 - core index']
  #allocation1 [shape = 'u32[72,128]{1,0:T(1,128)}', space=vmem, size = 0x9000, scoped, tag = 'internal scratch']
  %s0 = inlined_call_operand.vmem [shape: f32[2,16,128], index: 0, kind: input, shape index: {}]
  %s1 = inlined_call_operand.vmem [shape: bf16[128,32], index: 1, kind: input, shape index: {}]
  %s2 = inlined_call_operand.hbm [shape: f32[2,16,32], index: 2, kind: output, shape index: {}]
  %s3 = sld [smem:[#allocation0]]
  $region41: #{_lambda_.19} parent=0
    _
  %s5 = ssub.s32 1, %s3
  %s6 = scalar_select 0, %s5, %s3
  $region1: #{_lambda_.19} parent=0
    #allocation2 [shape = 'u8[16384]{0}', space=vmem, size = 0x4000, scoped, tag = 'output window, operand 0']
    #allocation3 [shape = 's32[2]{0}', space=sflag, size = 0x8, scoped, tag = 'scoped memory for _lambda_.19']
    %7 = vsyncpa [#allocation3], 0
    %s8 = scalar_lea.sflag [#allocation3], 1
    %9 = vsyncpa %s8, 0
    loop: start=0, step=1, limit=4
    $region2: #{_lambda_.19} parent=1 // loop_pre_header
      _
    $region3: #{_lambda_.19} parent=1 // loop_header
      %s11 = sphi 0, %s15
      %p12 = scmp.ge.s32.totalorder %s11, 4
      %s18 = sphi 0, %s44
      %s19 = sphi 0, %s40
      %s20 = sphi 0, %s36
      %s21 = sphi 0, %s32
      %s22 = sphi 0, %s18
      %s23 = sphi 0, %s19
      %s24 = sphi 0, %s20
      %s25 = sphi 0, %s21
      %s26 = sphi 0, %s22
      %s27 = sphi 0, %s23
      %s28 = sphi 0, %s24
      %s29 = sphi 0, %s25
      %s51 = sphi 0, %s53
      %s54 = sphi 0, %s51
      %s55 = sphi 0, %s54
      %s71 = sphi 0, %s55
      %s79 = sphi 0, %s81
      %s82 = sphi 0, %s79
      %s83 = sphi 0, %s82
      %s99 = sphi 0, %s83
      %s109 = sphi 0, %s111
      %s112 = sphi 0, %s109
      %s113 = sphi 0, %s112
      %s129 = sphi 0, %s113
    $region4: #{_lambda_.19} parent=1 // loop_header_branch
      %14 = sbr.rel (%p12) target = $region8
    $region5: #{_lambda_.19} parent=1 // loop_body
      %s16 = ssub.s32 %s11, 1
      %s17 = ssub.s32 %s11, 2
      %s30 = sadd.s32 1, %s21
      %p31 = scmp.ge.s32.totalorder %s30, 1
      %s32 = scalar_select %p31, 0, %s30
      %s33 = sadd.s32 1, %s20
      %s34 = scalar_select %p31, %s33, %s20
      %p35 = scmp.ge.s32.totalorder %s34, 1
      %s36 = scalar_select %p35, 0, %s34
      %s37 = sadd.s32 1, %s19
      %s38 = scalar_select %p35, %s37, %s19
      %p39 = scmp.ge.s32.totalorder %s38, 1
      %s40 = scalar_select %p39, 0, %s38
      %s41 = sadd.s32 1, %s18
      %s42 = scalar_select %p39, %s41, %s18
      %p43 = scmp.ge.s32.totalorder %s42, 2
      %s44 = scalar_select %p43, 0, %s42
      %s45 = ssub.s32 %s18, %s44
      %s46 = ssub.s32 %s19, %s40
      %s47 = sor.u32 %s45, %s46
      %s48 = ssub.s32 %s21, %s32
      %s49 = sor.u32 %s47, %s48
      %p50 = scmp.eq.s32.totalorder %s49, 0
      %s52 = sadd.s32 %s51, 1
      %s53 = scalar_select %p50, %s51, %s52
      %p56 = pneg %p50
      %p57 = scmp.eq.s32.totalorder %s11, 1
      %p58 = por %p56, %p57
      %p59 = scmp.ne.s32.totalorder %s51, %s54
      %p60 = scmp.eq.s32.totalorder %s11, 0
      %p61 = por %p59, %p60
      %p62 = scmp.ne.s32.totalorder %s51, %s54
      %p63 = scmp.eq.s32.totalorder %s16, 1
      %p64 = por %p62, %p63
      %p65 = scmp.ne.s32.totalorder %s54, %s55
      %p66 = scmp.eq.s32.totalorder %s16, 0
      %p67 = por %p65, %p66
      %p68 = scmp.ne.s32.totalorder %s54, %s55
      %p69 = scmp.eq.s32.totalorder %s17, 1
      %p70 = por %p68, %p69
      %p72 = scmp.ne.s32.totalorder %s55, %s71
      %p73 = scmp.eq.s32.totalorder %s17, 0
      %p74 = por %p72, %p73
      %s75 = ssub.s32 %s21, %s32
      %s76 = ssub.s32 %s20, %s36
      %s77 = sor.u32 %s75, %s76
      %p78 = scmp.eq.s32.totalorder %s77, 0
      %s80 = sadd.s32 %s79, 1
      %s81 = scalar_select %p78, %s79, %s80
      %p84 = pneg %p78
      %p85 = scmp.eq.s32.totalorder %s11, 1
      %p86 = por %p84, %p85
      %p87 = scmp.ne.s32.totalorder %s79, %s82
      %p88 = scmp.eq.s32.totalorder %s11, 0
      %p89 = por %p87, %p88
      %p90 = scmp.ne.s32.totalorder %s79, %s82
      %p91 = scmp.eq.s32.totalorder %s16, 1
      %p92 = por %p90, %p91
      %p93 = scmp.ne.s32.totalorder %s82, %s83
      %p94 = scmp.eq.s32.totalorder %s16, 0
      %p95 = por %p93, %p94
      %p96 = scmp.ne.s32.totalorder %s82, %s83
      %p97 = scmp.eq.s32.totalorder %s17, 1
      %p98 = por %p96, %p97
      %p100 = scmp.ne.s32.totalorder %s83, %s99
      %p101 = scmp.eq.s32.totalorder %s17, 0
      %p102 = por %p100, %p101
      %s103 = ssub.s32 %s18, %s44
      %s104 = ssub.s32 %s19, %s40
      %s105 = sor.u32 %s103, %s104
      %s106 = ssub.s32 %s20, %s36
      %s107 = sor.u32 %s105, %s106
      %p108 = scmp.eq.s32.totalorder %s107, 0
      %s110 = sadd.s32 %s109, 1
      %s111 = scalar_select %p108, %s109, %s110
      %p114 = pneg %p108
      %p115 = scmp.eq.s32.totalorder %s11, 1
      %p116 = por %p114, %p115
      %p117 = scmp.ne.s32.totalorder %s109, %s112
      %p118 = scmp.eq.s32.totalorder %s11, 0
      %p119 = por %p117, %p118
      %p120 = scmp.ne.s32.totalorder %s109, %s112
      %p121 = scmp.eq.s32.totalorder %s16, 1
      %p122 = por %p120, %p121
      %p123 = scmp.ne.s32.totalorder %s112, %s113
      %p124 = scmp.eq.s32.totalorder %s16, 0
      %p125 = por %p123, %p124
      %p126 = scmp.ne.s32.totalorder %s112, %s113
      %p127 = scmp.eq.s32.totalorder %s17, 1
      %p128 = por %p126, %p127
      %p130 = scmp.ne.s32.totalorder %s113, %s129
      %p131 = scmp.eq.s32.totalorder %s17, 0
      %p132 = por %p130, %p131
      %p133 = scmp.le.s32.totalorder 1, %s11
      %p134 = scmp.lt.s32.totalorder %s11, 3
      %p135 = pnand %p133, %p134
      %p136 = pneg %p135
      // Predicated region
      $region9: #{_lambda_.19} parent=5 // pred_check
        _
      $region10: #{_lambda_.19} parent=5 // pred_check_branch
        %138 = sbr.rel (%p135) target = $region12
      $region11: #{_lambda_.19} parent=5 // pred_region
        %s139 = ssub.s32 %s11, 1
        // Predicated region
        $region13: #{_lambda_.19} parent=11 // pred_check
          %p140 = pneg %p95
        $region14: #{_lambda_.19} parent=11 // pred_check_branch
          %142 = sbr.rel (%p140) target = $region16
        $region15: #{_lambda_.19} parent=11 // pred_region
          %s143 = smul.u32 16, %s25
          %p144 = scmp.lt.s32.totalorder %s143, 15
          %s145 = scalar_select %p144, %s143, 15
          %p146 = scmp.lt.s32.totalorder %s24, 0
          %s147 = scalar_select %p146, %s24, 0
          %s148 = sadd.s32 %s147, %s145
          %s149 = smul.addr %s148, 4
          %s150 = scalar_lea.vmem %s1, %s149
          %s151 = smul.u32 16, %s25
        $region16: #{_lambda_.19} parent=11 // pred_fallthru
          _
      $region12: #{_lambda_.19} parent=5 // pred_fallthru
        _
      %p152 = scmp.lt.s32.totalorder %s11, 2
      // Predicated region
      $region17: #{_lambda_.19} parent=5 // pred_check
        %p153 = pneg %p152
      $region18: #{_lambda_.19} parent=5 // pred_check_branch
        %155 = sbr.rel (%p153) target = $region20
      $region19: #{_lambda_.19} parent=5 // pred_region
        // Predicated region
        $region21: #{_lambda_.19} parent=19 // pred_check
          %p156 = pneg %p61
        $region22: #{_lambda_.19} parent=19 // pred_check_branch
          %158 = sbr.rel (%p156) target = $region24
        $region23: #{_lambda_.19} parent=19 // pred_region
          %s159 = smul.u32 2, %s19
          %p160 = scmp.lt.s32.totalorder %s18, 1
          %s161 = scalar_select %p160, %s18, 1
          %p162 = scmp.lt.s32.totalorder %s159, 1
          %s163 = scalar_select %p162, %s159, 1
          %p164 = scmp.lt.s32.totalorder %s21, 0
          %s165 = scalar_select %p164, %s21, 0
          %s166 = sadd.s32 %s165, %s163
          %s167 = smul.addr %s161, 2
          %s168 = sadd.s32 %s166, %s167
          %s169 = smul.addr %s168, 8
          %s170 = scalar_lea.vmem %s0, %s169
          %s171 = smul.u32 2, %s19
        $region24: #{_lambda_.19} parent=19 // pred_fallthru
          _
      $region20: #{_lambda_.19} parent=5 // pred_fallthru
        _
      %p172 = scmp.le.s32.totalorder 1, %s11
      %p173 = scmp.lt.s32.totalorder %s11, 3
      %p174 = pnand %p172, %p173
      %p175 = pneg %p174
      // Predicated region
      $region25: #{_lambda_.19} parent=5 // pred_check
        _
      $region26: #{_lambda_.19} parent=5 // pred_check_branch
        %177 = sbr.rel (%p174) target = $region28
      $region27: #{_lambda_.19} parent=5 // pred_region
        %s178 = ssub.s32 %s11, 1
        %s179 = smul.u32 2, %s23
        %p180 = scmp.lt.s32.totalorder %s22, 1
        %s181 = scalar_select %p180, %s22, 1
        %p182 = scmp.lt.s32.totalorder %s179, 1
        %s183 = scalar_select %p182, %s179, 1
        %p184 = scmp.lt.s32.totalorder %s25, 0
        %s185 = scalar_select %p184, %s25, 0
        %s186 = sadd.s32 %s185, %s183
        %s187 = smul.addr %s181, 2
        %s188 = sadd.s32 %s186, %s187
        %s189 = smul.addr %s188, 8
        %s190 = scalar_lea.vmem %s0, %s189
        %p191 = pneg %p67
        %p192 = pneg %p64
        %s193 = smul.u32 16, %s25
        %p194 = scmp.lt.s32.totalorder %s193, 15
        %s195 = scalar_select %p194, %s193, 15
        %p196 = scmp.lt.s32.totalorder %s24, 0
        %s197 = scalar_select %p196, %s24, 0
        %s198 = sadd.s32 %s197, %s195
        %s199 = smul.addr %s198, 4
        %s200 = scalar_lea.vmem %s1, %s199
        %p201 = pneg %p95
        %p202 = pneg %p92
        %p203 = pneg %p125
        %p204 = pneg %p122
        %s205 = sand.u32 %s112, 1
        %s206 = scalar_lea.sflag [#allocation3], %s205
        %s207 = sand.u32 %s112, 1
        %s208 = smul.addr %s207, 16
        %s209 = scalar_lea.vmem [#allocation2], %s208
        %s210 = smul.u32 2, %s23
        %p211 = scmp.lt.s32.totalorder %s22, 1
        %s212 = scalar_select %p211, %s22, 1
        %p213 = scmp.lt.s32.totalorder %s210, 1
        %s214 = scalar_select %p213, %s210, 1
        %p215 = scmp.lt.s32.totalorder %s25, 0
        %s216 = scalar_select %p215, %s25, 0
        %s217 = sadd.s32 %s216, %s214
        %s218 = smul.addr %s212, 2
        %s219 = sadd.s32 %s217, %s218
        %s220 = smul.addr %s219, 8
        %s221 = scalar_lea.vmem %s0, %s220
        %s222 = smul.u32 2, %s23
        %s223 = smul.u32 16, %s25
        %p224 = scmp.lt.s32.totalorder %s223, 15
        %s225 = scalar_select %p224, %s223, 15
        %p226 = scmp.lt.s32.totalorder %s24, 0
        %s227 = scalar_select %p226, %s24, 0
        %s228 = sadd.s32 %s227, %s225
        %s229 = smul.addr %s228, 4
        %s230 = scalar_lea.vmem %s1, %s229
        %s231 = smul.u32 16, %s25
        %s232 = smul.u32 2, %s23
        %v233 = vld [vmem:[%s221] sm:$0xff]
        %v234 = vld [vmem:[%s221 + $0x8] sm:$0xff]
        %v235 = vpack.c.bf16 %v234, %v233
        %v236 = vld [vmem:[%s230] sm:$0xf]
        %v237 = vld [vmem:[%s230 + $0x4] sm:$0xf]
        %v238 = vld [vmem:[%s230 + $0x8] sm:$0xf]
        %v239 = vld [vmem:[%s230 + $0xc] sm:$0xf]
        %v240 = vld [vmem:[%s230 + $0x10] sm:$0xf]
        %v241 = vld [vmem:[%s230 + $0x14] sm:$0xf]
        %v242 = vld [vmem:[%s230 + $0x18] sm:$0xf]
        %v243 = vld [vmem:[%s230 + $0x1c] sm:$0xf]
        %v244 = vld [vmem:[%s230 + $0x20] sm:$0xf]
        %v245 = vld [vmem:[%s230 + $0x24] sm:$0xf]
        %v246 = vld [vmem:[%s230 + $0x28] sm:$0xf]
        %v247 = vld [vmem:[%s230 + $0x2c] sm:$0xf]
        %v248 = vld [vmem:[%s230 + $0x30] sm:$0xf]
        %v249 = vld [vmem:[%s230 + $0x34] sm:$0xf]
        %v250 = vld [vmem:[%s230 + $0x38] sm:$0xf]
        %v251 = vld [vmem:[%s230 + $0x3c] sm:$0xf]
        %v268 = vunpack.c.l.b16 %v236
        %v269 = vunpack.c.l.b16 %v237
        %v270 = vunpack.c.l.b16 %v238
        %v271 = vunpack.c.l.b16 %v239
        %v272 = vunpack.c.l.b16 %v240
        %v273 = vunpack.c.l.b16 %v241
        %v274 = vunpack.c.l.b16 %v242
        %v275 = vunpack.c.l.b16 %v243
        %v276 = vunpack.c.l.b16 %v244
        %v277 = vunpack.c.l.b16 %v245
        %v278 = vunpack.c.l.b16 %v246
        %v279 = vunpack.c.l.b16 %v247
        %v280 = vunpack.c.l.b16 %v248
        %v281 = vunpack.c.l.b16 %v249
        %v282 = vunpack.c.l.b16 %v250
        %v283 = vunpack.c.l.b16 %v251
        %v284 = vpack.c.b16 %v269, %v268
        %v285 = vpack.c.b16 %v271, %v270
        %v286 = vpack.c.b16 %v273, %v272
        %v287 = vpack.c.b16 %v275, %v274
        %v288 = vpack.c.b16 %v277, %v276
        %v289 = vpack.c.b16 %v279, %v278
        %v290 = vpack.c.b16 %v281, %v280
        %v291 = vpack.c.b16 %v283, %v282
        %300 = vmatpush.bf16.msra.mxu0 %v291
        %301 = vmatpush.bf16.msra.mxu0 %v290
        %302 = vmatpush.bf16.msra.mxu0 %v289
        %303 = vmatpush.bf16.msra.mxu0 %v288
        %304 = vmatpush.bf16.msra.mxu0 %v287
        %305 = vmatpush.bf16.msra.mxu0 %v286
        %306 = vmatpush.bf16.msra.mxu0 %v285
        %307 = vmatpush.bf16.msra.mxu0 %v284
        %308 = vmatmul.bf16.gmra.mxu0 %v235
        %v309 = vpop.f32.mrf.mxu0
        %v310 = vadd.f32 0.0, %v309
        %v311 = vpop.f32.mrf.mxu0
        %v312 = vadd.f32 0.0, %v311
        %313 = vdwg.mxu0
        %vm314 = vcmask 261120
        %315 = vst.msk [vmem:[%s209] sm:$0xff] %vm314, %v310
        %316 = vst.msk [vmem:[%s209 + $0x8] sm:$0xff] %vm314, %v312
        %s317 = sand.u32 %s112, 1
        %s318 = scalar_lea.sflag [#allocation3], %s317
        %s319 = sand.u32 %s112, 1
        %s320 = smul.addr %s319, 16
        %s321 = scalar_lea.vmem [#allocation2], %s320
        // Predicated region
        $region29: #{_lambda_.19} parent=27 // pred_check
          %p322 = pneg %p122
        $region30: #{_lambda_.19} parent=27 // pred_check_branch
          %324 = sbr.rel (%p322) target = $region32
        $region31: #{_lambda_.19} parent=27 // pred_region
          %s325 = smul.u32 2, %s23
          %327 = vsyncadd %s318, 0
          %s328 = sadd.s32 %s24, %s325
          %s329 = smul.addr %s22, 2
          %s330 = sadd.s32 %s328, %s329
          %s331 = smul.addr %s330, 8
          %s332 = scalar_lea.hbm %s2, %s331
          %s333 = sshll.u32 %s321, 4
          %s334 = int_to_ptr.vmem [resolvable:$true] %s333
          %s335 = sshll.u32 %s332, 4
          %s336 = int_to_ptr.hbm [resolvable:$true] %s335
          %341 = dma.vmem_to_hbm [thread:$0]  %s334, 256, %s336, %s318, 128, 128, 8
        $region32: #{_lambda_.19} parent=27 // pred_fallthru
          _
      $region28: #{_lambda_.19} parent=5 // pred_fallthru
        _
      %p342 = scmp.le.s32.totalorder 2, %s11
      // Predicated region
      $region33: #{_lambda_.19} parent=5 // pred_check
        %p343 = pneg %p342
      $region34: #{_lambda_.19} parent=5 // pred_check_branch
        %345 = sbr.rel (%p343) target = $region36
      $region35: #{_lambda_.19} parent=5 // pred_region
        %s346 = ssub.s32 %s11, 2
        // Predicated region
        $region37: #{_lambda_.19} parent=35 // pred_check
          %p347 = pneg %p128
        $region38: #{_lambda_.19} parent=35 // pred_check_branch
          %349 = sbr.rel (%p347) target = $region40
        $region39: #{_lambda_.19} parent=35 // pred_region
          %s350 = sand.u32 %s113, 1
          %s351 = scalar_lea.sflag [#allocation3], %s350
          %s352 = sand.u32 %s113, 1
          %s353 = smul.addr %s352, 16
          %s354 = scalar_lea.vmem [#allocation2], %s353
          %356 = dma.done %s351, 256
        $region40: #{_lambda_.19} parent=35 // pred_fallthru
          _
      $region36: #{_lambda_.19} parent=5 // pred_fallthru
        _
    $region6: #{_lambda_.19} parent=1 // loop_footer
      %s15 = sadd.s32 1, %s11
    $region7: #{_lambda_.19} parent=1 // loop_footer_branch
      %10 = sbr.rel target = $region3
    $region8: #{_lambda_.19} parent=1 // loop_exit
      _
    %357 = vsyncpa [#allocation3], 1
    %s358 = scalar_lea.sflag [#allocation3], 1
    %359 = vsyncpa %s358, 1

// kernel: _lambda_.14
$region0: #{_lambda_.14}
  #allocation0 [shape = 'u32[]', space=smem, size = 0x4, offset = 0x4, fixed_abs, tag = 'smem constant byte address 0x4 - core index']
  #allocation1 [shape = 'u32[72,128]{1,0:T(1,128)}', space=vmem, size = 0x9000, scoped, tag = 'internal scratch']
  %s0 = inlined_call_operand.vmem [shape: bf16[2,16,256], index: 0, kind: input, shape index: {}]
  %s1 = inlined_call_operand.hbm [shape: bf16[256,128], index: 1, kind: input, shape index: {}]
  %s2 = inlined_call_operand.vmem [shape: f32[1,128], index: 2, kind: input, shape index: {}]
  %s3 = inlined_call_operand.vmem [shape: f32[2,16,128], index: 3, kind: input, shape index: {}]
  %s4 = inlined_call_operand.vmem [shape: f32[2,1,128], index: 4, kind: input, shape index: {}]
  %s5 = inlined_call_operand.vmem [shape: f32[2,16,128], index: 5, kind: output, shape index: {}]
  %s6 = sld [smem:[#allocation0]]
  $region57: #{_lambda_.14} parent=0
    _
  %s8 = ssub.s32 1, %s6
  %s9 = scalar_select 0, %s8, %s6
  $region1: #{_lambda_.14} parent=0
    #allocation2 [shape = 'u8[65536]{0}', space=vmem, size = 0x10000, scoped, tag = 'input window, operand 1, single buffered']
    #allocation3 [shape = 's32[2]{0}', space=sflag, size = 0x8, scoped, tag = 'scoped memory for _lambda_.14']
    %10 = vsyncpa [#allocation3], 0
    loop: start=0, step=1, limit=4
    $region2: #{_lambda_.14} parent=1 // loop_pre_header
      _
    $region3: #{_lambda_.14} parent=1 // loop_header
      %s12 = sphi 0, %s16
      %p13 = scmp.ge.s32.totalorder %s12, 4
      %s19 = sphi 0, %s45
      %s20 = sphi 0, %s41
      %s21 = sphi 0, %s37
      %s22 = sphi 0, %s33
      %s23 = sphi 0, %s19
      %s24 = sphi 0, %s20
      %s25 = sphi 0, %s21
      %s26 = sphi 0, %s22
      %s27 = sphi 0, %s23
      %s28 = sphi 0, %s24
      %s29 = sphi 0, %s25
      %s30 = sphi 0, %s26
      %s52 = sphi 0, %s54
      %s55 = sphi 0, %s52
      %s56 = sphi 0, %s55
      %s72 = sphi 0, %s56
      %s80 = sphi 0, %s82
      %s83 = sphi 0, %s80
      %s84 = sphi 0, %s83
      %s100 = sphi 0, %s84
      %s106 = sphi 0, %s108
      %s109 = sphi 0, %s106
      %s110 = sphi 0, %s109
      %s126 = sphi 0, %s110
      %s136 = sphi 0, %s138
      %s139 = sphi 0, %s136
      %s140 = sphi 0, %s139
      %s156 = sphi 0, %s140
      %s164 = sphi 0, %s166
      %s167 = sphi 0, %s164
      %s168 = sphi 0, %s167
      %s184 = sphi 0, %s168
      %s194 = sphi 0, %s196
      %s197 = sphi 0, %s194
      %s198 = sphi 0, %s197
      %s214 = sphi 0, %s198
    $region4: #{_lambda_.14} parent=1 // loop_header_branch
      %15 = sbr.rel (%p13) target = $region8
    $region5: #{_lambda_.14} parent=1 // loop_body
      %s17 = ssub.s32 %s12, 1
      %s18 = ssub.s32 %s12, 2
      %s31 = sadd.s32 1, %s22
      %p32 = scmp.ge.s32.totalorder %s31, 1
      %s33 = scalar_select %p32, 0, %s31
      %s34 = sadd.s32 1, %s21
      %s35 = scalar_select %p32, %s34, %s21
      %p36 = scmp.ge.s32.totalorder %s35, 1
      %s37 = scalar_select %p36, 0, %s35
      %s38 = sadd.s32 1, %s20
      %s39 = scalar_select %p36, %s38, %s20
      %p40 = scmp.ge.s32.totalorder %s39, 1
      %s41 = scalar_select %p40, 0, %s39
      %s42 = sadd.s32 1, %s19
      %s43 = scalar_select %p40, %s42, %s19
      %p44 = scmp.ge.s32.totalorder %s43, 2
      %s45 = scalar_select %p44, 0, %s43
      %s46 = ssub.s32 %s19, %s45
      %s47 = ssub.s32 %s20, %s41
      %s48 = sor.u32 %s46, %s47
      %s49 = ssub.s32 %s22, %s33
      %s50 = sor.u32 %s48, %s49
      %p51 = scmp.eq.s32.totalorder %s50, 0
      %s53 = sadd.s32 %s52, 1
      %s54 = scalar_select %p51, %s52, %s53
      %p57 = pneg %p51
      %p58 = scmp.eq.s32.totalorder %s12, 1
      %p59 = por %p57, %p58
      %p60 = scmp.ne.s32.totalorder %s52, %s55
      %p61 = scmp.eq.s32.totalorder %s12, 0
      %p62 = por %p60, %p61
      %p63 = scmp.ne.s32.totalorder %s52, %s55
      %p64 = scmp.eq.s32.totalorder %s17, 1
      %p65 = por %p63, %p64
      %p66 = scmp.ne.s32.totalorder %s55, %s56
      %p67 = scmp.eq.s32.totalorder %s17, 0
      %p68 = por %p66, %p67
      %p69 = scmp.ne.s32.totalorder %s55, %s56
      %p70 = scmp.eq.s32.totalorder %s18, 1
      %p71 = por %p69, %p70
      %p73 = scmp.ne.s32.totalorder %s56, %s72
      %p74 = scmp.eq.s32.totalorder %s18, 0
      %p75 = por %p73, %p74
      %s76 = ssub.s32 %s22, %s33
      %s77 = ssub.s32 %s21, %s37
      %s78 = sor.u32 %s76, %s77
      %p79 = scmp.eq.s32.totalorder %s78, 0
      %s81 = sadd.s32 %s80, 1
      %s82 = scalar_select %p79, %s80, %s81
      %p85 = pneg %p79
      %p86 = scmp.eq.s32.totalorder %s12, 1
      %p87 = por %p85, %p86
      %p88 = scmp.ne.s32.totalorder %s80, %s83
      %p89 = scmp.eq.s32.totalorder %s12, 0
      %p90 = por %p88, %p89
      %p91 = scmp.ne.s32.totalorder %s80, %s83
      %p92 = scmp.eq.s32.totalorder %s17, 1
      %p93 = por %p91, %p92
      %p94 = scmp.ne.s32.totalorder %s83, %s84
      %p95 = scmp.eq.s32.totalorder %s17, 0
      %p96 = por %p94, %p95
      %p97 = scmp.ne.s32.totalorder %s83, %s84
      %p98 = scmp.eq.s32.totalorder %s18, 1
      %p99 = por %p97, %p98
      %p101 = scmp.ne.s32.totalorder %s84, %s100
      %p102 = scmp.eq.s32.totalorder %s18, 0
      %p103 = por %p101, %p102
      %s104 = ssub.s32 %s21, %s37
      %p105 = scmp.eq.s32.totalorder %s104, 0
      %s107 = sadd.s32 %s106, 1
      %s108 = scalar_select %p105, %s106, %s107
      %p111 = pneg %p105
      %p112 = scmp.eq.s32.totalorder %s12, 1
      %p113 = por %p111, %p112
      %p114 = scmp.ne.s32.totalorder %s106, %s109
      %p115 = scmp.eq.s32.totalorder %s12, 0
      %p116 = por %p114, %p115
      %p117 = scmp.ne.s32.totalorder %s106, %s109
      %p118 = scmp.eq.s32.totalorder %s17, 1
      %p119 = por %p117, %p118
      %p120 = scmp.ne.s32.totalorder %s109, %s110
      %p121 = scmp.eq.s32.totalorder %s17, 0
      %p122 = por %p120, %p121
      %p123 = scmp.ne.s32.totalorder %s109, %s110
      %p124 = scmp.eq.s32.totalorder %s18, 1
      %p125 = por %p123, %p124
      %p127 = scmp.ne.s32.totalorder %s110, %s126
      %p128 = scmp.eq.s32.totalorder %s18, 0
      %p129 = por %p127, %p128
      %s130 = ssub.s32 %s19, %s45
      %s131 = ssub.s32 %s20, %s41
      %s132 = sor.u32 %s130, %s131
      %s133 = ssub.s32 %s21, %s37
      %s134 = sor.u32 %s132, %s133
      %p135 = scmp.eq.s32.totalorder %s134, 0
      %s137 = sadd.s32 %s136, 1
      %s138 = scalar_select %p135, %s136, %s137
      %p141 = pneg %p135
      %p142 = scmp.eq.s32.totalorder %s12, 1
      %p143 = por %p141, %p142
      %p144 = scmp.ne.s32.totalorder %s136, %s139
      %p145 = scmp.eq.s32.totalorder %s12, 0
      %p146 = por %p144, %p145
      %p147 = scmp.ne.s32.totalorder %s136, %s139
      %p148 = scmp.eq.s32.totalorder %s17, 1
      %p149 = por %p147, %p148
      %p150 = scmp.ne.s32.totalorder %s139, %s140
      %p151 = scmp.eq.s32.totalorder %s17, 0
      %p152 = por %p150, %p151
      %p153 = scmp.ne.s32.totalorder %s139, %s140
      %p154 = scmp.eq.s32.totalorder %s18, 1
      %p155 = por %p153, %p154
      %p157 = scmp.ne.s32.totalorder %s140, %s156
      %p158 = scmp.eq.s32.totalorder %s18, 0
      %p159 = por %p157, %p158
      %s160 = ssub.s32 %s19, %s45
      %s161 = ssub.s32 %s21, %s37
      %s162 = sor.u32 %s160, %s161
      %p163 = scmp.eq.s32.totalorder %s162, 0
      %s165 = sadd.s32 %s164, 1
      %s166 = scalar_select %p163, %s164, %s165
      %p169 = pneg %p163
      %p170 = scmp.eq.s32.totalorder %s12, 1
      %p171 = por %p169, %p170
      %p172 = scmp.ne.s32.totalorder %s164, %s167
      %p173 = scmp.eq.s32.totalorder %s12, 0
      %p174 = por %p172, %p173
      %p175 = scmp.ne.s32.totalorder %s164, %s167
      %p176 = scmp.eq.s32.totalorder %s17, 1
      %p177 = por %p175, %p176
      %p178 = scmp.ne.s32.totalorder %s167, %s168
      %p179 = scmp.eq.s32.totalorder %s17, 0
      %p180 = por %p178, %p179
      %p181 = scmp.ne.s32.totalorder %s167, %s168
      %p182 = scmp.eq.s32.totalorder %s18, 1
      %p183 = por %p181, %p182
      %p185 = scmp.ne.s32.totalorder %s168, %s184
      %p186 = scmp.eq.s32.totalorder %s18, 0
      %p187 = por %p185, %p186
      %s188 = ssub.s32 %s19, %s45
      %s189 = ssub.s32 %s20, %s41
      %s190 = sor.u32 %s188, %s189
      %s191 = ssub.s32 %s21, %s37
      %s192 = sor.u32 %s190, %s191
      %p193 = scmp.eq.s32.totalorder %s192, 0
      %s195 = sadd.s32 %s194, 1
      %s196 = scalar_select %p193, %s194, %s195
      %p199 = pneg %p193
      %p200 = scmp.eq.s32.totalorder %s12, 1
      %p201 = por %p199, %p200
      %p202 = scmp.ne.s32.totalorder %s194, %s197
      %p203 = scmp.eq.s32.totalorder %s12, 0
      %p204 = por %p202, %p203
      %p205 = scmp.ne.s32.totalorder %s194, %s197
      %p206 = scmp.eq.s32.totalorder %s17, 1
      %p207 = por %p205, %p206
      %p208 = scmp.ne.s32.totalorder %s197, %s198
      %p209 = scmp.eq.s32.totalorder %s17, 0
      %p210 = por %p208, %p209
      %p211 = scmp.ne.s32.totalorder %s197, %s198
      %p212 = scmp.eq.s32.totalorder %s18, 1
      %p213 = por %p211, %p212
      %p215 = scmp.ne.s32.totalorder %s198, %s214
      %p216 = scmp.eq.s32.totalorder %s18, 0
      %p217 = por %p215, %p216
      %p218 = scmp.le.s32.totalorder 1, %s12
      %p219 = scmp.lt.s32.totalorder %s12, 3
      %p220 = pnand %p218, %p219
      %p221 = pneg %p220
      // Predicated region
      $region9: #{_lambda_.14} parent=5 // pred_check
        _
      $region10: #{_lambda_.14} parent=5 // pred_check_branch
        %223 = sbr.rel (%p220) target = $region12
      $region11: #{_lambda_.14} parent=5 // pred_region
        %s224 = ssub.s32 %s12, 1
        // Predicated region
        $region13: #{_lambda_.14} parent=11 // pred_check
          %p225 = pneg %p96
        $region14: #{_lambda_.14} parent=11 // pred_check_branch
          %227 = sbr.rel (%p225) target = $region16
        $region15: #{_lambda_.14} parent=11 // pred_region
          %s228 = smul.u32 32, %s26
          %230 = vsyncadd [#allocation3], 0
          %s231 = sadd.s32 %s25, %s228
          %s232 = smul.addr %s231, 4
          %s233 = scalar_lea.hbm %s1, %s232
          %s234 = sshll.u32 %s233, 4
          %s235 = int_to_ptr.hbm [resolvable:$true] %s234
          %s236 = sshll.u32 [#allocation2], 4
          %s237 = int_to_ptr.vmem [resolvable:$true] %s236
          %242 = dma.hbm_to_vmem [thread:$0]  %s235, 2048, %s237, [#allocation3], 64, 64, 4
        $region16: #{_lambda_.14} parent=11 // pred_fallthru
          _
        // Predicated region
        $region17: #{_lambda_.14} parent=11 // pred_check
          %p243 = pneg %p122
        $region18: #{_lambda_.14} parent=11 // pred_check_branch
          %245 = sbr.rel (%p243) target = $region20
        $region19: #{_lambda_.14} parent=11 // pred_region
          %p246 = scmp.lt.s32.totalorder %s25, 0
          %s247 = scalar_select %p246, %s25, 0
          %s248 = scalar_lea.vmem %s2, %s247
        $region20: #{_lambda_.14} parent=11 // pred_fallthru
          _
      $region12: #{_lambda_.14} parent=5 // pred_fallthru
        _
      %p249 = scmp.lt.s32.totalorder %s12, 2
      // Predicated region
      $region21: #{_lambda_.14} parent=5 // pred_check
        %p250 = pneg %p249
      $region22: #{_lambda_.14} parent=5 // pred_check_branch
        %252 = sbr.rel (%p250) target = $region24
      $region23: #{_lambda_.14} parent=5 // pred_region
        // Predicated region
        $region25: #{_lambda_.14} parent=23 // pred_check
          %p253 = pneg %p62
        $region26: #{_lambda_.14} parent=23 // pred_check_branch
          %255 = sbr.rel (%p253) target = $region28
        $region27: #{_lambda_.14} parent=23 // pred_region
          %s256 = smul.u32 2, %s20
          %s257 = smul.u32 2, %s22
          %p258 = scmp.lt.s32.totalorder %s19, 1
          %s259 = scalar_select %p258, %s19, 1
          %p260 = scmp.lt.s32.totalorder %s256, 1
          %s261 = scalar_select %p260, %s256, 1
          %p262 = scmp.lt.s32.totalorder %s257, 1
          %s263 = scalar_select %p262, %s257, 1
          %s264 = smul.addr %s261, 2
          %s265 = sadd.s32 %s263, %s264
          %s266 = smul.addr %s259, 4
          %s267 = sadd.s32 %s265, %s266
          %s268 = smul.addr %s267, 4
          %s269 = scalar_lea.vmem %s0, %s268
          %s270 = smul.u32 2, %s20
          %s271 = smul.u32 2, %s22
        $region28: #{_lambda_.14} parent=23 // pred_fallthru
          _
        // Predicated region
        $region29: #{_lambda_.14} parent=23 // pred_check
          %p272 = pneg %p146
        $region30: #{_lambda_.14} parent=23 // pred_check_branch
          %274 = sbr.rel (%p272) target = $region32
        $region31: #{_lambda_.14} parent=23 // pred_region
          %s275 = smul.u32 2, %s20
          %p276 = scmp.lt.s32.totalorder %s19, 1
          %s277 = scalar_select %p276, %s19, 1
          %p278 = scmp.lt.s32.totalorder %s275, 1
          %s279 = scalar_select %p278, %s275, 1
          %p280 = scmp.lt.s32.totalorder %s21, 0
          %s281 = scalar_select %p280, %s21, 0
          %s282 = sadd.s32 %s281, %s279
          %s283 = smul.addr %s277, 2
          %s284 = sadd.s32 %s282, %s283
          %s285 = smul.addr %s284, 8
          %s286 = scalar_lea.vmem %s3, %s285
          %s287 = smul.u32 2, %s20
        $region32: #{_lambda_.14} parent=23 // pred_fallthru
          _
        // Predicated region
        $region33: #{_lambda_.14} parent=23 // pred_check
          %p288 = pneg %p174
        $region34: #{_lambda_.14} parent=23 // pred_check_branch
          %290 = sbr.rel (%p288) target = $region36
        $region35: #{_lambda_.14} parent=23 // pred_region
          %p291 = scmp.lt.s32.totalorder %s19, 1
          %s292 = scalar_select %p291, %s19, 1
          %p293 = scmp.lt.s32.totalorder %s21, 0
          %s294 = scalar_select %p293, %s21, 0
          %s295 = sadd.s32 %s294, %s292
          %s296 = scalar_lea.vmem %s4, %s295
        $region36: #{_lambda_.14} parent=23 // pred_fallthru
          _
      $region24: #{_lambda_.14} parent=5 // pred_fallthru
        _
      %p297 = scmp.le.s32.totalorder 1, %s12
      %p298 = scmp.lt.s32.totalorder %s12, 3
      %p299 = pnand %p297, %p298
      %p300 = pneg %p299
      // Predicated region
      $region37: #{_lambda_.14} parent=5 // pred_check
        _
      $region38: #{_lambda_.14} parent=5 // pred_check_branch
        %302 = sbr.rel (%p299) target = $region40
      $region39: #{_lambda_.14} parent=5 // pred_region
        %s303 = ssub.s32 %s12, 1
        // Predicated region
        $region41: #{_lambda_.14} parent=39 // pred_check
          %p304 = pneg %p96
        $region42: #{_lambda_.14} parent=39 // pred_check_branch
          %306 = sbr.rel (%p304) target = $region44
        $region43: #{_lambda_.14} parent=39 // pred_region
          %308 = dma.done [#allocation3], 2048
        $region44: #{_lambda_.14} parent=39 // pred_fallthru
          _
        %s309 = smul.u32 2, %s24
        %s310 = smul.u32 2, %s26
        %p311 = scmp.lt.s32.totalorder %s23, 1
        %s312 = scalar_select %p311, %s23, 1
        %p313 = scmp.lt.s32.totalorder %s309, 1
        %s314 = scalar_select %p313, %s309, 1
        %p315 = scmp.lt.s32.totalorder %s310, 1
        %s316 = scalar_select %p315, %s310, 1
        %s317 = smul.addr %s314, 2
        %s318 = sadd.s32 %s316, %s317
        %s319 = smul.addr %s312, 4
        %s320 = sadd.s32 %s318, %s319
        %s321 = smul.addr %s320, 4
        %s322 = scalar_lea.vmem %s0, %s321
        %p323 = pneg %p68
        %p324 = pneg %p65
        %p325 = pneg %p96
        %p326 = pneg %p93
        %p327 = scmp.lt.s32.totalorder %s25, 0
        %s328 = scalar_select %p327, %s25, 0
        %s329 = scalar_lea.vmem %s2, %s328
        %p330 = pneg %p122
        %p331 = pneg %p119
        %s332 = smul.u32 2, %s24
        %p333 = scmp.lt.s32.totalorder %s23, 1
        %s334 = scalar_select %p333, %s23, 1
        %p335 = scmp.lt.s32.totalorder %s332, 1
        %s336 = scalar_select %p335, %s332, 1
        %p337 = scmp.lt.s32.totalorder %s25, 0
        %s338 = scalar_select %p337, %s25, 0
        %s339 = sadd.s32 %s338, %s336
        %s340 = smul.addr %s334, 2
        %s341 = sadd.s32 %s339, %s340
        %s342 = smul.addr %s341, 8
        %s343 = scalar_lea.vmem %s3, %s342
        %p344 = pneg %p152
        %p345 = pneg %p149
        %p346 = scmp.lt.s32.totalorder %s23, 1
        %s347 = scalar_select %p346, %s23, 1
        %p348 = scmp.lt.s32.totalorder %s25, 0
        %s349 = scalar_select %p348, %s25, 0
        %s350 = sadd.s32 %s349, %s347
        %s351 = scalar_lea.vmem %s4, %s350
        %p352 = pneg %p180
        %p353 = pneg %p177
        %p354 = pneg %p210
        %p355 = pneg %p207
        %s356 = smul.u32 2, %s24
        %p357 = scmp.lt.s32.totalorder %s23, 1
        %s358 = scalar_select %p357, %s23, 1
        %p359 = scmp.lt.s32.totalorder %s356, 1
        %s360 = scalar_select %p359, %s356, 1
        %p361 = scmp.lt.s32.totalorder %s25, 0
        %s362 = scalar_select %p361, %s25, 0
        %s363 = sadd.s32 %s362, %s360
        %s364 = smul.addr %s358, 2
        %s365 = sadd.s32 %s363, %s364
        %s366 = smul.addr %s365, 8
        %s367 = scalar_lea.vmem %s5, %s366
        %s368 = smul.u32 2, %s24
        %s369 = smul.u32 2, %s26
        %p370 = scmp.lt.s32.totalorder %s23, 1
        %s371 = scalar_select %p370, %s23, 1
        %p372 = scmp.lt.s32.totalorder %s368, 1
        %s373 = scalar_select %p372, %s368, 1
        %p374 = scmp.lt.s32.totalorder %s369, 1
        %s375 = scalar_select %p374, %s369, 1
        %s376 = smul.addr %s373, 2
        %s377 = sadd.s32 %s375, %s376
        %s378 = smul.addr %s371, 4
        %s379 = sadd.s32 %s377, %s378
        %s380 = smul.addr %s379, 4
        %s381 = scalar_lea.vmem %s0, %s380
        %s382 = smul.u32 2, %s24
        %s383 = smul.u32 2, %s26
        %s384 = smul.u32 32, %s26
        %p385 = scmp.lt.s32.totalorder %s25, 0
        %s386 = scalar_select %p385, %s25, 0
        %s387 = scalar_lea.vmem %s2, %s386
        %s388 = smul.u32 2, %s24
        %p389 = scmp.lt.s32.totalorder %s23, 1
        %s390 = scalar_select %p389, %s23, 1
        %p391 = scmp.lt.s32.totalorder %s388, 1
        %s392 = scalar_select %p391, %s388, 1
        %p393 = scmp.lt.s32.totalorder %s25, 0
        %s394 = scalar_select %p393, %s25, 0
        %s395 = sadd.s32 %s394, %s392
        %s396 = smul.addr %s390, 2
        %s397 = sadd.s32 %s395, %s396
        %s398 = smul.addr %s397, 8
        %s399 = scalar_lea.vmem %s3, %s398
        %s400 = smul.u32 2, %s24
        %p401 = scmp.lt.s32.totalorder %s23, 1
        %s402 = scalar_select %p401, %s23, 1
        %p403 = scmp.lt.s32.totalorder %s25, 0
        %s404 = scalar_select %p403, %s25, 0
        %s405 = sadd.s32 %s404, %s402
        %s406 = scalar_lea.vmem %s4, %s405
        %s407 = smul.u32 2, %s24
        %p408 = scmp.lt.s32.totalorder %s23, 1
        %s409 = scalar_select %p408, %s23, 1
        %p410 = scmp.lt.s32.totalorder %s407, 1
        %s411 = scalar_select %p410, %s407, 1
        %p412 = scmp.lt.s32.totalorder %s25, 0
        %s413 = scalar_select %p412, %s25, 0
        %s414 = sadd.s32 %s413, %s411
        %s415 = smul.addr %s409, 2
        %s416 = sadd.s32 %s414, %s415
        %s417 = smul.addr %s416, 8
        %s418 = scalar_lea.vmem %s5, %s417
        %s419 = smul.u32 2, %s24
        %v420 = vld [vmem:[%s381] sm:$0xff]
        %v421 = vld [vmem:[%s381 + $0x8] sm:$0xff]
        %v422 = vld [vmem:[#allocation2] sm:$0xf]
        %v423 = vld [vmem:[#allocation2 + $0x4] sm:$0xf]
        %v424 = vld [vmem:[#allocation2 + $0x8] sm:$0xf]
        %v425 = vld [vmem:[#allocation2 + $0xc] sm:$0xf]
        %v426 = vld [vmem:[#allocation2 + $0x10] sm:$0xf]
        %v427 = vld [vmem:[#allocation2 + $0x14] sm:$0xf]
        %v428 = vld [vmem:[#allocation2 + $0x18] sm:$0xf]
        %v429 = vld [vmem:[#allocation2 + $0x1c] sm:$0xf]
        %v430 = vld [vmem:[#allocation2 + $0x20] sm:$0xf]
        %v431 = vld [vmem:[#allocation2 + $0x24] sm:$0xf]
        %v432 = vld [vmem:[#allocation2 + $0x28] sm:$0xf]
        %v433 = vld [vmem:[#allocation2 + $0x2c] sm:$0xf]
        %v434 = vld [vmem:[#allocation2 + $0x30] sm:$0xf]
        %v435 = vld [vmem:[#allocation2 + $0x34] sm:$0xf]
        %v436 = vld [vmem:[#allocation2 + $0x38] sm:$0xf]
        %v437 = vld [vmem:[#allocation2 + $0x3c] sm:$0xf]
        %v438 = vld [vmem:[#allocation2 + $0x40] sm:$0xf]
        %v439 = vld [vmem:[#allocation2 + $0x44] sm:$0xf]
        %v440 = vld [vmem:[#allocation2 + $0x48] sm:$0xf]
        %v441 = vld [vmem:[#allocation2 + $0x4c] sm:$0xf]
        %v442 = vld [vmem:[#allocation2 + $0x50] sm:$0xf]
        %v443 = vld [vmem:[#allocation2 + $0x54] sm:$0xf]
        %v444 = vld [vmem:[#allocation2 + $0x58] sm:$0xf]
        %v445 = vld [vmem:[#allocation2 + $0x5c] sm:$0xf]
        %v446 = vld [vmem:[#allocation2 + $0x60] sm:$0xf]
        %v447 = vld [vmem:[#allocation2 + $0x64] sm:$0xf]
        %v448 = vld [vmem:[#allocation2 + $0x68] sm:$0xf]
        %v449 = vld [vmem:[#allocation2 + $0x6c] sm:$0xf]
        %v450 = vld [vmem:[#allocation2 + $0x70] sm:$0xf]
        %v451 = vld [vmem:[#allocation2 + $0x74] sm:$0xf]
        %v452 = vld [vmem:[#allocation2 + $0x78] sm:$0xf]
        %v453 = vld [vmem:[#allocation2 + $0x7c] sm:$0xf]
        %v454 = vld [vmem:[%s387] sm:$0x1]
        %v456 = vperm.slane %v454, 0
        %v460 = vunpack.c.l.b16 %v420
        %v461 = vunpack.c.h.b16 %v420
        %v462 = vunpack.c.l.b16 %v421
        %v463 = vunpack.c.h.b16 %v421
        %v464 = vpack.c.b16 %v462, %v460
        %v465 = vpack.c.b16 %v463, %v461
        %v500 = vunpack.c.l.b16 %v422
        %v501 = vunpack.c.l.b16 %v423
        %v502 = vunpack.c.l.b16 %v424
        %v503 = vunpack.c.l.b16 %v425
        %v504 = vunpack.c.l.b16 %v426
        %v505 = vunpack.c.l.b16 %v427
        %v506 = vunpack.c.l.b16 %v428
        %v507 = vunpack.c.l.b16 %v429
        %v508 = vunpack.c.l.b16 %v430
        %v509 = vunpack.c.l.b16 %v431
        %v510 = vunpack.c.l.b16 %v432
        %v511 = vunpack.c.l.b16 %v433
        %v512 = vunpack.c.l.b16 %v434
        %v513 = vunpack.c.l.b16 %v435
        %v514 = vunpack.c.l.b16 %v436
        %v515 = vunpack.c.l.b16 %v437
        %v516 = vunpack.c.l.b16 %v438
        %v517 = vunpack.c.l.b16 %v439
        %v518 = vunpack.c.l.b16 %v440
        %v519 = vunpack.c.l.b16 %v441
        %v520 = vunpack.c.l.b16 %v442
        %v521 = vunpack.c.l.b16 %v443
        %v522 = vunpack.c.l.b16 %v444
        %v523 = vunpack.c.l.b16 %v445
        %v524 = vunpack.c.l.b16 %v446
        %v525 = vunpack.c.l.b16 %v447
        %v526 = vunpack.c.l.b16 %v448
        %v527 = vunpack.c.l.b16 %v449
        %v528 = vunpack.c.l.b16 %v450
        %v529 = vunpack.c.l.b16 %v451
        %v530 = vunpack.c.l.b16 %v452
        %v531 = vunpack.c.l.b16 %v453
        %v532 = vpack.c.b16 %v501, %v500
        %v533 = vpack.c.b16 %v503, %v502
        %v534 = vpack.c.b16 %v505, %v504
        %v535 = vpack.c.b16 %v507, %v506
        %v536 = vpack.c.b16 %v509, %v508
        %v537 = vpack.c.b16 %v511, %v510
        %v538 = vpack.c.b16 %v513, %v512
        %v539 = vpack.c.b16 %v515, %v514
        %v540 = vpack.c.b16 %v517, %v516
        %v541 = vpack.c.b16 %v519, %v518
        %v542 = vpack.c.b16 %v521, %v520
        %v543 = vpack.c.b16 %v523, %v522
        %v544 = vpack.c.b16 %v525, %v524
        %v545 = vpack.c.b16 %v527, %v526
        %v546 = vpack.c.b16 %v529, %v528
        %v547 = vpack.c.b16 %v531, %v530
        %564 = vmatpush.bf16.msra.mxu0 %v539
        %565 = vmatpush.bf16.msra.mxu0 %v538
        %566 = vmatpush.bf16.msra.mxu0 %v537
        %567 = vmatpush.bf16.msra.mxu0 %v536
        %568 = vmatpush.bf16.msra.mxu0 %v535
        %569 = vmatpush.bf16.msra.mxu0 %v534
        %570 = vmatpush.bf16.msra.mxu0 %v533
        %571 = vmatpush.bf16.msra.mxu0 %v532
        %572 = vmatmul.bf16.gmra.mxu0 %v464
        %v573 = vpop.f32.mrf.mxu0
        %v574 = vadd.f32 %v456, %v573
        %v575 = vpop.f32.mrf.mxu0
        %v576 = vadd.f32 %v456, %v575
        %577 = vdwg.mxu0
        %578 = vmatpush.bf16.msra.mxu0 %v547
        %579 = vmatpush.bf16.msra.mxu0 %v546
        %580 = vmatpush.bf16.msra.mxu0 %v545
        %581 = vmatpush.bf16.msra.mxu0 %v544
        %582 = vmatpush.bf16.msra.mxu0 %v543
        %583 = vmatpush.bf16.msra.mxu0 %v542
        %584 = vmatpush.bf16.msra.mxu0 %v541
        %585 = vmatpush.bf16.msra.mxu0 %v540
        %586 = vmatmul.bf16.gmra.mxu0 %v465
        %v587 = vpop.f32.mrf.mxu0
        %v588 = vadd.f32 %v574, %v587
        %v589 = vpop.f32.mrf.mxu0
        %v590 = vadd.f32 %v576, %v589
        %591 = vdwg.mxu0
        %v592 = vld [vmem:[%s399] sm:$0xff]
        %v593 = vld [vmem:[%s399 + $0x8] sm:$0xff]
        %v594 = vld [vmem:[%s406] sm:$0x1]
        %v596 = vperm.slane %v594, 0
        %v598 = vmul.f32 %v588, %v596
        %v599 = vmul.f32 %v590, %v596
        %v600 = vadd.f32 %v592, %v598
        %v601 = vadd.f32 %v593, %v599
        %602 = vst [vmem:[%s418] sm:$0xff] %v600
        %603 = vst [vmem:[%s418 + $0x8] sm:$0xff] %v601
        %s604 = smul.u32 2, %s24
        %p605 = scmp.lt.s32.totalorder %s23, 1
        %s606 = scalar_select %p605, %s23, 1
        %p607 = scmp.lt.s32.totalorder %s604, 1
        %s608 = scalar_select %p607, %s604, 1
        %p609 = scmp.lt.s32.totalorder %s25, 0
        %s610 = scalar_select %p609, %s25, 0
        %s611 = sadd.s32 %s610, %s608
        %s612 = smul.addr %s606, 2
        %s613 = sadd.s32 %s611, %s612
        %s614 = smul.addr %s613, 8
        %s615 = scalar_lea.vmem %s5, %s614
        // Predicated region
        $region45: #{_lambda_.14} parent=39 // pred_check
          %p616 = pneg %p207
        $region46: #{_lambda_.14} parent=39 // pred_check_branch
          %618 = sbr.rel (%p616) target = $region48
        $region47: #{_lambda_.14} parent=39 // pred_region
          %s619 = smul.u32 2, %s24
        $region48: #{_lambda_.14} parent=39 // pred_fallthru
          _
      $region40: #{_lambda_.14} parent=5 // pred_fallthru
        _
      %p620 = scmp.le.s32.totalorder 2, %s12
      // Predicated region
      $region49: #{_lambda_.14} parent=5 // pred_check
        %p621 = pneg %p620
      $region50: #{_lambda_.14} parent=5 // pred_check_branch
        %623 = sbr.rel (%p621) target = $region52
      $region51: #{_lambda_.14} parent=5 // pred_region
        %s624 = ssub.s32 %s12, 2
        // Predicated region
        $region53: #{_lambda_.14} parent=51 // pred_check
          %p625 = pneg %p213
        $region54: #{_lambda_.14} parent=51 // pred_check_branch
          %627 = sbr.rel (%p625) target = $region56
        $region55: #{_lambda_.14} parent=51 // pred_region
          %s628 = smul.u32 2, %s28
          %p629 = scmp.lt.s32.totalorder %s27, 1
          %s630 = scalar_select %p629, %s27, 1
          %p631 = scmp.lt.s32.totalorder %s628, 1
          %s632 = scalar_select %p631, %s628, 1
          %p633 = scmp.lt.s32.totalorder %s29, 0
          %s634 = scalar_select %p633, %s29, 0
          %s635 = sadd.s32 %s634, %s632
          %s636 = smul.addr %s630, 2
          %s637 = sadd.s32 %s635, %s636
          %s638 = smul.addr %s637, 8
          %s639 = scalar_lea.vmem %s5, %s638
        $region56: #{_lambda_.14} parent=51 // pred_fallthru
          _
      $region52: #{_lambda_.14} parent=5 // pred_fallthru
        _
    $region6: #{_lambda_.14} parent=1 // loop_footer
      %s16 = sadd.s32 1, %s12
    $region7: #{_lambda_.14} parent=1 // loop_footer_branch
      %11 = sbr.rel target = $region3
    $region8: #{_lambda_.14} parent=1 // loop_exit
      _
    %640 = vsyncpa [#allocation3], 1
    %s641 = scalar_lea.sflag [#allocation3], 1
    %642 = vsyncpa %s641, 1

</llo_original>
